<compile_context>
chip_gen: v5e
topology: v5e:2x2
jax: 0.10.0
libtpu: 0.0.40
codegen_flags: <defaults>
</compile_context>

<pallas_src>
import functools
import math

import jax
import jax.numpy as jnp
from jax.experimental import pallas as pl
from jax.experimental.pallas import tpu as pltpu


_NEG_INF = -1e30   # finite "minus infinity" for the block-diagonal batch mask


# ----------------------------------------------------------------------------
# Shared helpers
# ----------------------------------------------------------------------------
def _layer_norm(v, g, b, eps=1e-5):
    mu = jnp.mean(v, axis=-1, keepdims=True)
    var = jnp.mean(jnp.square(v - mu), axis=-1, keepdims=True)
    return (v - mu) * jax.lax.rsqrt(var + eps) * g + b


# ----------------------------------------------------------------------------
# The single fused kernel: whole forward pass, whole batch, all layers.
# ----------------------------------------------------------------------------
def _fused_forward_kernel(
    # activations / constants
    na_ref,        # (BS, A)    noisy actions, rows = (batch, step) flattened
    ts_ref,        # (B, T)     timestep embeddings (one per batch row)
    ctx_ref,       # (B, C)     context vectors
    expand_ref,    # (BS, B)    one-hot batch -> row expansion matrix
    mask_ref,      # (BS, BS)   block-diagonal batch mask (0 / -1e30)
    peb_ref,       # (BS, D)    positional encoding + action_time_proj bias, per row
    # input projections
    w_a_ref,       # (A, D)
    w_t_ref,       # (T, D)
    w_c_ref,       # (C, D)
    b_c_ref,       # (1, D)
    # per-layer attention weights (leading layer / head axes)
    wq_ref,        # (L, H, D, dh)
    wk_ref,        # (L, H, D, dh)
    wv_ref,        # (L, H, D, dh)
    bqkv_ref,      # (3*L, H, 1, dh)   order: [l0:q,k,v, l1:q,k,v, ...]
    wo_ref,        # (L, H, dh, D)
    w_cross_ref,   # (L, 2, D, D)      [Wv_c, Wo_c]
    vec_ref,       # (L, 8, 1, D)      [ln1_g, ln1_b, bo, bv_c, bo_c, ln3_g, ln3_b, b2]
    w1_ref,        # (L, D, F)
    b1_ref,        # (L, 1, F)
    w2_ref,        # (L, F, D)
    # final norm + output head
    lnf_ref,       # (2, 1, D)         [gamma, beta]
    w_out_ref,     # (D, A)
    b_out_ref,     # (1, A)
    # output
    out_ref,       # (BS, A)
    *, nhead, num_layers,
):
    f32 = jnp.float32
    D = w_a_ref.shape[1]
    dh = D // nhead
    inv_sqrt_dh = 1.0 / math.sqrt(dh)
    dn_qkT = (((1,), (1,)), ((), ()))          # q @ k^T without an explicit transpose

    expand = expand_ref[...]                   # (BS, B)
    mask = mask_ref[...]                       # (BS, BS)

    # ---- tgt = Linear([action || timestep]) + PE (concat-matmul split into two dots) ----
    t_proj = jnp.dot(ts_ref[...], w_t_ref[...], preferred_element_type=f32)       # (B, D)
    x = (jnp.dot(na_ref[...], w_a_ref[...], preferred_element_type=f32)
         + jnp.dot(expand, t_proj, preferred_element_type=f32)                    # row-broadcast
         + peb_ref[...])                                                           # (BS, D)

    # ---- memory = context_proj(context).unsqueeze(1): exactly one token per batch ----
    mem = jnp.dot(ctx_ref[...], w_c_ref[...], preferred_element_type=f32) + b_c_ref[...]   # (B, D)

    for l in range(num_layers):                # static unroll: num_layers is small
        ln1_g, ln1_b = vec_ref[l, 0], vec_ref[l, 1]
        bo = vec_ref[l, 2]
        bv_c, bo_c = vec_ref[l, 3], vec_ref[l, 4]
        ln3_g, ln3_b = vec_ref[l, 5], vec_ref[l, 6]
        b2 = vec_ref[l, 7]

        # ---- self-attention (pre-norm); batch folded into rows, block-diag mask ----
        xn = _layer_norm(x, ln1_g, ln1_b)
        sa = None
        for h in range(nhead):                 # static unroll; weights pre-split per head
            qh = jnp.dot(xn, wq_ref[l, h], preferred_element_type=f32) + bqkv_ref[3 * l + 0, h]
            kh = jnp.dot(xn, wk_ref[l, h], preferred_element_type=f32) + bqkv_ref[3 * l + 1, h]
            vh = jnp.dot(xn, wv_ref[l, h], preferred_element_type=f32) + bqkv_ref[3 * l + 2, h]
            s = (jax.lax.dot_general(qh, kh, dn_qkT, preferred_element_type=f32)
                 * inv_sqrt_dh + mask)                                             # (BS, BS)
            s = s - jnp.max(s, axis=-1, keepdims=True)
            p = jnp.exp(s)
            a = p / jnp.sum(p, axis=-1, keepdims=True)
            ctx_h = jnp.dot(a, vh, preferred_element_type=f32)                     # (BS, dh)
            contrib = jnp.dot(ctx_h, wo_ref[l, h], preferred_element_type=f32)     # (BS, D)
            sa = contrib if sa is None else sa + contrib
        x = x + sa + bo

        # ---- cross-attention: single memory token => softmax over one key == 1, so the
        # block is exactly out_proj(value_proj(memory)) broadcast over the sequence
        # (norm2 / Wq_c / Wk_c cannot affect the output). ----
        v_mem = jnp.dot(mem, w_cross_ref[l, 0], preferred_element_type=f32) + bv_c   # (B, D)
        ca = jnp.dot(v_mem, w_cross_ref[l, 1], preferred_element_type=f32) + bo_c    # (B, D)
        x = x + jnp.dot(expand, ca, preferred_element_type=f32)                      # row-broadcast

        # ---- feed-forward (SiLU via exp + approx reciprocal on the EUP slot) ----
        xn = _layer_norm(x, ln3_g, ln3_b)
        hdn = jnp.dot(xn, w1_ref[l], preferred_element_type=f32) + b1_ref[l]
        hdn = hdn * pl.reciprocal(1.0 + jnp.exp(-hdn), approx=True)
        x = x + jnp.dot(hdn, w2_ref[l], preferred_element_type=f32) + b2

    # ---- final LayerNorm + output linear (lane count = action_dim) ----
    xn = _layer_norm(x, lnf_ref[0], lnf_ref[1])
    out_ref[...] = jnp.dot(xn, w_out_ref[...], preferred_element_type=f32) + b_out_ref[...]


# ----------------------------------------------------------------------------
# Full forward (Pallas path): one pallas_call, no grid, everything resident.
# ----------------------------------------------------------------------------
def transformer_diffusion_head_forward(params, noisy_action, timestep_embedding,
                                        context_vector, *, nhead):
    f32 = jnp.float32
    B, S, A = noisy_action.shape
    T = timestep_embedding.shape[-1]
    C = context_vector.shape[-1]
    D = params["w_at"].shape[1]
    F = params["layers"][0]["w1"].shape[1]
    L = len(params["layers"])
    dh = D // nhead
    BS = B * S

    # ---- wrapper-side constant / weight packing (tiny; folded by jit) ----
    w_a = params["w_at"][:A]
    w_t = params["w_at"][A:]
    peb = params["pe"][:S] + params["b_at"]                       # PE + input-proj bias, (S, D)
    pe_rows = jnp.tile(peb, (B, 1))                               # (BS, D)

    expand = jnp.repeat(jnp.eye(B, dtype=f32), S, axis=0)         # (BS, B)
    bid = jnp.repeat(jnp.arange(B), S)
    mask = jnp.where(bid[:, None] == bid[None, :], 0.0, _NEG_INF).astype(f32)   # (BS, BS)

    def split_cols(w):        # (D, D) -> (H, D, dh): per-head column blocks
        return w.reshape(D, nhead, dh).transpose(1, 0, 2)

    wq_l, wk_l, wv_l, bqkv_l, wo_l = [], [], [], [], []
    wcross_l, vec_l, w1_l, b1_l, w2_l = [], [], [], [], []
    for lp in params["layers"]:
        wq_l.append(split_cols(lp["wqkv"][:, :D]))
        wk_l.append(split_cols(lp["wqkv"][:, D:2 * D]))
        wv_l.append(split_cols(lp["wqkv"][:, 2 * D:]))
        bqkv_l.append(jnp.stack([lp["bqkv"][0, :D].reshape(nhead, 1, dh),
                                 lp["bqkv"][0, D:2 * D].reshape(nhead, 1, dh),
                                 lp["bqkv"][0, 2 * D:].reshape(nhead, 1, dh)]))
        wo_l.append(lp["wo"].reshape(nhead, dh, D))
        wcross_l.append(jnp.stack([lp["wv_c"], lp["wo_c"]]))
        vec_l.append(jnp.stack([lp["ln1_g"], lp["ln1_b"], lp["bo"], lp["bv_c"], lp["bo_c"],
                                lp["ln3_g"], lp["ln3_b"], lp["b2"]]))
        w1_l.append(lp["w1"]); b1_l.append(lp["b1"]); w2_l.append(lp["w2"])

    wq = jnp.stack(wq_l)                                  # (L, H, D, dh)
    wk = jnp.stack(wk_l)
    wv = jnp.stack(wv_l)
    bqkv = jnp.stack(bqkv_l).reshape(3 * L, nhead, 1, dh)  # (3L, H, 1, dh)
    wo_h = jnp.stack(wo_l)                                 # (L, H, dh, D)
    w_cross = jnp.stack(wcross_l)                          # (L, 2, D, D)
    vec_d = jnp.stack(vec_l)                               # (L, 8, 1, D)
    w1 = jnp.stack(w1_l)                                   # (L, D, F)
    b1 = jnp.stack(b1_l)                                   # (L, 1, F)
    w2 = jnp.stack(w2_l)                                   # (L, F, D)
    lnf = jnp.stack([params["lnf_g"], params["lnf_b"]])    # (2, 1, D)

    args = (
        noisy_action.reshape(BS, A), timestep_embedding, context_vector,
        expand, mask, pe_rows,
        w_a, w_t, params["w_c"], params["b_c"],
        wq, wk, wv, bqkv, wo_h,
        w_cross, vec_d, w1, b1, w2,
        lnf, params["w_out"], params["b_out"],
    )

    # Advisory cost estimate so XLA doesn't treat the tiny custom call as heavyweight.
    flops = 2 * (BS * A * D + B * T * D + BS * B * D + B * C * D + BS * D * A)
    per_layer = (nhead * (3 * 2 * BS * D * dh + 2 * 2 * BS * BS * dh + 2 * BS * dh * D)
                 + 2 * 2 * B * D * D + 2 * BS * B * D + 2 * 2 * BS * D * F)
    flops += L * per_layer
    transcendentals = L * (nhead * BS * BS + BS * F)
    bytes_accessed = sum(int(a.size) * 4 for a in args) + BS * A * 4
    cost = pl.CostEstimate(flops=int(flops), transcendentals=int(transcendentals),
                           bytes_accessed=int(bytes_accessed))

    out2d = pl.pallas_call(
        functools.partial(_fused_forward_kernel, nhead=nhead, num_layers=L),
        out_shape=jax.ShapeDtypeStruct((BS, A), f32),
        cost_estimate=cost,
    )(*args)
    return out2d.reshape(B, S, A)


# ----------------------------------------------------------------------------
# Fixed sinusoidal positional-encoding table (matches torch PositionalEncoding)
# ----------------------------------------------------------------------------
def _positional_encoding_table(max_len, d_model):
    position = jnp.arange(max_len, dtype=jnp.float32)[:, None]
    div_term = jnp.exp(jnp.arange(0, d_model, 2, dtype=jnp.float32)
                       * (-math.log(10000.0) / d_model))
    ang = position * div_term
    return jnp.stack([jnp.sin(ang), jnp.cos(ang)], axis=-1).reshape(max_len, d_model)


# ----------------------------------------------------------------------------
# Parameter construction (weights stored as (in, out); Linear == x @ W + b)
# ----------------------------------------------------------------------------
def init_params(key, *, action_dim, d_model, context_dim, nhead, num_layers,
                dim_feedforward, timestep_emb_dim, max_seq_len):
    assert d_model % 2 == 0 and d_model % nhead == 0
    keys = iter(jax.random.split(key, 128))

    def w(shape, fan_in):
        return jax.random.normal(next(keys), shape, jnp.float32) / math.sqrt(fan_in)

    def b(shape):
        return 0.1 * jax.random.normal(next(keys), shape, jnp.float32)

    def gamma():
        return 1.0 + 0.1 * jax.random.normal(next(keys), (1, d_model), jnp.float32)

    D, F = d_model, dim_feedforward
    params = dict(
        w_at=w((action_dim + timestep_emb_dim, D), action_dim + timestep_emb_dim),
        b_at=b((1, D)),
        w_c=w((context_dim, D), context_dim),
        b_c=b((1, D)),
        pe=_positional_encoding_table(max_seq_len, D),
        lnf_g=gamma(), lnf_b=b((1, D)),
        w_out=w((D, action_dim), D), b_out=b((1, action_dim)),
        layers=[],
    )
    for _ in range(num_layers):
        params["layers"].append(dict(
            ln1_g=gamma(), ln1_b=b((1, D)),
            wqkv=w((D, 3 * D), D), bqkv=b((1, 3 * D)),
            wo=w((D, D), D), bo=b((1, D)),
            ln2_g=gamma(), ln2_b=b((1, D)),            # used only by the generic reference
            wq_c=w((D, D), D), bq_c=b((1, D)),         # (single-token memory: no output effect)
            wk_c=w((D, D), D), bk_c=b((1, D)),
            wv_c=w((D, D), D), bv_c=b((1, D)),
            wo_c=w((D, D), D), bo_c=b((1, D)),
            ln3_g=gamma(), ln3_b=b((1, D)),
            w1=w((D, F), D), b1=b((1, F)),
            w2=w((F, D), F), b2=b((1, D)),
        ))
    return params


# ----------------------------------------------------------------------------
# Pure-JAX reference (generic pre-norm decoder, full cross-attention incl. q/k)
# ----------------------------------------------------------------------------
def _silu_ref(v):
    return v * jax.nn.sigmoid(v)


def _mha_ref(q_in, k_in, v_in, wq, bq, wk, bk, wv, bv, wo, bo, nhead):
    B, Sq, D = q_in.shape
    Sk = k_in.shape[1]
    dh = D // nhead
    q = (q_in @ wq + bq).reshape(B, Sq, nhead, dh).transpose(0, 2, 1, 3)
    k = (k_in @ wk + bk).reshape(B, Sk, nhead, dh).transpose(0, 2, 1, 3)
    v = (v_in @ wv + bv).reshape(B, Sk, nhead, dh).transpose(0, 2, 1, 3)
    s = jnp.einsum("bhqd,bhkd->bhqk", q, k) / math.sqrt(dh)
    a = jax.nn.softmax(s, axis=-1)
    ctx = jnp.einsum("bhqk,bhkd->bhqd", a, v).transpose(0, 2, 1, 3).reshape(B, Sq, D)
    return ctx @ wo + bo


def _ref_decoder_layer(x, memory, lp, nhead):
    D = x.shape[-1]
    xn = _layer_norm(x, lp["ln1_g"], lp["ln1_b"])
    wq, wk, wv = lp["wqkv"][:, :D], lp["wqkv"][:, D:2 * D], lp["wqkv"][:, 2 * D:]
    bq, bk, bv = lp["bqkv"][:, :D], lp["bqkv"][:, D:2 * D], lp["bqkv"][:, 2 * D:]
    x = x + _mha_ref(xn, xn, xn, wq, bq, wk, bk, wv, bv, lp["wo"], lp["bo"], nhead)
    xn = _layer_norm(x, lp["ln2_g"], lp["ln2_b"])
    x = x + _mha_ref(xn, memory, memory, lp["wq_c"], lp["bq_c"], lp["wk_c"], lp["bk_c"],
                     lp["wv_c"], lp["bv_c"], lp["wo_c"], lp["bo_c"], nhead)
    xn = _layer_norm(x, lp["ln3_g"], lp["ln3_b"])
    h = _silu_ref(xn @ lp["w1"] + lp["b1"])
    return x + h @ lp["w2"] + lp["b2"]


def reference_forward(params, noisy_action, timestep_embedding, context_vector, *, nhead):
    B, S, _ = noisy_action.shape
    T = timestep_embedding.shape[-1]
    ts = jnp.broadcast_to(timestep_embedding[:, None, :], (B, S, T))
    action_time = jnp.concatenate([noisy_action, ts], axis=-1)
    tgt = action_time @ params["w_at"] + params["b_at"] + params["pe"][:S]
    memory = (context_vector @ params["w_c"] + params["b_c"])[:, None, :]
    x = tgt
    for lp in params["layers"]:
        x = _ref_decoder_layer(x, memory, lp, nhead)
    x = _layer_norm(x, params["lnf_g"], params["lnf_b"])
    return x @ params["w_out"] + params["b_out"]


# ----------------------------------------------------------------------------
if __name__ == "__main__":
    key = jax.random.PRNGKey(0)
    kp, k1, k2, k3 = jax.random.split(key, 4)

    # Small, module-consistent shapes.
    batch, seq_len = 2, 8
    action_dim = 4
    d_model = 32
    context_dim = 24
    nhead = 4
    num_decoder_layers = 2
    dim_feedforward = 64
    timestep_emb_dim = 16
    max_seq_len = 20

    params = init_params(
        kp, action_dim=action_dim, d_model=d_model, context_dim=context_dim,
        nhead=nhead, num_layers=num_decoder_layers, dim_feedforward=dim_feedforward,
        timestep_emb_dim=timestep_emb_dim, max_seq_len=max_seq_len)

    noisy_action = jax.random.normal(k1, (batch, seq_len, action_dim), jnp.float32)
    timestep_embedding = jax.random.normal(k2, (batch, timestep_emb_dim), jnp.float32)
    context_vector = jax.random.normal(k3, (batch, context_dim), jnp.float32)

    fwd = jax.jit(functools.partial(transformer_diffusion_head_forward, nhead=nhead))
    out = jax.block_until_ready(fwd(params, noisy_action, timestep_embedding, context_vector))

    ref = reference_forward(params, noisy_action, timestep_embedding, context_vector, nhead=nhead)
    assert out.shape == (batch, seq_len, action_dim), out.shape
    assert out.dtype == jnp.float32, out.dtype
    max_err = float(jnp.max(jnp.abs(out - ref)))
    assert max_err < 1e-2, f"mismatch vs reference: max abs err {max_err}"

    print("KERNEL_OK")
</pallas_src>

<mosaic_0001>
module attributes {stable_mosaic.version = 11 : i64} {
  func.func @_fused_forward_kernel(%arg0: memref<16x4xf32, #tpu.memory_space<vmem>>, %arg1: memref<2x16xf32, #tpu.memory_space<vmem>>, %arg2: memref<2x24xf32, #tpu.memory_space<vmem>>, %arg3: memref<16x2xf32, #tpu.memory_space<vmem>>, %arg4: memref<16x16xf32, #tpu.memory_space<vmem>>, %arg5: memref<16x32xf32, #tpu.memory_space<vmem>>, %arg6: memref<4x32xf32, #tpu.memory_space<vmem>>, %arg7: memref<16x32xf32, #tpu.memory_space<vmem>>, %arg8: memref<24x32xf32, #tpu.memory_space<vmem>>, %arg9: memref<1x32xf32, #tpu.memory_space<vmem>>, %arg10: memref<2x4x32x8xf32, #tpu.memory_space<vmem>>, %arg11: memref<2x4x32x8xf32, #tpu.memory_space<vmem>>, %arg12: memref<2x4x32x8xf32, #tpu.memory_space<vmem>>, %arg13: memref<6x4x1x8xf32, #tpu.memory_space<vmem>>, %arg14: memref<2x4x8x32xf32, #tpu.memory_space<vmem>>, %arg15: memref<2x2x32x32xf32, #tpu.memory_space<vmem>>, %arg16: memref<2x8x1x32xf32, #tpu.memory_space<vmem>>, %arg17: memref<2x32x64xf32, #tpu.memory_space<vmem>>, %arg18: memref<2x1x64xf32, #tpu.memory_space<vmem>>, %arg19: memref<2x64x32xf32, #tpu.memory_space<vmem>>, %arg20: memref<2x1x32xf32, #tpu.memory_space<vmem>>, %arg21: memref<32x4xf32, #tpu.memory_space<vmem>>, %arg22: memref<1x4xf32, #tpu.memory_space<vmem>>, %arg23: memref<16x4xf32, #tpu.memory_space<vmem>>) attributes {dimension_semantics = [], scalar_prefetch = 0 : i64, scratch_operands = 0 : i64, tpu.core_type = #tpu.core_type<tc>} {
    %c0 = arith.constant 0 : index
    %c0_0 = arith.constant 0 : index
    %0 = vector.load %arg3[%c0, %c0_0] : memref<16x2xf32, #tpu.memory_space<vmem>>, vector<16x2xf32>
    %c0_1 = arith.constant 0 : index
    %c0_2 = arith.constant 0 : index
    %1 = vector.load %arg4[%c0_1, %c0_2] : memref<16x16xf32, #tpu.memory_space<vmem>>, vector<16x16xf32>
    %c0_3 = arith.constant 0 : index
    %c0_4 = arith.constant 0 : index
    %2 = vector.load %arg1[%c0_3, %c0_4] : memref<2x16xf32, #tpu.memory_space<vmem>>, vector<2x16xf32>
    %c0_5 = arith.constant 0 : index
    %c0_6 = arith.constant 0 : index
    %3 = vector.load %arg7[%c0_5, %c0_6] : memref<16x32xf32, #tpu.memory_space<vmem>>, vector<16x32xf32>
    %cst = arith.constant dense<0.000000e+00> : vector<2x32xf32>
    %4 = tpu.matmul %2, %3, %cst {dimension_numbers = #tpu.dot_dimension_numbers<[1], [0], [0], [1], [0, 0, 1, 1], [], []>} : vector<2x16xf32>, vector<16x32xf32>, vector<2x32xf32> -> vector<2x32xf32>
    %c0_7 = arith.constant 0 : index
    %c0_8 = arith.constant 0 : index
    %5 = vector.load %arg0[%c0_7, %c0_8] : memref<16x4xf32, #tpu.memory_space<vmem>>, vector<16x4xf32>
    %c0_9 = arith.constant 0 : index
    %c0_10 = arith.constant 0 : index
    %6 = vector.load %arg6[%c0_9, %c0_10] : memref<4x32xf32, #tpu.memory_space<vmem>>, vector<4x32xf32>
    %cst_11 = arith.constant dense<0.000000e+00> : vector<16x32xf32>
    %7 = tpu.matmul %5, %6, %cst_11 {dimension_numbers = #tpu.dot_dimension_numbers<[1], [0], [0], [1], [0, 0, 1, 1], [], []>} : vector<16x4xf32>, vector<4x32xf32>, vector<16x32xf32> -> vector<16x32xf32>
    %cst_12 = arith.constant dense<0.000000e+00> : vector<16x32xf32>
    %8 = tpu.matmul %0, %4, %cst_12 {dimension_numbers = #tpu.dot_dimension_numbers<[1], [0], [0], [1], [0, 0, 1, 1], [], []>} : vector<16x2xf32>, vector<2x32xf32>, vector<16x32xf32> -> vector<16x32xf32>
    %9 = arith.addf %7, %8 : vector<16x32xf32>
    %c0_13 = arith.constant 0 : index
    %c0_14 = arith.constant 0 : index
    %10 = vector.load %arg5[%c0_13, %c0_14] : memref<16x32xf32, #tpu.memory_space<vmem>>, vector<16x32xf32>
    %11 = arith.addf %9, %10 : vector<16x32xf32>
    %c0_15 = arith.constant 0 : index
    %c0_16 = arith.constant 0 : index
    %12 = vector.load %arg2[%c0_15, %c0_16] : memref<2x24xf32, #tpu.memory_space<vmem>>, vector<2x24xf32>
    %c0_17 = arith.constant 0 : index
    %c0_18 = arith.constant 0 : index
    %13 = vector.load %arg8[%c0_17, %c0_18] : memref<24x32xf32, #tpu.memory_space<vmem>>, vector<24x32xf32>
    %cst_19 = arith.constant dense<0.000000e+00> : vector<2x32xf32>
    %14 = tpu.matmul %12, %13, %cst_19 {dimension_numbers = #tpu.dot_dimension_numbers<[1], [0], [0], [1], [0, 0, 1, 1], [], []>} : vector<2x24xf32>, vector<24x32xf32>, vector<2x32xf32> -> vector<2x32xf32>
    %c0_20 = arith.constant 0 : index
    %c0_21 = arith.constant 0 : index
    %15 = vector.load %arg9[%c0_20, %c0_21] : memref<1x32xf32, #tpu.memory_space<vmem>>, vector<1x32xf32>
    %16 = vector.broadcast %15 : vector<1x32xf32> to vector<2x32xf32>
    %17 = arith.addf %14, %16 : vector<2x32xf32>
    %c0_22 = arith.constant 0 : index
    %c0_23 = arith.constant 0 : index
    %c0_24 = arith.constant 0 : index
    %c0_25 = arith.constant 0 : index
    %18 = vector.load %arg16[%c0_22, %c0_23, %c0_24, %c0_25] : memref<2x8x1x32xf32, #tpu.memory_space<vmem>>, vector<1x1x1x32xf32>
    %19 = vector.shape_cast %18 : vector<1x1x1x32xf32> to vector<1x32xf32>
    %c0_26 = arith.constant 0 : index
    %c1 = arith.constant 1 : index
    %c0_27 = arith.constant 0 : index
    %c0_28 = arith.constant 0 : index
    %20 = vector.load %arg16[%c0_26, %c1, %c0_27, %c0_28] : memref<2x8x1x32xf32, #tpu.memory_space<vmem>>, vector<1x1x1x32xf32>
    %21 = vector.shape_cast %20 : vector<1x1x1x32xf32> to vector<1x32xf32>
    %c0_29 = arith.constant 0 : index
    %c2 = arith.constant 2 : index
    %c0_30 = arith.constant 0 : index
    %c0_31 = arith.constant 0 : index
    %22 = vector.load %arg16[%c0_29, %c2, %c0_30, %c0_31] : memref<2x8x1x32xf32, #tpu.memory_space<vmem>>, vector<1x1x1x32xf32>
    %23 = vector.shape_cast %22 : vector<1x1x1x32xf32> to vector<1x32xf32>
    %c0_32 = arith.constant 0 : index
    %c3 = arith.constant 3 : index
    %c0_33 = arith.constant 0 : index
    %c0_34 = arith.constant 0 : index
    %24 = vector.load %arg16[%c0_32, %c3, %c0_33, %c0_34] : memref<2x8x1x32xf32, #tpu.memory_space<vmem>>, vector<1x1x1x32xf32>
    %25 = vector.shape_cast %24 : vector<1x1x1x32xf32> to vector<1x32xf32>
    %c0_35 = arith.constant 0 : index
    %c4 = arith.constant 4 : index
    %c0_36 = arith.constant 0 : index
    %c0_37 = arith.constant 0 : index
    %26 = vector.load %arg16[%c0_35, %c4, %c0_36, %c0_37] : memref<2x8x1x32xf32, #tpu.memory_space<vmem>>, vector<1x1x1x32xf32>
    %27 = vector.shape_cast %26 : vector<1x1x1x32xf32> to vector<1x32xf32>
    %c0_38 = arith.constant 0 : index
    %c5 = arith.constant 5 : index
    %c0_39 = arith.constant 0 : index
    %c0_40 = arith.constant 0 : index
    %28 = vector.load %arg16[%c0_38, %c5, %c0_39, %c0_40] : memref<2x8x1x32xf32, #tpu.memory_space<vmem>>, vector<1x1x1x32xf32>
    %29 = vector.shape_cast %28 : vector<1x1x1x32xf32> to vector<1x32xf32>
    %c0_41 = arith.constant 0 : index
    %c6 = arith.constant 6 : index
    %c0_42 = arith.constant 0 : index
    %c0_43 = arith.constant 0 : index
    %30 = vector.load %arg16[%c0_41, %c6, %c0_42, %c0_43] : memref<2x8x1x32xf32, #tpu.memory_space<vmem>>, vector<1x1x1x32xf32>
    %31 = vector.shape_cast %30 : vector<1x1x1x32xf32> to vector<1x32xf32>
    %c0_44 = arith.constant 0 : index
    %c7 = arith.constant 7 : index
    %c0_45 = arith.constant 0 : index
    %c0_46 = arith.constant 0 : index
    %32 = vector.load %arg16[%c0_44, %c7, %c0_45, %c0_46] : memref<2x8x1x32xf32, #tpu.memory_space<vmem>>, vector<1x1x1x32xf32>
    %33 = vector.shape_cast %32 : vector<1x1x1x32xf32> to vector<1x32xf32>
    %cst_47 = arith.constant dense<0.000000e+00> : vector<16xf32>
    %34 = vector.multi_reduction <add>, %11, %cst_47 [1] : vector<16x32xf32> to vector<16xf32>
    %35 = vector.shape_cast %34 : vector<16xf32> to vector<16x1xf32>
    %cst_48 = arith.constant 3.200000e+01 : f32
    %36 = vector.broadcast %cst_48 : f32 to vector<16x1xf32>
    %37 = arith.divf %35, %36 : vector<16x1xf32>
    %38 = vector.broadcast %37 : vector<16x1xf32> to vector<16x32xf32>
    %39 = arith.subf %11, %38 : vector<16x32xf32>
    %40 = arith.mulf %39, %39 : vector<16x32xf32>
    %cst_49 = arith.constant dense<0.000000e+00> : vector<16xf32>
    %41 = vector.multi_reduction <add>, %40, %cst_49 [1] : vector<16x32xf32> to vector<16xf32>
    %42 = vector.shape_cast %41 : vector<16xf32> to vector<16x1xf32>
    %cst_50 = arith.constant 3.200000e+01 : f32
    %43 = vector.broadcast %cst_50 : f32 to vector<16x1xf32>
    %44 = arith.divf %42, %43 : vector<16x1xf32>
    %45 = vector.broadcast %37 : vector<16x1xf32> to vector<16x32xf32>
    %46 = arith.subf %11, %45 : vector<16x32xf32>
    %cst_51 = arith.constant 9.99999974E-6 : f32
    %47 = vector.broadcast %cst_51 : f32 to vector<16x1xf32>
    %48 = arith.addf %44, %47 : vector<16x1xf32>
    %49 = math.rsqrt %48 : vector<16x1xf32>
    %50 = vector.broadcast %49 : vector<16x1xf32> to vector<16x32xf32>
    %51 = arith.mulf %46, %50 : vector<16x32xf32>
    %52 = vector.broadcast %19 : vector<1x32xf32> to vector<16x32xf32>
    %53 = arith.mulf %51, %52 : vector<16x32xf32>
    %54 = vector.broadcast %21 : vector<1x32xf32> to vector<16x32xf32>
    %55 = arith.addf %53, %54 : vector<16x32xf32>
    %c0_52 = arith.constant 0 : index
    %c0_53 = arith.constant 0 : index
    %c0_54 = arith.constant 0 : index
    %c0_55 = arith.constant 0 : index
    %56 = vector.load %arg10[%c0_52, %c0_53, %c0_54, %c0_55] : memref<2x4x32x8xf32, #tpu.memory_space<vmem>>, vector<1x1x32x8xf32>
    %57 = vector.shape_cast %56 : vector<1x1x32x8xf32> to vector<32x8xf32>
    %cst_56 = arith.constant dense<0.000000e+00> : vector<16x8xf32>
    %58 = tpu.matmul %55, %57, %cst_56 {dimension_numbers = #tpu.dot_dimension_numbers<[1], [0], [0], [1], [0, 0, 1, 1], [], []>} : vector<16x32xf32>, vector<32x8xf32>, vector<16x8xf32> -> vector<16x8xf32>
    %c0_57 = arith.constant 0 : index
    %c0_58 = arith.constant 0 : index
    %c0_59 = arith.constant 0 : index
    %c0_60 = arith.constant 0 : index
    %59 = vector.load %arg13[%c0_57, %c0_58, %c0_59, %c0_60] : memref<6x4x1x8xf32, #tpu.memory_space<vmem>>, vector<1x1x1x8xf32>
    %60 = vector.shape_cast %59 : vector<1x1x1x8xf32> to vector<1x8xf32>
    %61 = vector.broadcast %60 : vector<1x8xf32> to vector<16x8xf32>
    %62 = arith.addf %58, %61 : vector<16x8xf32>
    %c0_61 = arith.constant 0 : index
    %c0_62 = arith.constant 0 : index
    %c0_63 = arith.constant 0 : index
    %c0_64 = arith.constant 0 : index
    %63 = vector.load %arg11[%c0_61, %c0_62, %c0_63, %c0_64] : memref<2x4x32x8xf32, #tpu.memory_space<vmem>>, vector<1x1x32x8xf32>
    %64 = vector.shape_cast %63 : vector<1x1x32x8xf32> to vector<32x8xf32>
    %cst_65 = arith.constant dense<0.000000e+00> : vector<16x8xf32>
    %65 = tpu.matmul %55, %64, %cst_65 {dimension_numbers = #tpu.dot_dimension_numbers<[1], [0], [0], [1], [0, 0, 1, 1], [], []>} : vector<16x32xf32>, vector<32x8xf32>, vector<16x8xf32> -> vector<16x8xf32>
    %c1_66 = arith.constant 1 : index
    %c0_67 = arith.constant 0 : index
    %c0_68 = arith.constant 0 : index
    %c0_69 = arith.constant 0 : index
    %66 = vector.load %arg13[%c1_66, %c0_67, %c0_68, %c0_69] : memref<6x4x1x8xf32, #tpu.memory_space<vmem>>, vector<1x1x1x8xf32>
    %67 = vector.shape_cast %66 : vector<1x1x1x8xf32> to vector<1x8xf32>
    %68 = vector.broadcast %67 : vector<1x8xf32> to vector<16x8xf32>
    %69 = arith.addf %65, %68 : vector<16x8xf32>
    %c0_70 = arith.constant 0 : index
    %c0_71 = arith.constant 0 : index
    %c0_72 = arith.constant 0 : index
    %c0_73 = arith.constant 0 : index
    %70 = vector.load %arg12[%c0_70, %c0_71, %c0_72, %c0_73] : memref<2x4x32x8xf32, #tpu.memory_space<vmem>>, vector<1x1x32x8xf32>
    %71 = vector.shape_cast %70 : vector<1x1x32x8xf32> to vector<32x8xf32>
    %cst_74 = arith.constant dense<0.000000e+00> : vector<16x8xf32>
    %72 = tpu.matmul %55, %71, %cst_74 {dimension_numbers = #tpu.dot_dimension_numbers<[1], [0], [0], [1], [0, 0, 1, 1], [], []>} : vector<16x32xf32>, vector<32x8xf32>, vector<16x8xf32> -> vector<16x8xf32>
    %c2_75 = arith.constant 2 : index
    %c0_76 = arith.constant 0 : index
    %c0_77 = arith.constant 0 : index
    %c0_78 = arith.constant 0 : index
    %73 = vector.load %arg13[%c2_75, %c0_76, %c0_77, %c0_78] : memref<6x4x1x8xf32, #tpu.memory_space<vmem>>, vector<1x1x1x8xf32>
    %74 = vector.shape_cast %73 : vector<1x1x1x8xf32> to vector<1x8xf32>
    %75 = vector.broadcast %74 : vector<1x8xf32> to vector<16x8xf32>
    %76 = arith.addf %72, %75 : vector<16x8xf32>
    %cst_79 = arith.constant dense<0.000000e+00> : vector<16x16xf32>
    %77 = tpu.matmul %62, %69, %cst_79 {dimension_numbers = #tpu.dot_dimension_numbers<[1], [1], [0], [0], [0, 0, 1, 0], [], []>} : vector<16x8xf32>, vector<16x8xf32>, vector<16x16xf32> -> vector<16x16xf32>
    %cst_80 = arith.constant 0.353553385 : f32
    %78 = vector.broadcast %cst_80 : f32 to vector<16x16xf32>
    %79 = arith.mulf %77, %78 : vector<16x16xf32>
    %80 = arith.addf %79, %1 : vector<16x16xf32>
    %cst_81 = arith.constant dense<0xFF800000> : vector<16xf32>
    %81 = vector.multi_reduction <maximumf>, %80, %cst_81 [1] : vector<16x16xf32> to vector<16xf32>
    %82 = vector.shape_cast %81 : vector<16xf32> to vector<16x1xf32>
    %83 = vector.broadcast %82 : vector<16x1xf32> to vector<16x16xf32>
    %84 = arith.subf %80, %83 : vector<16x16xf32>
    %85 = math.exp %84 : vector<16x16xf32>
    %cst_82 = arith.constant dense<0.000000e+00> : vector<16xf32>
    %86 = vector.multi_reduction <add>, %85, %cst_82 [1] : vector<16x16xf32> to vector<16xf32>
    %87 = vector.shape_cast %86 : vector<16xf32> to vector<16x1xf32>
    %88 = vector.broadcast %87 : vector<16x1xf32> to vector<16x16xf32>
    %89 = arith.divf %85, %88 : vector<16x16xf32>
    %cst_83 = arith.constant dense<0.000000e+00> : vector<16x8xf32>
    %90 = tpu.matmul %89, %76, %cst_83 {dimension_numbers = #tpu.dot_dimension_numbers<[1], [0], [0], [1], [0, 0, 1, 1], [], []>} : vector<16x16xf32>, vector<16x8xf32>, vector<16x8xf32> -> vector<16x8xf32>
    %c0_84 = arith.constant 0 : index
    %c0_85 = arith.constant 0 : index
    %c0_86 = arith.constant 0 : index
    %c0_87 = arith.constant 0 : index
    %91 = vector.load %arg14[%c0_84, %c0_85, %c0_86, %c0_87] : memref<2x4x8x32xf32, #tpu.memory_space<vmem>>, vector<1x1x8x32xf32>
    %92 = vector.shape_cast %91 : vector<1x1x8x32xf32> to vector<8x32xf32>
    %cst_88 = arith.constant dense<0.000000e+00> : vector<16x32xf32>
    %93 = tpu.matmul %90, %92, %cst_88 {dimension_numbers = #tpu.dot_dimension_numbers<[1], [0], [0], [1], [0, 0, 1, 1], [], []>} : vector<16x8xf32>, vector<8x32xf32>, vector<16x32xf32> -> vector<16x32xf32>
    %c0_89 = arith.constant 0 : index
    %c1_90 = arith.constant 1 : index
    %c0_91 = arith.constant 0 : index
    %c0_92 = arith.constant 0 : index
    %94 = vector.load %arg10[%c0_89, %c1_90, %c0_91, %c0_92] : memref<2x4x32x8xf32, #tpu.memory_space<vmem>>, vector<1x1x32x8xf32>
    %95 = vector.shape_cast %94 : vector<1x1x32x8xf32> to vector<32x8xf32>
    %cst_93 = arith.constant dense<0.000000e+00> : vector<16x8xf32>
    %96 = tpu.matmul %55, %95, %cst_93 {dimension_numbers = #tpu.dot_dimension_numbers<[1], [0], [0], [1], [0, 0, 1, 1], [], []>} : vector<16x32xf32>, vector<32x8xf32>, vector<16x8xf32> -> vector<16x8xf32>
    %c0_94 = arith.constant 0 : index
    %c1_95 = arith.constant 1 : index
    %c0_96 = arith.constant 0 : index
    %c0_97 = arith.constant 0 : index
    %97 = vector.load %arg13[%c0_94, %c1_95, %c0_96, %c0_97] : memref<6x4x1x8xf32, #tpu.memory_space<vmem>>, vector<1x1x1x8xf32>
    %98 = vector.shape_cast %97 : vector<1x1x1x8xf32> to vector<1x8xf32>
    %99 = vector.broadcast %98 : vector<1x8xf32> to vector<16x8xf32>
    %100 = arith.addf %96, %99 : vector<16x8xf32>
    %c0_98 = arith.constant 0 : index
    %c1_99 = arith.constant 1 : index
    %c0_100 = arith.constant 0 : index
    %c0_101 = arith.constant 0 : index
    %101 = vector.load %arg11[%c0_98, %c1_99, %c0_100, %c0_101] : memref<2x4x32x8xf32, #tpu.memory_space<vmem>>, vector<1x1x32x8xf32>
    %102 = vector.shape_cast %101 : vector<1x1x32x8xf32> to vector<32x8xf32>
    %cst_102 = arith.constant dense<0.000000e+00> : vector<16x8xf32>
    %103 = tpu.matmul %55, %102, %cst_102 {dimension_numbers = #tpu.dot_dimension_numbers<[1], [0], [0], [1], [0, 0, 1, 1], [], []>} : vector<16x32xf32>, vector<32x8xf32>, vector<16x8xf32> -> vector<16x8xf32>
    %c1_103 = arith.constant 1 : index
    %c1_104 = arith.constant 1 : index
    %c0_105 = arith.constant 0 : index
    %c0_106 = arith.constant 0 : index
    %104 = vector.load %arg13[%c1_103, %c1_104, %c0_105, %c0_106] : memref<6x4x1x8xf32, #tpu.memory_space<vmem>>, vector<1x1x1x8xf32>
    %105 = vector.shape_cast %104 : vector<1x1x1x8xf32> to vector<1x8xf32>
    %106 = vector.broadcast %105 : vector<1x8xf32> to vector<16x8xf32>
    %107 = arith.addf %103, %106 : vector<16x8xf32>
    %c0_107 = arith.constant 0 : index
    %c1_108 = arith.constant 1 : index
    %c0_109 = arith.constant 0 : index
    %c0_110 = arith.constant 0 : index
    %108 = vector.load %arg12[%c0_107, %c1_108, %c0_109, %c0_110] : memref<2x4x32x8xf32, #tpu.memory_space<vmem>>, vector<1x1x32x8xf32>
    %109 = vector.shape_cast %108 : vector<1x1x32x8xf32> to vector<32x8xf32>
    %cst_111 = arith.constant dense<0.000000e+00> : vector<16x8xf32>
    %110 = tpu.matmul %55, %109, %cst_111 {dimension_numbers = #tpu.dot_dimension_numbers<[1], [0], [0], [1], [0, 0, 1, 1], [], []>} : vector<16x32xf32>, vector<32x8xf32>, vector<16x8xf32> -> vector<16x8xf32>
    %c2_112 = arith.constant 2 : index
    %c1_113 = arith.constant 1 : index
    %c0_114 = arith.constant 0 : index
    %c0_115 = arith.constant 0 : index
    %111 = vector.load %arg13[%c2_112, %c1_113, %c0_114, %c0_115] : memref<6x4x1x8xf32, #tpu.memory_space<vmem>>, vector<1x1x1x8xf32>
    %112 = vector.shape_cast %111 : vector<1x1x1x8xf32> to vector<1x8xf32>
    %113 = vector.broadcast %112 : vector<1x8xf32> to vector<16x8xf32>
    %114 = arith.addf %110, %113 : vector<16x8xf32>
    %cst_116 = arith.constant dense<0.000000e+00> : vector<16x16xf32>
    %115 = tpu.matmul %100, %107, %cst_116 {dimension_numbers = #tpu.dot_dimension_numbers<[1], [1], [0], [0], [0, 0, 1, 0], [], []>} : vector<16x8xf32>, vector<16x8xf32>, vector<16x16xf32> -> vector<16x16xf32>
    %cst_117 = arith.constant 0.353553385 : f32
    %116 = vector.broadcast %cst_117 : f32 to vector<16x16xf32>
    %117 = arith.mulf %115, %116 : vector<16x16xf32>
    %118 = arith.addf %117, %1 : vector<16x16xf32>
    %cst_118 = arith.constant dense<0xFF800000> : vector<16xf32>
    %119 = vector.multi_reduction <maximumf>, %118, %cst_118 [1] : vector<16x16xf32> to vector<16xf32>
    %120 = vector.shape_cast %119 : vector<16xf32> to vector<16x1xf32>
    %121 = vector.broadcast %120 : vector<16x1xf32> to vector<16x16xf32>
    %122 = arith.subf %118, %121 : vector<16x16xf32>
    %123 = math.exp %122 : vector<16x16xf32>
    %cst_119 = arith.constant dense<0.000000e+00> : vector<16xf32>
    %124 = vector.multi_reduction <add>, %123, %cst_119 [1] : vector<16x16xf32> to vector<16xf32>
    %125 = vector.shape_cast %124 : vector<16xf32> to vector<16x1xf32>
    %126 = vector.broadcast %125 : vector<16x1xf32> to vector<16x16xf32>
    %127 = arith.divf %123, %126 : vector<16x16xf32>
    %cst_120 = arith.constant dense<0.000000e+00> : vector<16x8xf32>
    %128 = tpu.matmul %127, %114, %cst_120 {dimension_numbers = #tpu.dot_dimension_numbers<[1], [0], [0], [1], [0, 0, 1, 1], [], []>} : vector<16x16xf32>, vector<16x8xf32>, vector<16x8xf32> -> vector<16x8xf32>
    %c0_121 = arith.constant 0 : index
    %c1_122 = arith.constant 1 : index
    %c0_123 = arith.constant 0 : index
    %c0_124 = arith.constant 0 : index
    %129 = vector.load %arg14[%c0_121, %c1_122, %c0_123, %c0_124] : memref<2x4x8x32xf32, #tpu.memory_space<vmem>>, vector<1x1x8x32xf32>
    %130 = vector.shape_cast %129 : vector<1x1x8x32xf32> to vector<8x32xf32>
    %cst_125 = arith.constant dense<0.000000e+00> : vector<16x32xf32>
    %131 = tpu.matmul %128, %130, %cst_125 {dimension_numbers = #tpu.dot_dimension_numbers<[1], [0], [0], [1], [0, 0, 1, 1], [], []>} : vector<16x8xf32>, vector<8x32xf32>, vector<16x32xf32> -> vector<16x32xf32>
    %132 = arith.addf %93, %131 : vector<16x32xf32>
    %c0_126 = arith.constant 0 : index
    %c2_127 = arith.constant 2 : index
    %c0_128 = arith.constant 0 : index
    %c0_129 = arith.constant 0 : index
    %133 = vector.load %arg10[%c0_126, %c2_127, %c0_128, %c0_129] : memref<2x4x32x8xf32, #tpu.memory_space<vmem>>, vector<1x1x32x8xf32>
    %134 = vector.shape_cast %133 : vector<1x1x32x8xf32> to vector<32x8xf32>
    %cst_130 = arith.constant dense<0.000000e+00> : vector<16x8xf32>
    %135 = tpu.matmul %55, %134, %cst_130 {dimension_numbers = #tpu.dot_dimension_numbers<[1], [0], [0], [1], [0, 0, 1, 1], [], []>} : vector<16x32xf32>, vector<32x8xf32>, vector<16x8xf32> -> vector<16x8xf32>
    %c0_131 = arith.constant 0 : index
    %c2_132 = arith.constant 2 : index
    %c0_133 = arith.constant 0 : index
    %c0_134 = arith.constant 0 : index
    %136 = vector.load %arg13[%c0_131, %c2_132, %c0_133, %c0_134] : memref<6x4x1x8xf32, #tpu.memory_space<vmem>>, vector<1x1x1x8xf32>
    %137 = vector.shape_cast %136 : vector<1x1x1x8xf32> to vector<1x8xf32>
    %138 = vector.broadcast %137 : vector<1x8xf32> to vector<16x8xf32>
    %139 = arith.addf %135, %138 : vector<16x8xf32>
    %c0_135 = arith.constant 0 : index
    %c2_136 = arith.constant 2 : index
    %c0_137 = arith.constant 0 : index
    %c0_138 = arith.constant 0 : index
    %140 = vector.load %arg11[%c0_135, %c2_136, %c0_137, %c0_138] : memref<2x4x32x8xf32, #tpu.memory_space<vmem>>, vector<1x1x32x8xf32>
    %141 = vector.shape_cast %140 : vector<1x1x32x8xf32> to vector<32x8xf32>
    %cst_139 = arith.constant dense<0.000000e+00> : vector<16x8xf32>
    %142 = tpu.matmul %55, %141, %cst_139 {dimension_numbers = #tpu.dot_dimension_numbers<[1], [0], [0], [1], [0, 0, 1, 1], [], []>} : vector<16x32xf32>, vector<32x8xf32>, vector<16x8xf32> -> vector<16x8xf32>
    %c1_140 = arith.constant 1 : index
    %c2_141 = arith.constant 2 : index
    %c0_142 = arith.constant 0 : index
    %c0_143 = arith.constant 0 : index
    %143 = vector.load %arg13[%c1_140, %c2_141, %c0_142, %c0_143] : memref<6x4x1x8xf32, #tpu.memory_space<vmem>>, vector<1x1x1x8xf32>
    %144 = vector.shape_cast %143 : vector<1x1x1x8xf32> to vector<1x8xf32>
    %145 = vector.broadcast %144 : vector<1x8xf32> to vector<16x8xf32>
    %146 = arith.addf %142, %145 : vector<16x8xf32>
    %c0_144 = arith.constant 0 : index
    %c2_145 = arith.constant 2 : index
    %c0_146 = arith.constant 0 : index
    %c0_147 = arith.constant 0 : index
    %147 = vector.load %arg12[%c0_144, %c2_145, %c0_146, %c0_147] : memref<2x4x32x8xf32, #tpu.memory_space<vmem>>, vector<1x1x32x8xf32>
    %148 = vector.shape_cast %147 : vector<1x1x32x8xf32> to vector<32x8xf32>
    %cst_148 = arith.constant dense<0.000000e+00> : vector<16x8xf32>
    %149 = tpu.matmul %55, %148, %cst_148 {dimension_numbers = #tpu.dot_dimension_numbers<[1], [0], [0], [1], [0, 0, 1, 1], [], []>} : vector<16x32xf32>, vector<32x8xf32>, vector<16x8xf32> -> vector<16x8xf32>
    %c2_149 = arith.constant 2 : index
    %c2_150 = arith.constant 2 : index
    %c0_151 = arith.constant 0 : index
    %c0_152 = arith.constant 0 : index
    %150 = vector.load %arg13[%c2_149, %c2_150, %c0_151, %c0_152] : memref<6x4x1x8xf32, #tpu.memory_space<vmem>>, vector<1x1x1x8xf32>
    %151 = vector.shape_cast %150 : vector<1x1x1x8xf32> to vector<1x8xf32>
    %152 = vector.broadcast %151 : vector<1x8xf32> to vector<16x8xf32>
    %153 = arith.addf %149, %152 : vector<16x8xf32>
    %cst_153 = arith.constant dense<0.000000e+00> : vector<16x16xf32>
    %154 = tpu.matmul %139, %146, %cst_153 {dimension_numbers = #tpu.dot_dimension_numbers<[1], [1], [0], [0], [0, 0, 1, 0], [], []>} : vector<16x8xf32>, vector<16x8xf32>, vector<16x16xf32> -> vector<16x16xf32>
    %cst_154 = arith.constant 0.353553385 : f32
    %155 = vector.broadcast %cst_154 : f32 to vector<16x16xf32>
    %156 = arith.mulf %154, %155 : vector<16x16xf32>
    %157 = arith.addf %156, %1 : vector<16x16xf32>
    %cst_155 = arith.constant dense<0xFF800000> : vector<16xf32>
    %158 = vector.multi_reduction <maximumf>, %157, %cst_155 [1] : vector<16x16xf32> to vector<16xf32>
    %159 = vector.shape_cast %158 : vector<16xf32> to vector<16x1xf32>
    %160 = vector.broadcast %159 : vector<16x1xf32> to vector<16x16xf32>
    %161 = arith.subf %157, %160 : vector<16x16xf32>
    %162 = math.exp %161 : vector<16x16xf32>
    %cst_156 = arith.constant dense<0.000000e+00> : vector<16xf32>
    %163 = vector.multi_reduction <add>, %162, %cst_156 [1] : vector<16x16xf32> to vector<16xf32>
    %164 = vector.shape_cast %163 : vector<16xf32> to vector<16x1xf32>
    %165 = vector.broadcast %164 : vector<16x1xf32> to vector<16x16xf32>
    %166 = arith.divf %162, %165 : vector<16x16xf32>
    %cst_157 = arith.constant dense<0.000000e+00> : vector<16x8xf32>
    %167 = tpu.matmul %166, %153, %cst_157 {dimension_numbers = #tpu.dot_dimension_numbers<[1], [0], [0], [1], [0, 0, 1, 1], [], []>} : vector<16x16xf32>, vector<16x8xf32>, vector<16x8xf32> -> vector<16x8xf32>
    %c0_158 = arith.constant 0 : index
    %c2_159 = arith.constant 2 : index
    %c0_160 = arith.constant 0 : index
    %c0_161 = arith.constant 0 : index
    %168 = vector.load %arg14[%c0_158, %c2_159, %c0_160, %c0_161] : memref<2x4x8x32xf32, #tpu.memory_space<vmem>>, vector<1x1x8x32xf32>
    %169 = vector.shape_cast %168 : vector<1x1x8x32xf32> to vector<8x32xf32>
    %cst_162 = arith.constant dense<0.000000e+00> : vector<16x32xf32>
    %170 = tpu.matmul %167, %169, %cst_162 {dimension_numbers = #tpu.dot_dimension_numbers<[1], [0], [0], [1], [0, 0, 1, 1], [], []>} : vector<16x8xf32>, vector<8x32xf32>, vector<16x32xf32> -> vector<16x32xf32>
    %171 = arith.addf %132, %170 : vector<16x32xf32>
    %c0_163 = arith.constant 0 : index
    %c3_164 = arith.constant 3 : index
    %c0_165 = arith.constant 0 : index
    %c0_166 = arith.constant 0 : index
    %172 = vector.load %arg10[%c0_163, %c3_164, %c0_165, %c0_166] : memref<2x4x32x8xf32, #tpu.memory_space<vmem>>, vector<1x1x32x8xf32>
    %173 = vector.shape_cast %172 : vector<1x1x32x8xf32> to vector<32x8xf32>
    %cst_167 = arith.constant dense<0.000000e+00> : vector<16x8xf32>
    %174 = tpu.matmul %55, %173, %cst_167 {dimension_numbers = #tpu.dot_dimension_numbers<[1], [0], [0], [1], [0, 0, 1, 1], [], []>} : vector<16x32xf32>, vector<32x8xf32>, vector<16x8xf32> -> vector<16x8xf32>
    %c0_168 = arith.constant 0 : index
    %c3_169 = arith.constant 3 : index
    %c0_170 = arith.constant 0 : index
    %c0_171 = arith.constant 0 : index
    %175 = vector.load %arg13[%c0_168, %c3_169, %c0_170, %c0_171] : memref<6x4x1x8xf32, #tpu.memory_space<vmem>>, vector<1x1x1x8xf32>
    %176 = vector.shape_cast %175 : vector<1x1x1x8xf32> to vector<1x8xf32>
    %177 = vector.broadcast %176 : vector<1x8xf32> to vector<16x8xf32>
    %178 = arith.addf %174, %177 : vector<16x8xf32>
    %c0_172 = arith.constant 0 : index
    %c3_173 = arith.constant 3 : index
    %c0_174 = arith.constant 0 : index
    %c0_175 = arith.constant 0 : index
    %179 = vector.load %arg11[%c0_172, %c3_173, %c0_174, %c0_175] : memref<2x4x32x8xf32, #tpu.memory_space<vmem>>, vector<1x1x32x8xf32>
    %180 = vector.shape_cast %179 : vector<1x1x32x8xf32> to vector<32x8xf32>
    %cst_176 = arith.constant dense<0.000000e+00> : vector<16x8xf32>
    %181 = tpu.matmul %55, %180, %cst_176 {dimension_numbers = #tpu.dot_dimension_numbers<[1], [0], [0], [1], [0, 0, 1, 1], [], []>} : vector<16x32xf32>, vector<32x8xf32>, vector<16x8xf32> -> vector<16x8xf32>
    %c1_177 = arith.constant 1 : index
    %c3_178 = arith.constant 3 : index
    %c0_179 = arith.constant 0 : index
    %c0_180 = arith.constant 0 : index
    %182 = vector.load %arg13[%c1_177, %c3_178, %c0_179, %c0_180] : memref<6x4x1x8xf32, #tpu.memory_space<vmem>>, vector<1x1x1x8xf32>
    %183 = vector.shape_cast %182 : vector<1x1x1x8xf32> to vector<1x8xf32>
    %184 = vector.broadcast %183 : vector<1x8xf32> to vector<16x8xf32>
    %185 = arith.addf %181, %184 : vector<16x8xf32>
    %c0_181 = arith.constant 0 : index
    %c3_182 = arith.constant 3 : index
    %c0_183 = arith.constant 0 : index
    %c0_184 = arith.constant 0 : index
    %186 = vector.load %arg12[%c0_181, %c3_182, %c0_183, %c0_184] : memref<2x4x32x8xf32, #tpu.memory_space<vmem>>, vector<1x1x32x8xf32>
    %187 = vector.shape_cast %186 : vector<1x1x32x8xf32> to vector<32x8xf32>
    %cst_185 = arith.constant dense<0.000000e+00> : vector<16x8xf32>
    %188 = tpu.matmul %55, %187, %cst_185 {dimension_numbers = #tpu.dot_dimension_numbers<[1], [0], [0], [1], [0, 0, 1, 1], [], []>} : vector<16x32xf32>, vector<32x8xf32>, vector<16x8xf32> -> vector<16x8xf32>
    %c2_186 = arith.constant 2 : index
    %c3_187 = arith.constant 3 : index
    %c0_188 = arith.constant 0 : index
    %c0_189 = arith.constant 0 : index
    %189 = vector.load %arg13[%c2_186, %c3_187, %c0_188, %c0_189] : memref<6x4x1x8xf32, #tpu.memory_space<vmem>>, vector<1x1x1x8xf32>
    %190 = vector.shape_cast %189 : vector<1x1x1x8xf32> to vector<1x8xf32>
    %191 = vector.broadcast %190 : vector<1x8xf32> to vector<16x8xf32>
    %192 = arith.addf %188, %191 : vector<16x8xf32>
    %cst_190 = arith.constant dense<0.000000e+00> : vector<16x16xf32>
    %193 = tpu.matmul %178, %185, %cst_190 {dimension_numbers = #tpu.dot_dimension_numbers<[1], [1], [0], [0], [0, 0, 1, 0], [], []>} : vector<16x8xf32>, vector<16x8xf32>, vector<16x16xf32> -> vector<16x16xf32>
    %cst_191 = arith.constant 0.353553385 : f32
    %194 = vector.broadcast %cst_191 : f32 to vector<16x16xf32>
    %195 = arith.mulf %193, %194 : vector<16x16xf32>
    %196 = arith.addf %195, %1 : vector<16x16xf32>
    %cst_192 = arith.constant dense<0xFF800000> : vector<16xf32>
    %197 = vector.multi_reduction <maximumf>, %196, %cst_192 [1] : vector<16x16xf32> to vector<16xf32>
    %198 = vector.shape_cast %197 : vector<16xf32> to vector<16x1xf32>
    %199 = vector.broadcast %198 : vector<16x1xf32> to vector<16x16xf32>
    %200 = arith.subf %196, %199 : vector<16x16xf32>
    %201 = math.exp %200 : vector<16x16xf32>
    %cst_193 = arith.constant dense<0.000000e+00> : vector<16xf32>
    %202 = vector.multi_reduction <add>, %201, %cst_193 [1] : vector<16x16xf32> to vector<16xf32>
    %203 = vector.shape_cast %202 : vector<16xf32> to vector<16x1xf32>
    %204 = vector.broadcast %203 : vector<16x1xf32> to vector<16x16xf32>
    %205 = arith.divf %201, %204 : vector<16x16xf32>
    %cst_194 = arith.constant dense<0.000000e+00> : vector<16x8xf32>
    %206 = tpu.matmul %205, %192, %cst_194 {dimension_numbers = #tpu.dot_dimension_numbers<[1], [0], [0], [1], [0, 0, 1, 1], [], []>} : vector<16x16xf32>, vector<16x8xf32>, vector<16x8xf32> -> vector<16x8xf32>
    %c0_195 = arith.constant 0 : index
    %c3_196 = arith.constant 3 : index
    %c0_197 = arith.constant 0 : index
    %c0_198 = arith.constant 0 : index
    %207 = vector.load %arg14[%c0_195, %c3_196, %c0_197, %c0_198] : memref<2x4x8x32xf32, #tpu.memory_space<vmem>>, vector<1x1x8x32xf32>
    %208 = vector.shape_cast %207 : vector<1x1x8x32xf32> to vector<8x32xf32>
    %cst_199 = arith.constant dense<0.000000e+00> : vector<16x32xf32>
    %209 = tpu.matmul %206, %208, %cst_199 {dimension_numbers = #tpu.dot_dimension_numbers<[1], [0], [0], [1], [0, 0, 1, 1], [], []>} : vector<16x8xf32>, vector<8x32xf32>, vector<16x32xf32> -> vector<16x32xf32>
    %210 = arith.addf %171, %209 : vector<16x32xf32>
    %211 = arith.addf %11, %210 : vector<16x32xf32>
    %212 = vector.broadcast %23 : vector<1x32xf32> to vector<16x32xf32>
    %213 = arith.addf %211, %212 : vector<16x32xf32>
    %c0_200 = arith.constant 0 : index
    %c0_201 = arith.constant 0 : index
    %c0_202 = arith.constant 0 : index
    %c0_203 = arith.constant 0 : index
    %214 = vector.load %arg15[%c0_200, %c0_201, %c0_202, %c0_203] : memref<2x2x32x32xf32, #tpu.memory_space<vmem>>, vector<1x1x32x32xf32>
    %215 = vector.shape_cast %214 : vector<1x1x32x32xf32> to vector<32x32xf32>
    %cst_204 = arith.constant dense<0.000000e+00> : vector<2x32xf32>
    %216 = tpu.matmul %17, %215, %cst_204 {dimension_numbers = #tpu.dot_dimension_numbers<[1], [0], [0], [1], [0, 0, 1, 1], [], []>} : vector<2x32xf32>, vector<32x32xf32>, vector<2x32xf32> -> vector<2x32xf32>
    %217 = vector.broadcast %25 : vector<1x32xf32> to vector<2x32xf32>
    %218 = arith.addf %216, %217 : vector<2x32xf32>
    %c0_205 = arith.constant 0 : index
    %c1_206 = arith.constant 1 : index
    %c0_207 = arith.constant 0 : index
    %c0_208 = arith.constant 0 : index
    %219 = vector.load %arg15[%c0_205, %c1_206, %c0_207, %c0_208] : memref<2x2x32x32xf32, #tpu.memory_space<vmem>>, vector<1x1x32x32xf32>
    %220 = vector.shape_cast %219 : vector<1x1x32x32xf32> to vector<32x32xf32>
    %cst_209 = arith.constant dense<0.000000e+00> : vector<2x32xf32>
    %221 = tpu.matmul %218, %220, %cst_209 {dimension_numbers = #tpu.dot_dimension_numbers<[1], [0], [0], [1], [0, 0, 1, 1], [], []>} : vector<2x32xf32>, vector<32x32xf32>, vector<2x32xf32> -> vector<2x32xf32>
    %222 = vector.broadcast %27 : vector<1x32xf32> to vector<2x32xf32>
    %223 = arith.addf %221, %222 : vector<2x32xf32>
    %cst_210 = arith.constant dense<0.000000e+00> : vector<16x32xf32>
    %224 = tpu.matmul %0, %223, %cst_210 {dimension_numbers = #tpu.dot_dimension_numbers<[1], [0], [0], [1], [0, 0, 1, 1], [], []>} : vector<16x2xf32>, vector<2x32xf32>, vector<16x32xf32> -> vector<16x32xf32>
    %225 = arith.addf %213, %224 : vector<16x32xf32>
    %cst_211 = arith.constant dense<0.000000e+00> : vector<16xf32>
    %226 = vector.multi_reduction <add>, %225, %cst_211 [1] : vector<16x32xf32> to vector<16xf32>
    %227 = vector.shape_cast %226 : vector<16xf32> to vector<16x1xf32>
    %cst_212 = arith.constant 3.200000e+01 : f32
    %228 = vector.broadcast %cst_212 : f32 to vector<16x1xf32>
    %229 = arith.divf %227, %228 : vector<16x1xf32>
    %230 = vector.broadcast %229 : vector<16x1xf32> to vector<16x32xf32>
    %231 = arith.subf %225, %230 : vector<16x32xf32>
    %232 = arith.mulf %231, %231 : vector<16x32xf32>
    %cst_213 = arith.constant dense<0.000000e+00> : vector<16xf32>
    %233 = vector.multi_reduction <add>, %232, %cst_213 [1] : vector<16x32xf32> to vector<16xf32>
    %234 = vector.shape_cast %233 : vector<16xf32> to vector<16x1xf32>
    %cst_214 = arith.constant 3.200000e+01 : f32
    %235 = vector.broadcast %cst_214 : f32 to vector<16x1xf32>
    %236 = arith.divf %234, %235 : vector<16x1xf32>
    %237 = vector.broadcast %229 : vector<16x1xf32> to vector<16x32xf32>
    %238 = arith.subf %225, %237 : vector<16x32xf32>
    %cst_215 = arith.constant 9.99999974E-6 : f32
    %239 = vector.broadcast %cst_215 : f32 to vector<16x1xf32>
    %240 = arith.addf %236, %239 : vector<16x1xf32>
    %241 = math.rsqrt %240 : vector<16x1xf32>
    %242 = vector.broadcast %241 : vector<16x1xf32> to vector<16x32xf32>
    %243 = arith.mulf %238, %242 : vector<16x32xf32>
    %244 = vector.broadcast %29 : vector<1x32xf32> to vector<16x32xf32>
    %245 = arith.mulf %243, %244 : vector<16x32xf32>
    %246 = vector.broadcast %31 : vector<1x32xf32> to vector<16x32xf32>
    %247 = arith.addf %245, %246 : vector<16x32xf32>
    %c0_216 = arith.constant 0 : index
    %c0_217 = arith.constant 0 : index
    %c0_218 = arith.constant 0 : index
    %248 = vector.load %arg17[%c0_216, %c0_217, %c0_218] : memref<2x32x64xf32, #tpu.memory_space<vmem>>, vector<1x32x64xf32>
    %249 = vector.shape_cast %248 : vector<1x32x64xf32> to vector<32x64xf32>
    %cst_219 = arith.constant dense<0.000000e+00> : vector<16x64xf32>
    %250 = tpu.matmul %247, %249, %cst_219 {dimension_numbers = #tpu.dot_dimension_numbers<[1], [0], [0], [1], [0, 0, 1, 1], [], []>} : vector<16x32xf32>, vector<32x64xf32>, vector<16x64xf32> -> vector<16x64xf32>
    %c0_220 = arith.constant 0 : index
    %c0_221 = arith.constant 0 : index
    %c0_222 = arith.constant 0 : index
    %251 = vector.load %arg18[%c0_220, %c0_221, %c0_222] : memref<2x1x64xf32, #tpu.memory_space<vmem>>, vector<1x1x64xf32>
    %252 = vector.shape_cast %251 : vector<1x1x64xf32> to vector<1x64xf32>
    %253 = vector.broadcast %252 : vector<1x64xf32> to vector<16x64xf32>
    %254 = arith.addf %250, %253 : vector<16x64xf32>
    %cst_223 = arith.constant 0.000000e+00 : f32
    %255 = vector.broadcast %cst_223 : f32 to vector<16x64xf32>
    %256 = arith.subf %255, %254 : vector<16x64xf32>
    %257 = math.exp %256 : vector<16x64xf32>
    %cst_224 = arith.constant 1.000000e+00 : f32
    %258 = vector.broadcast %cst_224 : f32 to vector<16x64xf32>
    %259 = arith.addf %258, %257 : vector<16x64xf32>
    %260 = tpu.reciprocal %259 {approx = true} : vector<16x64xf32> -> vector<16x64xf32>
    %261 = arith.mulf %254, %260 : vector<16x64xf32>
    %c0_225 = arith.constant 0 : index
    %c0_226 = arith.constant 0 : index
    %c0_227 = arith.constant 0 : index
    %262 = vector.load %arg19[%c0_225, %c0_226, %c0_227] : memref<2x64x32xf32, #tpu.memory_space<vmem>>, vector<1x64x32xf32>
    %263 = vector.shape_cast %262 : vector<1x64x32xf32> to vector<64x32xf32>
    %cst_228 = arith.constant dense<0.000000e+00> : vector<16x32xf32>
    %264 = tpu.matmul %261, %263, %cst_228 {dimension_numbers = #tpu.dot_dimension_numbers<[1], [0], [0], [1], [0, 0, 1, 1], [], []>} : vector<16x64xf32>, vector<64x32xf32>, vector<16x32xf32> -> vector<16x32xf32>
    %265 = arith.addf %225, %264 : vector<16x32xf32>
    %266 = vector.broadcast %33 : vector<1x32xf32> to vector<16x32xf32>
    %267 = arith.addf %265, %266 : vector<16x32xf32>
    %c1_229 = arith.constant 1 : index
    %c0_230 = arith.constant 0 : index
    %c0_231 = arith.constant 0 : index
    %c0_232 = arith.constant 0 : index
    %268 = vector.load %arg16[%c1_229, %c0_230, %c0_231, %c0_232] : memref<2x8x1x32xf32, #tpu.memory_space<vmem>>, vector<1x1x1x32xf32>
    %269 = vector.shape_cast %268 : vector<1x1x1x32xf32> to vector<1x32xf32>
    %c1_233 = arith.constant 1 : index
    %c1_234 = arith.constant 1 : index
    %c0_235 = arith.constant 0 : index
    %c0_236 = arith.constant 0 : index
    %270 = vector.load %arg16[%c1_233, %c1_234, %c0_235, %c0_236] : memref<2x8x1x32xf32, #tpu.memory_space<vmem>>, vector<1x1x1x32xf32>
    %271 = vector.shape_cast %270 : vector<1x1x1x32xf32> to vector<1x32xf32>
    %c1_237 = arith.constant 1 : index
    %c2_238 = arith.constant 2 : index
    %c0_239 = arith.constant 0 : index
    %c0_240 = arith.constant 0 : index
    %272 = vector.load %arg16[%c1_237, %c2_238, %c0_239, %c0_240] : memref<2x8x1x32xf32, #tpu.memory_space<vmem>>, vector<1x1x1x32xf32>
    %273 = vector.shape_cast %272 : vector<1x1x1x32xf32> to vector<1x32xf32>
    %c1_241 = arith.constant 1 : index
    %c3_242 = arith.constant 3 : index
    %c0_243 = arith.constant 0 : index
    %c0_244 = arith.constant 0 : index
    %274 = vector.load %arg16[%c1_241, %c3_242, %c0_243, %c0_244] : memref<2x8x1x32xf32, #tpu.memory_space<vmem>>, vector<1x1x1x32xf32>
    %275 = vector.shape_cast %274 : vector<1x1x1x32xf32> to vector<1x32xf32>
    %c1_245 = arith.constant 1 : index
    %c4_246 = arith.constant 4 : index
    %c0_247 = arith.constant 0 : index
    %c0_248 = arith.constant 0 : index
    %276 = vector.load %arg16[%c1_245, %c4_246, %c0_247, %c0_248] : memref<2x8x1x32xf32, #tpu.memory_space<vmem>>, vector<1x1x1x32xf32>
    %277 = vector.shape_cast %276 : vector<1x1x1x32xf32> to vector<1x32xf32>
    %c1_249 = arith.constant 1 : index
    %c5_250 = arith.constant 5 : index
    %c0_251 = arith.constant 0 : index
    %c0_252 = arith.constant 0 : index
    %278 = vector.load %arg16[%c1_249, %c5_250, %c0_251, %c0_252] : memref<2x8x1x32xf32, #tpu.memory_space<vmem>>, vector<1x1x1x32xf32>
    %279 = vector.shape_cast %278 : vector<1x1x1x32xf32> to vector<1x32xf32>
    %c1_253 = arith.constant 1 : index
    %c6_254 = arith.constant 6 : index
    %c0_255 = arith.constant 0 : index
    %c0_256 = arith.constant 0 : index
    %280 = vector.load %arg16[%c1_253, %c6_254, %c0_255, %c0_256] : memref<2x8x1x32xf32, #tpu.memory_space<vmem>>, vector<1x1x1x32xf32>
    %281 = vector.shape_cast %280 : vector<1x1x1x32xf32> to vector<1x32xf32>
    %c1_257 = arith.constant 1 : index
    %c7_258 = arith.constant 7 : index
    %c0_259 = arith.constant 0 : index
    %c0_260 = arith.constant 0 : index
    %282 = vector.load %arg16[%c1_257, %c7_258, %c0_259, %c0_260] : memref<2x8x1x32xf32, #tpu.memory_space<vmem>>, vector<1x1x1x32xf32>
    %283 = vector.shape_cast %282 : vector<1x1x1x32xf32> to vector<1x32xf32>
    %cst_261 = arith.constant dense<0.000000e+00> : vector<16xf32>
    %284 = vector.multi_reduction <add>, %267, %cst_261 [1] : vector<16x32xf32> to vector<16xf32>
    %285 = vector.shape_cast %284 : vector<16xf32> to vector<16x1xf32>
    %cst_262 = arith.constant 3.200000e+01 : f32
    %286 = vector.broadcast %cst_262 : f32 to vector<16x1xf32>
    %287 = arith.divf %285, %286 : vector<16x1xf32>
    %288 = vector.broadcast %287 : vector<16x1xf32> to vector<16x32xf32>
    %289 = arith.subf %267, %288 : vector<16x32xf32>
    %290 = arith.mulf %289, %289 : vector<16x32xf32>
    %cst_263 = arith.constant dense<0.000000e+00> : vector<16xf32>
    %291 = vector.multi_reduction <add>, %290, %cst_263 [1] : vector<16x32xf32> to vector<16xf32>
    %292 = vector.shape_cast %291 : vector<16xf32> to vector<16x1xf32>
    %cst_264 = arith.constant 3.200000e+01 : f32
    %293 = vector.broadcast %cst_264 : f32 to vector<16x1xf32>
    %294 = arith.divf %292, %293 : vector<16x1xf32>
    %295 = vector.broadcast %287 : vector<16x1xf32> to vector<16x32xf32>
    %296 = arith.subf %267, %295 : vector<16x32xf32>
    %cst_265 = arith.constant 9.99999974E-6 : f32
    %297 = vector.broadcast %cst_265 : f32 to vector<16x1xf32>
    %298 = arith.addf %294, %297 : vector<16x1xf32>
    %299 = math.rsqrt %298 : vector<16x1xf32>
    %300 = vector.broadcast %299 : vector<16x1xf32> to vector<16x32xf32>
    %301 = arith.mulf %296, %300 : vector<16x32xf32>
    %302 = vector.broadcast %269 : vector<1x32xf32> to vector<16x32xf32>
    %303 = arith.mulf %301, %302 : vector<16x32xf32>
    %304 = vector.broadcast %271 : vector<1x32xf32> to vector<16x32xf32>
    %305 = arith.addf %303, %304 : vector<16x32xf32>
    %c1_266 = arith.constant 1 : index
    %c0_267 = arith.constant 0 : index
    %c0_268 = arith.constant 0 : index
    %c0_269 = arith.constant 0 : index
    %306 = vector.load %arg10[%c1_266, %c0_267, %c0_268, %c0_269] : memref<2x4x32x8xf32, #tpu.memory_space<vmem>>, vector<1x1x32x8xf32>
    %307 = vector.shape_cast %306 : vector<1x1x32x8xf32> to vector<32x8xf32>
    %cst_270 = arith.constant dense<0.000000e+00> : vector<16x8xf32>
    %308 = tpu.matmul %305, %307, %cst_270 {dimension_numbers = #tpu.dot_dimension_numbers<[1], [0], [0], [1], [0, 0, 1, 1], [], []>} : vector<16x32xf32>, vector<32x8xf32>, vector<16x8xf32> -> vector<16x8xf32>
    %c3_271 = arith.constant 3 : index
    %c0_272 = arith.constant 0 : index
    %c0_273 = arith.constant 0 : index
    %c0_274 = arith.constant 0 : index
    %309 = vector.load %arg13[%c3_271, %c0_272, %c0_273, %c0_274] : memref<6x4x1x8xf32, #tpu.memory_space<vmem>>, vector<1x1x1x8xf32>
    %310 = vector.shape_cast %309 : vector<1x1x1x8xf32> to vector<1x8xf32>
    %311 = vector.broadcast %310 : vector<1x8xf32> to vector<16x8xf32>
    %312 = arith.addf %308, %311 : vector<16x8xf32>
    %c1_275 = arith.constant 1 : index
    %c0_276 = arith.constant 0 : index
    %c0_277 = arith.constant 0 : index
    %c0_278 = arith.constant 0 : index
    %313 = vector.load %arg11[%c1_275, %c0_276, %c0_277, %c0_278] : memref<2x4x32x8xf32, #tpu.memory_space<vmem>>, vector<1x1x32x8xf32>
    %314 = vector.shape_cast %313 : vector<1x1x32x8xf32> to vector<32x8xf32>
    %cst_279 = arith.constant dense<0.000000e+00> : vector<16x8xf32>
    %315 = tpu.matmul %305, %314, %cst_279 {dimension_numbers = #tpu.dot_dimension_numbers<[1], [0], [0], [1], [0, 0, 1, 1], [], []>} : vector<16x32xf32>, vector<32x8xf32>, vector<16x8xf32> -> vector<16x8xf32>
    %c4_280 = arith.constant 4 : index
    %c0_281 = arith.constant 0 : index
    %c0_282 = arith.constant 0 : index
    %c0_283 = arith.constant 0 : index
    %316 = vector.load %arg13[%c4_280, %c0_281, %c0_282, %c0_283] : memref<6x4x1x8xf32, #tpu.memory_space<vmem>>, vector<1x1x1x8xf32>
    %317 = vector.shape_cast %316 : vector<1x1x1x8xf32> to vector<1x8xf32>
    %318 = vector.broadcast %317 : vector<1x8xf32> to vector<16x8xf32>
    %319 = arith.addf %315, %318 : vector<16x8xf32>
    %c1_284 = arith.constant 1 : index
    %c0_285 = arith.constant 0 : index
    %c0_286 = arith.constant 0 : index
    %c0_287 = arith.constant 0 : index
    %320 = vector.load %arg12[%c1_284, %c0_285, %c0_286, %c0_287] : memref<2x4x32x8xf32, #tpu.memory_space<vmem>>, vector<1x1x32x8xf32>
    %321 = vector.shape_cast %320 : vector<1x1x32x8xf32> to vector<32x8xf32>
    %cst_288 = arith.constant dense<0.000000e+00> : vector<16x8xf32>
    %322 = tpu.matmul %305, %321, %cst_288 {dimension_numbers = #tpu.dot_dimension_numbers<[1], [0], [0], [1], [0, 0, 1, 1], [], []>} : vector<16x32xf32>, vector<32x8xf32>, vector<16x8xf32> -> vector<16x8xf32>
    %c5_289 = arith.constant 5 : index
    %c0_290 = arith.constant 0 : index
    %c0_291 = arith.constant 0 : index
    %c0_292 = arith.constant 0 : index
    %323 = vector.load %arg13[%c5_289, %c0_290, %c0_291, %c0_292] : memref<6x4x1x8xf32, #tpu.memory_space<vmem>>, vector<1x1x1x8xf32>
    %324 = vector.shape_cast %323 : vector<1x1x1x8xf32> to vector<1x8xf32>
    %325 = vector.broadcast %324 : vector<1x8xf32> to vector<16x8xf32>
    %326 = arith.addf %322, %325 : vector<16x8xf32>
    %cst_293 = arith.constant dense<0.000000e+00> : vector<16x16xf32>
    %327 = tpu.matmul %312, %319, %cst_293 {dimension_numbers = #tpu.dot_dimension_numbers<[1], [1], [0], [0], [0, 0, 1, 0], [], []>} : vector<16x8xf32>, vector<16x8xf32>, vector<16x16xf32> -> vector<16x16xf32>
    %cst_294 = arith.constant 0.353553385 : f32
    %328 = vector.broadcast %cst_294 : f32 to vector<16x16xf32>
    %329 = arith.mulf %327, %328 : vector<16x16xf32>
    %330 = arith.addf %329, %1 : vector<16x16xf32>
    %cst_295 = arith.constant dense<0xFF800000> : vector<16xf32>
    %331 = vector.multi_reduction <maximumf>, %330, %cst_295 [1] : vector<16x16xf32> to vector<16xf32>
    %332 = vector.shape_cast %331 : vector<16xf32> to vector<16x1xf32>
    %333 = vector.broadcast %332 : vector<16x1xf32> to vector<16x16xf32>
    %334 = arith.subf %330, %333 : vector<16x16xf32>
    %335 = math.exp %334 : vector<16x16xf32>
    %cst_296 = arith.constant dense<0.000000e+00> : vector<16xf32>
    %336 = vector.multi_reduction <add>, %335, %cst_296 [1] : vector<16x16xf32> to vector<16xf32>
    %337 = vector.shape_cast %336 : vector<16xf32> to vector<16x1xf32>
    %338 = vector.broadcast %337 : vector<16x1xf32> to vector<16x16xf32>
    %339 = arith.divf %335, %338 : vector<16x16xf32>
    %cst_297 = arith.constant dense<0.000000e+00> : vector<16x8xf32>
    %340 = tpu.matmul %339, %326, %cst_297 {dimension_numbers = #tpu.dot_dimension_numbers<[1], [0], [0], [1], [0, 0, 1, 1], [], []>} : vector<16x16xf32>, vector<16x8xf32>, vector<16x8xf32> -> vector<16x8xf32>
    %c1_298 = arith.constant 1 : index
    %c0_299 = arith.constant 0 : index
    %c0_300 = arith.constant 0 : index
    %c0_301 = arith.constant 0 : index
    %341 = vector.load %arg14[%c1_298, %c0_299, %c0_300, %c0_301] : memref<2x4x8x32xf32, #tpu.memory_space<vmem>>, vector<1x1x8x32xf32>
    %342 = vector.shape_cast %341 : vector<1x1x8x32xf32> to vector<8x32xf32>
    %cst_302 = arith.constant dense<0.000000e+00> : vector<16x32xf32>
    %343 = tpu.matmul %340, %342, %cst_302 {dimension_numbers = #tpu.dot_dimension_numbers<[1], [0], [0], [1], [0, 0, 1, 1], [], []>} : vector<16x8xf32>, vector<8x32xf32>, vector<16x32xf32> -> vector<16x32xf32>
    %c1_303 = arith.constant 1 : index
    %c1_304 = arith.constant 1 : index
    %c0_305 = arith.constant 0 : index
    %c0_306 = arith.constant 0 : index
    %344 = vector.load %arg10[%c1_303, %c1_304, %c0_305, %c0_306] : memref<2x4x32x8xf32, #tpu.memory_space<vmem>>, vector<1x1x32x8xf32>
    %345 = vector.shape_cast %344 : vector<1x1x32x8xf32> to vector<32x8xf32>
    %cst_307 = arith.constant dense<0.000000e+00> : vector<16x8xf32>
    %346 = tpu.matmul %305, %345, %cst_307 {dimension_numbers = #tpu.dot_dimension_numbers<[1], [0], [0], [1], [0, 0, 1, 1], [], []>} : vector<16x32xf32>, vector<32x8xf32>, vector<16x8xf32> -> vector<16x8xf32>
    %c3_308 = arith.constant 3 : index
    %c1_309 = arith.constant 1 : index
    %c0_310 = arith.constant 0 : index
    %c0_311 = arith.constant 0 : index
    %347 = vector.load %arg13[%c3_308, %c1_309, %c0_310, %c0_311] : memref<6x4x1x8xf32, #tpu.memory_space<vmem>>, vector<1x1x1x8xf32>
    %348 = vector.shape_cast %347 : vector<1x1x1x8xf32> to vector<1x8xf32>
    %349 = vector.broadcast %348 : vector<1x8xf32> to vector<16x8xf32>
    %350 = arith.addf %346, %349 : vector<16x8xf32>
    %c1_312 = arith.constant 1 : index
    %c1_313 = arith.constant 1 : index
    %c0_314 = arith.constant 0 : index
    %c0_315 = arith.constant 0 : index
    %351 = vector.load %arg11[%c1_312, %c1_313, %c0_314, %c0_315] : memref<2x4x32x8xf32, #tpu.memory_space<vmem>>, vector<1x1x32x8xf32>
    %352 = vector.shape_cast %351 : vector<1x1x32x8xf32> to vector<32x8xf32>
    %cst_316 = arith.constant dense<0.000000e+00> : vector<16x8xf32>
    %353 = tpu.matmul %305, %352, %cst_316 {dimension_numbers = #tpu.dot_dimension_numbers<[1], [0], [0], [1], [0, 0, 1, 1], [], []>} : vector<16x32xf32>, vector<32x8xf32>, vector<16x8xf32> -> vector<16x8xf32>
    %c4_317 = arith.constant 4 : index
    %c1_318 = arith.constant 1 : index
    %c0_319 = arith.constant 0 : index
    %c0_320 = arith.constant 0 : index
    %354 = vector.load %arg13[%c4_317, %c1_318, %c0_319, %c0_320] : memref<6x4x1x8xf32, #tpu.memory_space<vmem>>, vector<1x1x1x8xf32>
    %355 = vector.shape_cast %354 : vector<1x1x1x8xf32> to vector<1x8xf32>
    %356 = vector.broadcast %355 : vector<1x8xf32> to vector<16x8xf32>
    %357 = arith.addf %353, %356 : vector<16x8xf32>
    %c1_321 = arith.constant 1 : index
    %c1_322 = arith.constant 1 : index
    %c0_323 = arith.constant 0 : index
    %c0_324 = arith.constant 0 : index
    %358 = vector.load %arg12[%c1_321, %c1_322, %c0_323, %c0_324] : memref<2x4x32x8xf32, #tpu.memory_space<vmem>>, vector<1x1x32x8xf32>
    %359 = vector.shape_cast %358 : vector<1x1x32x8xf32> to vector<32x8xf32>
    %cst_325 = arith.constant dense<0.000000e+00> : vector<16x8xf32>
    %360 = tpu.matmul %305, %359, %cst_325 {dimension_numbers = #tpu.dot_dimension_numbers<[1], [0], [0], [1], [0, 0, 1, 1], [], []>} : vector<16x32xf32>, vector<32x8xf32>, vector<16x8xf32> -> vector<16x8xf32>
    %c5_326 = arith.constant 5 : index
    %c1_327 = arith.constant 1 : index
    %c0_328 = arith.constant 0 : index
    %c0_329 = arith.constant 0 : index
    %361 = vector.load %arg13[%c5_326, %c1_327, %c0_328, %c0_329] : memref<6x4x1x8xf32, #tpu.memory_space<vmem>>, vector<1x1x1x8xf32>
    %362 = vector.shape_cast %361 : vector<1x1x1x8xf32> to vector<1x8xf32>
    %363 = vector.broadcast %362 : vector<1x8xf32> to vector<16x8xf32>
    %364 = arith.addf %360, %363 : vector<16x8xf32>
    %cst_330 = arith.constant dense<0.000000e+00> : vector<16x16xf32>
    %365 = tpu.matmul %350, %357, %cst_330 {dimension_numbers = #tpu.dot_dimension_numbers<[1], [1], [0], [0], [0, 0, 1, 0], [], []>} : vector<16x8xf32>, vector<16x8xf32>, vector<16x16xf32> -> vector<16x16xf32>
    %cst_331 = arith.constant 0.353553385 : f32
    %366 = vector.broadcast %cst_331 : f32 to vector<16x16xf32>
    %367 = arith.mulf %365, %366 : vector<16x16xf32>
    %368 = arith.addf %367, %1 : vector<16x16xf32>
    %cst_332 = arith.constant dense<0xFF800000> : vector<16xf32>
    %369 = vector.multi_reduction <maximumf>, %368, %cst_332 [1] : vector<16x16xf32> to vector<16xf32>
    %370 = vector.shape_cast %369 : vector<16xf32> to vector<16x1xf32>
    %371 = vector.broadcast %370 : vector<16x1xf32> to vector<16x16xf32>
    %372 = arith.subf %368, %371 : vector<16x16xf32>
    %373 = math.exp %372 : vector<16x16xf32>
    %cst_333 = arith.constant dense<0.000000e+00> : vector<16xf32>
    %374 = vector.multi_reduction <add>, %373, %cst_333 [1] : vector<16x16xf32> to vector<16xf32>
    %375 = vector.shape_cast %374 : vector<16xf32> to vector<16x1xf32>
    %376 = vector.broadcast %375 : vector<16x1xf32> to vector<16x16xf32>
    %377 = arith.divf %373, %376 : vector<16x16xf32>
    %cst_334 = arith.constant dense<0.000000e+00> : vector<16x8xf32>
    %378 = tpu.matmul %377, %364, %cst_334 {dimension_numbers = #tpu.dot_dimension_numbers<[1], [0], [0], [1], [0, 0, 1, 1], [], []>} : vector<16x16xf32>, vector<16x8xf32>, vector<16x8xf32> -> vector<16x8xf32>
    %c1_335 = arith.constant 1 : index
    %c1_336 = arith.constant 1 : index
    %c0_337 = arith.constant 0 : index
    %c0_338 = arith.constant 0 : index
    %379 = vector.load %arg14[%c1_335, %c1_336, %c0_337, %c0_338] : memref<2x4x8x32xf32, #tpu.memory_space<vmem>>, vector<1x1x8x32xf32>
    %380 = vector.shape_cast %379 : vector<1x1x8x32xf32> to vector<8x32xf32>
    %cst_339 = arith.constant dense<0.000000e+00> : vector<16x32xf32>
    %381 = tpu.matmul %378, %380, %cst_339 {dimension_numbers = #tpu.dot_dimension_numbers<[1], [0], [0], [1], [0, 0, 1, 1], [], []>} : vector<16x8xf32>, vector<8x32xf32>, vector<16x32xf32> -> vector<16x32xf32>
    %382 = arith.addf %343, %381 : vector<16x32xf32>
    %c1_340 = arith.constant 1 : index
    %c2_341 = arith.constant 2 : index
    %c0_342 = arith.constant 0 : index
    %c0_343 = arith.constant 0 : index
    %383 = vector.load %arg10[%c1_340, %c2_341, %c0_342, %c0_343] : memref<2x4x32x8xf32, #tpu.memory_space<vmem>>, vector<1x1x32x8xf32>
    %384 = vector.shape_cast %383 : vector<1x1x32x8xf32> to vector<32x8xf32>
    %cst_344 = arith.constant dense<0.000000e+00> : vector<16x8xf32>
    %385 = tpu.matmul %305, %384, %cst_344 {dimension_numbers = #tpu.dot_dimension_numbers<[1], [0], [0], [1], [0, 0, 1, 1], [], []>} : vector<16x32xf32>, vector<32x8xf32>, vector<16x8xf32> -> vector<16x8xf32>
    %c3_345 = arith.constant 3 : index
    %c2_346 = arith.constant 2 : index
    %c0_347 = arith.constant 0 : index
    %c0_348 = arith.constant 0 : index
    %386 = vector.load %arg13[%c3_345, %c2_346, %c0_347, %c0_348] : memref<6x4x1x8xf32, #tpu.memory_space<vmem>>, vector<1x1x1x8xf32>
    %387 = vector.shape_cast %386 : vector<1x1x1x8xf32> to vector<1x8xf32>
    %388 = vector.broadcast %387 : vector<1x8xf32> to vector<16x8xf32>
    %389 = arith.addf %385, %388 : vector<16x8xf32>
    %c1_349 = arith.constant 1 : index
    %c2_350 = arith.constant 2 : index
    %c0_351 = arith.constant 0 : index
    %c0_352 = arith.constant 0 : index
    %390 = vector.load %arg11[%c1_349, %c2_350, %c0_351, %c0_352] : memref<2x4x32x8xf32, #tpu.memory_space<vmem>>, vector<1x1x32x8xf32>
    %391 = vector.shape_cast %390 : vector<1x1x32x8xf32> to vector<32x8xf32>
    %cst_353 = arith.constant dense<0.000000e+00> : vector<16x8xf32>
    %392 = tpu.matmul %305, %391, %cst_353 {dimension_numbers = #tpu.dot_dimension_numbers<[1], [0], [0], [1], [0, 0, 1, 1], [], []>} : vector<16x32xf32>, vector<32x8xf32>, vector<16x8xf32> -> vector<16x8xf32>
    %c4_354 = arith.constant 4 : index
    %c2_355 = arith.constant 2 : index
    %c0_356 = arith.constant 0 : index
    %c0_357 = arith.constant 0 : index
    %393 = vector.load %arg13[%c4_354, %c2_355, %c0_356, %c0_357] : memref<6x4x1x8xf32, #tpu.memory_space<vmem>>, vector<1x1x1x8xf32>
    %394 = vector.shape_cast %393 : vector<1x1x1x8xf32> to vector<1x8xf32>
    %395 = vector.broadcast %394 : vector<1x8xf32> to vector<16x8xf32>
    %396 = arith.addf %392, %395 : vector<16x8xf32>
    %c1_358 = arith.constant 1 : index
    %c2_359 = arith.constant 2 : index
    %c0_360 = arith.constant 0 : index
    %c0_361 = arith.constant 0 : index
    %397 = vector.load %arg12[%c1_358, %c2_359, %c0_360, %c0_361] : memref<2x4x32x8xf32, #tpu.memory_space<vmem>>, vector<1x1x32x8xf32>
    %398 = vector.shape_cast %397 : vector<1x1x32x8xf32> to vector<32x8xf32>
    %cst_362 = arith.constant dense<0.000000e+00> : vector<16x8xf32>
    %399 = tpu.matmul %305, %398, %cst_362 {dimension_numbers = #tpu.dot_dimension_numbers<[1], [0], [0], [1], [0, 0, 1, 1], [], []>} : vector<16x32xf32>, vector<32x8xf32>, vector<16x8xf32> -> vector<16x8xf32>
    %c5_363 = arith.constant 5 : index
    %c2_364 = arith.constant 2 : index
    %c0_365 = arith.constant 0 : index
    %c0_366 = arith.constant 0 : index
    %400 = vector.load %arg13[%c5_363, %c2_364, %c0_365, %c0_366] : memref<6x4x1x8xf32, #tpu.memory_space<vmem>>, vector<1x1x1x8xf32>
    %401 = vector.shape_cast %400 : vector<1x1x1x8xf32> to vector<1x8xf32>
    %402 = vector.broadcast %401 : vector<1x8xf32> to vector<16x8xf32>
    %403 = arith.addf %399, %402 : vector<16x8xf32>
    %cst_367 = arith.constant dense<0.000000e+00> : vector<16x16xf32>
    %404 = tpu.matmul %389, %396, %cst_367 {dimension_numbers = #tpu.dot_dimension_numbers<[1], [1], [0], [0], [0, 0, 1, 0], [], []>} : vector<16x8xf32>, vector<16x8xf32>, vector<16x16xf32> -> vector<16x16xf32>
    %cst_368 = arith.constant 0.353553385 : f32
    %405 = vector.broadcast %cst_368 : f32 to vector<16x16xf32>
    %406 = arith.mulf %404, %405 : vector<16x16xf32>
    %407 = arith.addf %406, %1 : vector<16x16xf32>
    %cst_369 = arith.constant dense<0xFF800000> : vector<16xf32>
    %408 = vector.multi_reduction <maximumf>, %407, %cst_369 [1] : vector<16x16xf32> to vector<16xf32>
    %409 = vector.shape_cast %408 : vector<16xf32> to vector<16x1xf32>
    %410 = vector.broadcast %409 : vector<16x1xf32> to vector<16x16xf32>
    %411 = arith.subf %407, %410 : vector<16x16xf32>
    %412 = math.exp %411 : vector<16x16xf32>
    %cst_370 = arith.constant dense<0.000000e+00> : vector<16xf32>
    %413 = vector.multi_reduction <add>, %412, %cst_370 [1] : vector<16x16xf32> to vector<16xf32>
    %414 = vector.shape_cast %413 : vector<16xf32> to vector<16x1xf32>
    %415 = vector.broadcast %414 : vector<16x1xf32> to vector<16x16xf32>
    %416 = arith.divf %412, %415 : vector<16x16xf32>
    %cst_371 = arith.constant dense<0.000000e+00> : vector<16x8xf32>
    %417 = tpu.matmul %416, %403, %cst_371 {dimension_numbers = #tpu.dot_dimension_numbers<[1], [0], [0], [1], [0, 0, 1, 1], [], []>} : vector<16x16xf32>, vector<16x8xf32>, vector<16x8xf32> -> vector<16x8xf32>
    %c1_372 = arith.constant 1 : index
    %c2_373 = arith.constant 2 : index
    %c0_374 = arith.constant 0 : index
    %c0_375 = arith.constant 0 : index
    %418 = vector.load %arg14[%c1_372, %c2_373, %c0_374, %c0_375] : memref<2x4x8x32xf32, #tpu.memory_space<vmem>>, vector<1x1x8x32xf32>
    %419 = vector.shape_cast %418 : vector<1x1x8x32xf32> to vector<8x32xf32>
    %cst_376 = arith.constant dense<0.000000e+00> : vector<16x32xf32>
    %420 = tpu.matmul %417, %419, %cst_376 {dimension_numbers = #tpu.dot_dimension_numbers<[1], [0], [0], [1], [0, 0, 1, 1], [], []>} : vector<16x8xf32>, vector<8x32xf32>, vector<16x32xf32> -> vector<16x32xf32>
    %421 = arith.addf %382, %420 : vector<16x32xf32>
    %c1_377 = arith.constant 1 : index
    %c3_378 = arith.constant 3 : index
    %c0_379 = arith.constant 0 : index
    %c0_380 = arith.constant 0 : index
    %422 = vector.load %arg10[%c1_377, %c3_378, %c0_379, %c0_380] : memref<2x4x32x8xf32, #tpu.memory_space<vmem>>, vector<1x1x32x8xf32>
    %423 = vector.shape_cast %422 : vector<1x1x32x8xf32> to vector<32x8xf32>
    %cst_381 = arith.constant dense<0.000000e+00> : vector<16x8xf32>
    %424 = tpu.matmul %305, %423, %cst_381 {dimension_numbers = #tpu.dot_dimension_numbers<[1], [0], [0], [1], [0, 0, 1, 1], [], []>} : vector<16x32xf32>, vector<32x8xf32>, vector<16x8xf32> -> vector<16x8xf32>
    %c3_382 = arith.constant 3 : index
    %c3_383 = arith.constant 3 : index
    %c0_384 = arith.constant 0 : index
    %c0_385 = arith.constant 0 : index
    %425 = vector.load %arg13[%c3_382, %c3_383, %c0_384, %c0_385] : memref<6x4x1x8xf32, #tpu.memory_space<vmem>>, vector<1x1x1x8xf32>
    %426 = vector.shape_cast %425 : vector<1x1x1x8xf32> to vector<1x8xf32>
    %427 = vector.broadcast %426 : vector<1x8xf32> to vector<16x8xf32>
    %428 = arith.addf %424, %427 : vector<16x8xf32>
    %c1_386 = arith.constant 1 : index
    %c3_387 = arith.constant 3 : index
    %c0_388 = arith.constant 0 : index
    %c0_389 = arith.constant 0 : index
    %429 = vector.load %arg11[%c1_386, %c3_387, %c0_388, %c0_389] : memref<2x4x32x8xf32, #tpu.memory_space<vmem>>, vector<1x1x32x8xf32>
    %430 = vector.shape_cast %429 : vector<1x1x32x8xf32> to vector<32x8xf32>
    %cst_390 = arith.constant dense<0.000000e+00> : vector<16x8xf32>
    %431 = tpu.matmul %305, %430, %cst_390 {dimension_numbers = #tpu.dot_dimension_numbers<[1], [0], [0], [1], [0, 0, 1, 1], [], []>} : vector<16x32xf32>, vector<32x8xf32>, vector<16x8xf32> -> vector<16x8xf32>
    %c4_391 = arith.constant 4 : index
    %c3_392 = arith.constant 3 : index
    %c0_393 = arith.constant 0 : index
    %c0_394 = arith.constant 0 : index
    %432 = vector.load %arg13[%c4_391, %c3_392, %c0_393, %c0_394] : memref<6x4x1x8xf32, #tpu.memory_space<vmem>>, vector<1x1x1x8xf32>
    %433 = vector.shape_cast %432 : vector<1x1x1x8xf32> to vector<1x8xf32>
    %434 = vector.broadcast %433 : vector<1x8xf32> to vector<16x8xf32>
    %435 = arith.addf %431, %434 : vector<16x8xf32>
    %c1_395 = arith.constant 1 : index
    %c3_396 = arith.constant 3 : index
    %c0_397 = arith.constant 0 : index
    %c0_398 = arith.constant 0 : index
    %436 = vector.load %arg12[%c1_395, %c3_396, %c0_397, %c0_398] : memref<2x4x32x8xf32, #tpu.memory_space<vmem>>, vector<1x1x32x8xf32>
    %437 = vector.shape_cast %436 : vector<1x1x32x8xf32> to vector<32x8xf32>
    %cst_399 = arith.constant dense<0.000000e+00> : vector<16x8xf32>
    %438 = tpu.matmul %305, %437, %cst_399 {dimension_numbers = #tpu.dot_dimension_numbers<[1], [0], [0], [1], [0, 0, 1, 1], [], []>} : vector<16x32xf32>, vector<32x8xf32>, vector<16x8xf32> -> vector<16x8xf32>
    %c5_400 = arith.constant 5 : index
    %c3_401 = arith.constant 3 : index
    %c0_402 = arith.constant 0 : index
    %c0_403 = arith.constant 0 : index
    %439 = vector.load %arg13[%c5_400, %c3_401, %c0_402, %c0_403] : memref<6x4x1x8xf32, #tpu.memory_space<vmem>>, vector<1x1x1x8xf32>
    %440 = vector.shape_cast %439 : vector<1x1x1x8xf32> to vector<1x8xf32>
    %441 = vector.broadcast %440 : vector<1x8xf32> to vector<16x8xf32>
    %442 = arith.addf %438, %441 : vector<16x8xf32>
    %cst_404 = arith.constant dense<0.000000e+00> : vector<16x16xf32>
    %443 = tpu.matmul %428, %435, %cst_404 {dimension_numbers = #tpu.dot_dimension_numbers<[1], [1], [0], [0], [0, 0, 1, 0], [], []>} : vector<16x8xf32>, vector<16x8xf32>, vector<16x16xf32> -> vector<16x16xf32>
    %cst_405 = arith.constant 0.353553385 : f32
    %444 = vector.broadcast %cst_405 : f32 to vector<16x16xf32>
    %445 = arith.mulf %443, %444 : vector<16x16xf32>
    %446 = arith.addf %445, %1 : vector<16x16xf32>
    %cst_406 = arith.constant dense<0xFF800000> : vector<16xf32>
    %447 = vector.multi_reduction <maximumf>, %446, %cst_406 [1] : vector<16x16xf32> to vector<16xf32>
    %448 = vector.shape_cast %447 : vector<16xf32> to vector<16x1xf32>
    %449 = vector.broadcast %448 : vector<16x1xf32> to vector<16x16xf32>
    %450 = arith.subf %446, %449 : vector<16x16xf32>
    %451 = math.exp %450 : vector<16x16xf32>
    %cst_407 = arith.constant dense<0.000000e+00> : vector<16xf32>
    %452 = vector.multi_reduction <add>, %451, %cst_407 [1] : vector<16x16xf32> to vector<16xf32>
    %453 = vector.shape_cast %452 : vector<16xf32> to vector<16x1xf32>
    %454 = vector.broadcast %453 : vector<16x1xf32> to vector<16x16xf32>
    %455 = arith.divf %451, %454 : vector<16x16xf32>
    %cst_408 = arith.constant dense<0.000000e+00> : vector<16x8xf32>
    %456 = tpu.matmul %455, %442, %cst_408 {dimension_numbers = #tpu.dot_dimension_numbers<[1], [0], [0], [1], [0, 0, 1, 1], [], []>} : vector<16x16xf32>, vector<16x8xf32>, vector<16x8xf32> -> vector<16x8xf32>
    %c1_409 = arith.constant 1 : index
    %c3_410 = arith.constant 3 : index
    %c0_411 = arith.constant 0 : index
    %c0_412 = arith.constant 0 : index
    %457 = vector.load %arg14[%c1_409, %c3_410, %c0_411, %c0_412] : memref<2x4x8x32xf32, #tpu.memory_space<vmem>>, vector<1x1x8x32xf32>
    %458 = vector.shape_cast %457 : vector<1x1x8x32xf32> to vector<8x32xf32>
    %cst_413 = arith.constant dense<0.000000e+00> : vector<16x32xf32>
    %459 = tpu.matmul %456, %458, %cst_413 {dimension_numbers = #tpu.dot_dimension_numbers<[1], [0], [0], [1], [0, 0, 1, 1], [], []>} : vector<16x8xf32>, vector<8x32xf32>, vector<16x32xf32> -> vector<16x32xf32>
    %460 = arith.addf %421, %459 : vector<16x32xf32>
    %461 = arith.addf %267, %460 : vector<16x32xf32>
    %462 = vector.broadcast %273 : vector<1x32xf32> to vector<16x32xf32>
    %463 = arith.addf %461, %462 : vector<16x32xf32>
    %c1_414 = arith.constant 1 : index
    %c0_415 = arith.constant 0 : index
    %c0_416 = arith.constant 0 : index
    %c0_417 = arith.constant 0 : index
    %464 = vector.load %arg15[%c1_414, %c0_415, %c0_416, %c0_417] : memref<2x2x32x32xf32, #tpu.memory_space<vmem>>, vector<1x1x32x32xf32>
    %465 = vector.shape_cast %464 : vector<1x1x32x32xf32> to vector<32x32xf32>
    %cst_418 = arith.constant dense<0.000000e+00> : vector<2x32xf32>
    %466 = tpu.matmul %17, %465, %cst_418 {dimension_numbers = #tpu.dot_dimension_numbers<[1], [0], [0], [1], [0, 0, 1, 1], [], []>} : vector<2x32xf32>, vector<32x32xf32>, vector<2x32xf32> -> vector<2x32xf32>
    %467 = vector.broadcast %275 : vector<1x32xf32> to vector<2x32xf32>
    %468 = arith.addf %466, %467 : vector<2x32xf32>
    %c1_419 = arith.constant 1 : index
    %c1_420 = arith.constant 1 : index
    %c0_421 = arith.constant 0 : index
    %c0_422 = arith.constant 0 : index
    %469 = vector.load %arg15[%c1_419, %c1_420, %c0_421, %c0_422] : memref<2x2x32x32xf32, #tpu.memory_space<vmem>>, vector<1x1x32x32xf32>
    %470 = vector.shape_cast %469 : vector<1x1x32x32xf32> to vector<32x32xf32>
    %cst_423 = arith.constant dense<0.000000e+00> : vector<2x32xf32>
    %471 = tpu.matmul %468, %470, %cst_423 {dimension_numbers = #tpu.dot_dimension_numbers<[1], [0], [0], [1], [0, 0, 1, 1], [], []>} : vector<2x32xf32>, vector<32x32xf32>, vector<2x32xf32> -> vector<2x32xf32>
    %472 = vector.broadcast %277 : vector<1x32xf32> to vector<2x32xf32>
    %473 = arith.addf %471, %472 : vector<2x32xf32>
    %cst_424 = arith.constant dense<0.000000e+00> : vector<16x32xf32>
    %474 = tpu.matmul %0, %473, %cst_424 {dimension_numbers = #tpu.dot_dimension_numbers<[1], [0], [0], [1], [0, 0, 1, 1], [], []>} : vector<16x2xf32>, vector<2x32xf32>, vector<16x32xf32> -> vector<16x32xf32>
    %475 = arith.addf %463, %474 : vector<16x32xf32>
    %cst_425 = arith.constant dense<0.000000e+00> : vector<16xf32>
    %476 = vector.multi_reduction <add>, %475, %cst_425 [1] : vector<16x32xf32> to vector<16xf32>
    %477 = vector.shape_cast %476 : vector<16xf32> to vector<16x1xf32>
    %cst_426 = arith.constant 3.200000e+01 : f32
    %478 = vector.broadcast %cst_426 : f32 to vector<16x1xf32>
    %479 = arith.divf %477, %478 : vector<16x1xf32>
    %480 = vector.broadcast %479 : vector<16x1xf32> to vector<16x32xf32>
    %481 = arith.subf %475, %480 : vector<16x32xf32>
    %482 = arith.mulf %481, %481 : vector<16x32xf32>
    %cst_427 = arith.constant dense<0.000000e+00> : vector<16xf32>
    %483 = vector.multi_reduction <add>, %482, %cst_427 [1] : vector<16x32xf32> to vector<16xf32>
    %484 = vector.shape_cast %483 : vector<16xf32> to vector<16x1xf32>
    %cst_428 = arith.constant 3.200000e+01 : f32
    %485 = vector.broadcast %cst_428 : f32 to vector<16x1xf32>
    %486 = arith.divf %484, %485 : vector<16x1xf32>
    %487 = vector.broadcast %479 : vector<16x1xf32> to vector<16x32xf32>
    %488 = arith.subf %475, %487 : vector<16x32xf32>
    %cst_429 = arith.constant 9.99999974E-6 : f32
    %489 = vector.broadcast %cst_429 : f32 to vector<16x1xf32>
    %490 = arith.addf %486, %489 : vector<16x1xf32>
    %491 = math.rsqrt %490 : vector<16x1xf32>
    %492 = vector.broadcast %491 : vector<16x1xf32> to vector<16x32xf32>
    %493 = arith.mulf %488, %492 : vector<16x32xf32>
    %494 = vector.broadcast %279 : vector<1x32xf32> to vector<16x32xf32>
    %495 = arith.mulf %493, %494 : vector<16x32xf32>
    %496 = vector.broadcast %281 : vector<1x32xf32> to vector<16x32xf32>
    %497 = arith.addf %495, %496 : vector<16x32xf32>
    %c1_430 = arith.constant 1 : index
    %c0_431 = arith.constant 0 : index
    %c0_432 = arith.constant 0 : index
    %498 = vector.load %arg17[%c1_430, %c0_431, %c0_432] : memref<2x32x64xf32, #tpu.memory_space<vmem>>, vector<1x32x64xf32>
    %499 = vector.shape_cast %498 : vector<1x32x64xf32> to vector<32x64xf32>
    %cst_433 = arith.constant dense<0.000000e+00> : vector<16x64xf32>
    %500 = tpu.matmul %497, %499, %cst_433 {dimension_numbers = #tpu.dot_dimension_numbers<[1], [0], [0], [1], [0, 0, 1, 1], [], []>} : vector<16x32xf32>, vector<32x64xf32>, vector<16x64xf32> -> vector<16x64xf32>
    %c1_434 = arith.constant 1 : index
    %c0_435 = arith.constant 0 : index
    %c0_436 = arith.constant 0 : index
    %501 = vector.load %arg18[%c1_434, %c0_435, %c0_436] : memref<2x1x64xf32, #tpu.memory_space<vmem>>, vector<1x1x64xf32>
    %502 = vector.shape_cast %501 : vector<1x1x64xf32> to vector<1x64xf32>
    %503 = vector.broadcast %502 : vector<1x64xf32> to vector<16x64xf32>
    %504 = arith.addf %500, %503 : vector<16x64xf32>
    %cst_437 = arith.constant 0.000000e+00 : f32
    %505 = vector.broadcast %cst_437 : f32 to vector<16x64xf32>
    %506 = arith.subf %505, %504 : vector<16x64xf32>
    %507 = math.exp %506 : vector<16x64xf32>
    %cst_438 = arith.constant 1.000000e+00 : f32
    %508 = vector.broadcast %cst_438 : f32 to vector<16x64xf32>
    %509 = arith.addf %508, %507 : vector<16x64xf32>
    %510 = tpu.reciprocal %509 {approx = true} : vector<16x64xf32> -> vector<16x64xf32>
    %511 = arith.mulf %504, %510 : vector<16x64xf32>
    %c1_439 = arith.constant 1 : index
    %c0_440 = arith.constant 0 : index
    %c0_441 = arith.constant 0 : index
    %512 = vector.load %arg19[%c1_439, %c0_440, %c0_441] : memref<2x64x32xf32, #tpu.memory_space<vmem>>, vector<1x64x32xf32>
    %513 = vector.shape_cast %512 : vector<1x64x32xf32> to vector<64x32xf32>
    %cst_442 = arith.constant dense<0.000000e+00> : vector<16x32xf32>
    %514 = tpu.matmul %511, %513, %cst_442 {dimension_numbers = #tpu.dot_dimension_numbers<[1], [0], [0], [1], [0, 0, 1, 1], [], []>} : vector<16x64xf32>, vector<64x32xf32>, vector<16x32xf32> -> vector<16x32xf32>
    %515 = arith.addf %475, %514 : vector<16x32xf32>
    %516 = vector.broadcast %283 : vector<1x32xf32> to vector<16x32xf32>
    %517 = arith.addf %515, %516 : vector<16x32xf32>
    %c0_443 = arith.constant 0 : index
    %c0_444 = arith.constant 0 : index
    %c0_445 = arith.constant 0 : index
    %518 = vector.load %arg20[%c0_443, %c0_444, %c0_445] : memref<2x1x32xf32, #tpu.memory_space<vmem>>, vector<1x1x32xf32>
    %519 = vector.shape_cast %518 : vector<1x1x32xf32> to vector<1x32xf32>
    %c1_446 = arith.constant 1 : index
    %c0_447 = arith.constant 0 : index
    %c0_448 = arith.constant 0 : index
    %520 = vector.load %arg20[%c1_446, %c0_447, %c0_448] : memref<2x1x32xf32, #tpu.memory_space<vmem>>, vector<1x1x32xf32>
    %521 = vector.shape_cast %520 : vector<1x1x32xf32> to vector<1x32xf32>
    %cst_449 = arith.constant dense<0.000000e+00> : vector<16xf32>
    %522 = vector.multi_reduction <add>, %517, %cst_449 [1] : vector<16x32xf32> to vector<16xf32>
    %523 = vector.shape_cast %522 : vector<16xf32> to vector<16x1xf32>
    %cst_450 = arith.constant 3.200000e+01 : f32
    %524 = vector.broadcast %cst_450 : f32 to vector<16x1xf32>
    %525 = arith.divf %523, %524 : vector<16x1xf32>
    %526 = vector.broadcast %525 : vector<16x1xf32> to vector<16x32xf32>
    %527 = arith.subf %517, %526 : vector<16x32xf32>
    %528 = arith.mulf %527, %527 : vector<16x32xf32>
    %cst_451 = arith.constant dense<0.000000e+00> : vector<16xf32>
    %529 = vector.multi_reduction <add>, %528, %cst_451 [1] : vector<16x32xf32> to vector<16xf32>
    %530 = vector.shape_cast %529 : vector<16xf32> to vector<16x1xf32>
    %cst_452 = arith.constant 3.200000e+01 : f32
    %531 = vector.broadcast %cst_452 : f32 to vector<16x1xf32>
    %532 = arith.divf %530, %531 : vector<16x1xf32>
    %533 = vector.broadcast %525 : vector<16x1xf32> to vector<16x32xf32>
    %534 = arith.subf %517, %533 : vector<16x32xf32>
    %cst_453 = arith.constant 9.99999974E-6 : f32
    %535 = vector.broadcast %cst_453 : f32 to vector<16x1xf32>
    %536 = arith.addf %532, %535 : vector<16x1xf32>
    %537 = math.rsqrt %536 : vector<16x1xf32>
    %538 = vector.broadcast %537 : vector<16x1xf32> to vector<16x32xf32>
    %539 = arith.mulf %534, %538 : vector<16x32xf32>
    %540 = vector.broadcast %519 : vector<1x32xf32> to vector<16x32xf32>
    %541 = arith.mulf %539, %540 : vector<16x32xf32>
    %542 = vector.broadcast %521 : vector<1x32xf32> to vector<16x32xf32>
    %543 = arith.addf %541, %542 : vector<16x32xf32>
    %c0_454 = arith.constant 0 : index
    %c0_455 = arith.constant 0 : index
    %544 = vector.load %arg21[%c0_454, %c0_455] : memref<32x4xf32, #tpu.memory_space<vmem>>, vector<32x4xf32>
    %cst_456 = arith.constant dense<0.000000e+00> : vector<16x4xf32>
    %545 = tpu.matmul %543, %544, %cst_456 {dimension_numbers = #tpu.dot_dimension_numbers<[1], [0], [0], [1], [0, 0, 1, 1], [], []>} : vector<16x32xf32>, vector<32x4xf32>, vector<16x4xf32> -> vector<16x4xf32>
    %c0_457 = arith.constant 0 : index
    %c0_458 = arith.constant 0 : index
    %546 = vector.load %arg22[%c0_457, %c0_458] : memref<1x4xf32, #tpu.memory_space<vmem>>, vector<1x4xf32>
    %547 = vector.broadcast %546 : vector<1x4xf32> to vector<16x4xf32>
    %548 = arith.addf %545, %547 : vector<16x4xf32>
    %c0_459 = arith.constant 0 : index
    %c0_460 = arith.constant 0 : index
    %549 = vector.load %arg23[%c0_459, %c0_460] : memref<16x4xf32, #tpu.memory_space<vmem>>, vector<16x4xf32>
    tpu.vector_store %arg23[%c0_459, %c0_460], %548 {strides = array<i32>} : memref<16x4xf32, #tpu.memory_space<vmem>>, vector<16x4xf32>,
    return
  }
}

</mosaic_0001>

<llo_original>
// kernel: squeeze.6
$region0: #{squeeze.6}
  %s0 = inlined_call_operand.vmem [shape: f32[32], index: 0, kind: input, shape index: {}]
  %s1 = inlined_call_operand.vmem [shape: f32[1,4,1,8], index: 1, kind: output, shape index: {}]
  $region1: #{squeeze.6} parent=0
    #allocation0 [shape = 'u8[4096]{0}', space=vmem, size = 0x1000, scoped, tag = 'scoped mem for output reshape']
    #allocation1 [shape = 'u8[4096]{0}', space=vmem, size = 0x1000, scoped, tag = 'scoped mem for input reshape']
    %s3 = ssub.s32 2, 1
    %v4 = vld [vmem:[%s0] sm:%s3]
    %5 = vst [vmem:[#allocation1] sm:%s3] %v4
    %v6 = vld [vmem:[#allocation1] sm:$0x1]
    %vm7 = vcmask 64512
    %8 = vst.msk [vmem:[#allocation0] sm:$0x1] %vm7, %v6
    %v9 = vld [vmem:[#allocation1] sm:$0x1]
    %10 = vrot.lane.b32.xlu0 %v9, 120
    %v11 = vpop.permute.xlu0 %10
    %vm12 = vcmask 64512
    %s13 = scalar_lea.vmem [#allocation0], 1
    %14 = vst.msk [vmem:[%s13] sm:$0x1] %vm12, %v11
    %v15 = vld [vmem:[#allocation1] sm:$0x1]
    %16 = vrot.lane.b32.xlu0 %v15, 112
    %v17 = vpop.permute.xlu0 %16
    %vm18 = vcmask 64512
    %s19 = scalar_lea.vmem [#allocation0], 2
    %20 = vst.msk [vmem:[%s19] sm:$0x1] %vm18, %v17
    %v21 = vld [vmem:[#allocation1] sm:$0x1]
    %22 = vrot.lane.b32.xlu0 %v21, 104
    %v23 = vpop.permute.xlu0 %22
    %vm24 = vcmask 64512
    %s25 = scalar_lea.vmem [#allocation0], 3
    %26 = vst.msk [vmem:[%s25] sm:$0x1] %vm24, %v23
    %s28 = ssub.s32 16, 1
    %v29 = vld [vmem:[#allocation0] sm:%s28]
    %s31 = ssub.s32 16, 1
    %32 = vst [vmem:[%s1] sm:%s31] %v29

// kernel: eq.10
$region0: #{eq.10}
  %s0 = inlined_call_operand.vmem [shape: s32[2,8], index: 0, kind: input, shape index: {}]
  %s1 = inlined_call_operand.vmem [shape: s32[16], index: 1, kind: output, shape index: {}]
  $region1: #{eq.10} parent=0
    #allocation0 [shape = 'u8[4096]{0}', space=vmem, size = 0x1000, scoped, tag = 'scoped mem for output reshape']
    #allocation1 [shape = 'u8[4096]{0}', space=vmem, size = 0x1000, scoped, tag = 'scoped mem for input reshape']
    %s3 = ssub.s32 4, 1
    %v4 = vld [vmem:[%s0] sm:%s3]
    %5 = vst [vmem:[#allocation1] sm:%s3] %v4
    %v6 = vld [vmem:[#allocation1] sm:$0x1]
    %vm7 = vcmask 64512
    %8 = vst.msk [vmem:[#allocation0] sm:$0x1] %vm7, %v6
    %s9 = scalar_lea.vmem [#allocation1], 1
    %v10 = vld [vmem:[%s9] sm:$0x1]
    %11 = vrot.lane.b32.xlu0 %v10, 8
    %v12 = vpop.permute.xlu0 %11
    %vm13 = vcmask 130112
    %14 = vst.msk [vmem:[#allocation0] sm:$0x1] %vm13, %v12
    %s16 = ssub.s32 2, 1
    %v17 = vld [vmem:[#allocation0] sm:%s16]
    %s19 = ssub.s32 2, 1
    %20 = vst [vmem:[%s1] sm:%s19] %v17

// kernel: transformer_diffusion_head_forward.1
$region0: #{transformer_diffusion_head_forward.1}
  #allocation0 [shape = 'u32[]', space=smem, size = 0x4, offset = 0x4, fixed_abs, tag = 'smem constant byte address 0x4 - core index']
  #allocation1 [shape = 'u32[72,128]{1,0:T(1,128)}', space=vmem, size = 0x9000, scoped, tag = 'internal scratch']
  %s0 = inlined_call_operand.vmem [shape: f32[16,4], index: 0, kind: input, shape index: {}]
  %s1 = inlined_call_operand.vmem [shape: f32[2,16], index: 1, kind: input, shape index: {}]
  %s2 = inlined_call_operand.vmem [shape: f32[2,24], index: 2, kind: input, shape index: {}]
  %s3 = inlined_call_operand.vmem [shape: f32[16,2], index: 3, kind: input, shape index: {}]
  %s4 = inlined_call_operand.vmem [shape: f32[16,16], index: 4, kind: input, shape index: {}]
  %s5 = inlined_call_operand.vmem [shape: f32[16,32], index: 5, kind: input, shape index: {}]
  %s6 = inlined_call_operand.vmem [shape: f32[4,32], index: 6, kind: input, shape index: {}]
  %s7 = inlined_call_operand.vmem [shape: f32[16,32], index: 7, kind: input, shape index: {}]
  %s8 = inlined_call_operand.vmem [shape: f32[24,32], index: 8, kind: input, shape index: {}]
  %s9 = inlined_call_operand.vmem [shape: f32[1,32], index: 9, kind: input, shape index: {}]
  %s10 = inlined_call_operand.vmem [shape: f32[2,4,32,8], index: 10, kind: input, shape index: {}]
  %s11 = inlined_call_operand.vmem [shape: f32[2,4,32,8], index: 11, kind: input, shape index: {}]
  %s12 = inlined_call_operand.vmem [shape: f32[2,4,32,8], index: 12, kind: input, shape index: {}]
  %s13 = inlined_call_operand.vmem [shape: f32[6,4,1,8], index: 13, kind: input, shape index: {}]
  %s14 = inlined_call_operand.vmem [shape: f32[2,4,8,32], index: 14, kind: input, shape index: {}]
  %s15 = inlined_call_operand.vmem [shape: f32[2,2,32,32], index: 15, kind: input, shape index: {}]
  %s16 = inlined_call_operand.vmem [shape: f32[2,8,1,32], index: 16, kind: input, shape index: {}]
  %s17 = inlined_call_operand.vmem [shape: f32[2,32,64], index: 17, kind: input, shape index: {}]
  %s18 = inlined_call_operand.vmem [shape: f32[2,1,64], index: 18, kind: input, shape index: {}]
  %s19 = inlined_call_operand.vmem [shape: f32[2,64,32], index: 19, kind: input, shape index: {}]
  %s20 = inlined_call_operand.vmem [shape: f32[2,1,32], index: 20, kind: input, shape index: {}]
  %s21 = inlined_call_operand.vmem [shape: f32[32,4], index: 21, kind: input, shape index: {}]
  %s22 = inlined_call_operand.vmem [shape: f32[1,4], index: 22, kind: input, shape index: {}]
  %s23 = inlined_call_operand.vmem [shape: f32[16,4], index: 23, kind: output, shape index: {}]
  %s24 = sld [smem:[#allocation0]]
  $region102: #{transformer_diffusion_head_forward.1} parent=0
    _
  %s26 = ssub.s32 1, %s24
  %s27 = scalar_select 0, %s26, %s24
  // Predicated region
  $region2: #{transformer_diffusion_head_forward.1} parent=0 // pred_check
    _
  $region3: #{transformer_diffusion_head_forward.1} parent=0 // pred_check_branch
    %29 = sbr.rel (0) target = $region5
  $region4: #{transformer_diffusion_head_forward.1} parent=0 // pred_region
    _
  $region5: #{transformer_diffusion_head_forward.1} parent=0 // pred_fallthru
    _
  // Predicated region
  $region6: #{transformer_diffusion_head_forward.1} parent=0 // pred_check
    _
  $region7: #{transformer_diffusion_head_forward.1} parent=0 // pred_check_branch
    %31 = sbr.rel (0) target = $region9
  $region8: #{transformer_diffusion_head_forward.1} parent=0 // pred_region
    _
  $region9: #{transformer_diffusion_head_forward.1} parent=0 // pred_fallthru
    _
  // Predicated region
  $region10: #{transformer_diffusion_head_forward.1} parent=0 // pred_check
    _
  $region11: #{transformer_diffusion_head_forward.1} parent=0 // pred_check_branch
    %33 = sbr.rel (0) target = $region13
  $region12: #{transformer_diffusion_head_forward.1} parent=0 // pred_region
    _
  $region13: #{transformer_diffusion_head_forward.1} parent=0 // pred_fallthru
    _
  // Predicated region
  $region14: #{transformer_diffusion_head_forward.1} parent=0 // pred_check
    _
  $region15: #{transformer_diffusion_head_forward.1} parent=0 // pred_check_branch
    %35 = sbr.rel (0) target = $region17
  $region16: #{transformer_diffusion_head_forward.1} parent=0 // pred_region
    _
  $region17: #{transformer_diffusion_head_forward.1} parent=0 // pred_fallthru
    _
  // Predicated region
  $region18: #{transformer_diffusion_head_forward.1} parent=0 // pred_check
    _
  $region19: #{transformer_diffusion_head_forward.1} parent=0 // pred_check_branch
    %37 = sbr.rel (0) target = $region21
  $region20: #{transformer_diffusion_head_forward.1} parent=0 // pred_region
    _
  $region21: #{transformer_diffusion_head_forward.1} parent=0 // pred_fallthru
    _
  // Predicated region
  $region22: #{transformer_diffusion_head_forward.1} parent=0 // pred_check
    _
  $region23: #{transformer_diffusion_head_forward.1} parent=0 // pred_check_branch
    %39 = sbr.rel (0) target = $region25
  $region24: #{transformer_diffusion_head_forward.1} parent=0 // pred_region
    _
  $region25: #{transformer_diffusion_head_forward.1} parent=0 // pred_fallthru
    _
  // Predicated region
  $region26: #{transformer_diffusion_head_forward.1} parent=0 // pred_check
    _
  $region27: #{transformer_diffusion_head_forward.1} parent=0 // pred_check_branch
    %41 = sbr.rel (0) target = $region29
  $region28: #{transformer_diffusion_head_forward.1} parent=0 // pred_region
    _
  $region29: #{transformer_diffusion_head_forward.1} parent=0 // pred_fallthru
    _
  // Predicated region
  $region30: #{transformer_diffusion_head_forward.1} parent=0 // pred_check
    _
  $region31: #{transformer_diffusion_head_forward.1} parent=0 // pred_check_branch
    %43 = sbr.rel (0) target = $region33
  $region32: #{transformer_diffusion_head_forward.1} parent=0 // pred_region
    _
  $region33: #{transformer_diffusion_head_forward.1} parent=0 // pred_fallthru
    _
  // Predicated region
  $region34: #{transformer_diffusion_head_forward.1} parent=0 // pred_check
    _
  $region35: #{transformer_diffusion_head_forward.1} parent=0 // pred_check_branch
    %45 = sbr.rel (0) target = $region37
  $region36: #{transformer_diffusion_head_forward.1} parent=0 // pred_region
    _
  $region37: #{transformer_diffusion_head_forward.1} parent=0 // pred_fallthru
    _
  // Predicated region
  $region38: #{transformer_diffusion_head_forward.1} parent=0 // pred_check
    _
  $region39: #{transformer_diffusion_head_forward.1} parent=0 // pred_check_branch
    %47 = sbr.rel (0) target = $region41
  $region40: #{transformer_diffusion_head_forward.1} parent=0 // pred_region
    _
  $region41: #{transformer_diffusion_head_forward.1} parent=0 // pred_fallthru
    _
  // Predicated region
  $region42: #{transformer_diffusion_head_forward.1} parent=0 // pred_check
    _
  $region43: #{transformer_diffusion_head_forward.1} parent=0 // pred_check_branch
    %49 = sbr.rel (0) target = $region45
  $region44: #{transformer_diffusion_head_forward.1} parent=0 // pred_region
    _
  $region45: #{transformer_diffusion_head_forward.1} parent=0 // pred_fallthru
    _
  // Predicated region
  $region46: #{transformer_diffusion_head_forward.1} parent=0 // pred_check
    _
  $region47: #{transformer_diffusion_head_forward.1} parent=0 // pred_check_branch
    %51 = sbr.rel (0) target = $region49
  $region48: #{transformer_diffusion_head_forward.1} parent=0 // pred_region
    _
  $region49: #{transformer_diffusion_head_forward.1} parent=0 // pred_fallthru
    _
  // Predicated region
  $region50: #{transformer_diffusion_head_forward.1} parent=0 // pred_check
    _
  $region51: #{transformer_diffusion_head_forward.1} parent=0 // pred_check_branch
    %53 = sbr.rel (0) target = $region53
  $region52: #{transformer_diffusion_head_forward.1} parent=0 // pred_region
    _
  $region53: #{transformer_diffusion_head_forward.1} parent=0 // pred_fallthru
    _
  // Predicated region
  $region54: #{transformer_diffusion_head_forward.1} parent=0 // pred_check
    _
  $region55: #{transformer_diffusion_head_forward.1} parent=0 // pred_check_branch
    %55 = sbr.rel (0) target = $region57
  $region56: #{transformer_diffusion_head_forward.1} parent=0 // pred_region
    _
  $region57: #{transformer_diffusion_head_forward.1} parent=0 // pred_fallthru
    _
  // Predicated region
  $region58: #{transformer_diffusion_head_forward.1} parent=0 // pred_check
    _
  $region59: #{transformer_diffusion_head_forward.1} parent=0 // pred_check_branch
    %57 = sbr.rel (0) target = $region61
  $region60: #{transformer_diffusion_head_forward.1} parent=0 // pred_region
    _
  $region61: #{transformer_diffusion_head_forward.1} parent=0 // pred_fallthru
    _
  // Predicated region
  $region62: #{transformer_diffusion_head_forward.1} parent=0 // pred_check
    _
  $region63: #{transformer_diffusion_head_forward.1} parent=0 // pred_check_branch
    %59 = sbr.rel (0) target = $region65
  $region64: #{transformer_diffusion_head_forward.1} parent=0 // pred_region
    _
  $region65: #{transformer_diffusion_head_forward.1} parent=0 // pred_fallthru
    _
  // Predicated region
  $region66: #{transformer_diffusion_head_forward.1} parent=0 // pred_check
    _
  $region67: #{transformer_diffusion_head_forward.1} parent=0 // pred_check_branch
    %61 = sbr.rel (0) target = $region69
  $region68: #{transformer_diffusion_head_forward.1} parent=0 // pred_region
    _
  $region69: #{transformer_diffusion_head_forward.1} parent=0 // pred_fallthru
    _
  // Predicated region
  $region70: #{transformer_diffusion_head_forward.1} parent=0 // pred_check
    _
  $region71: #{transformer_diffusion_head_forward.1} parent=0 // pred_check_branch
    %63 = sbr.rel (0) target = $region73
  $region72: #{transformer_diffusion_head_forward.1} parent=0 // pred_region
    _
  $region73: #{transformer_diffusion_head_forward.1} parent=0 // pred_fallthru
    _
  // Predicated region
  $region74: #{transformer_diffusion_head_forward.1} parent=0 // pred_check
    _
  $region75: #{transformer_diffusion_head_forward.1} parent=0 // pred_check_branch
    %65 = sbr.rel (0) target = $region77
  $region76: #{transformer_diffusion_head_forward.1} parent=0 // pred_region
    _
  $region77: #{transformer_diffusion_head_forward.1} parent=0 // pred_fallthru
    _
  // Predicated region
  $region78: #{transformer_diffusion_head_forward.1} parent=0 // pred_check
    _
  $region79: #{transformer_diffusion_head_forward.1} parent=0 // pred_check_branch
    %67 = sbr.rel (0) target = $region81
  $region80: #{transformer_diffusion_head_forward.1} parent=0 // pred_region
    _
  $region81: #{transformer_diffusion_head_forward.1} parent=0 // pred_fallthru
    _
  // Predicated region
  $region82: #{transformer_diffusion_head_forward.1} parent=0 // pred_check
    _
  $region83: #{transformer_diffusion_head_forward.1} parent=0 // pred_check_branch
    %69 = sbr.rel (0) target = $region85
  $region84: #{transformer_diffusion_head_forward.1} parent=0 // pred_region
    _
  $region85: #{transformer_diffusion_head_forward.1} parent=0 // pred_fallthru
    _
  // Predicated region
  $region86: #{transformer_diffusion_head_forward.1} parent=0 // pred_check
    _
  $region87: #{transformer_diffusion_head_forward.1} parent=0 // pred_check_branch
    %71 = sbr.rel (0) target = $region89
  $region88: #{transformer_diffusion_head_forward.1} parent=0 // pred_region
    _
  $region89: #{transformer_diffusion_head_forward.1} parent=0 // pred_fallthru
    _
  // Predicated region
  $region90: #{transformer_diffusion_head_forward.1} parent=0 // pred_check
    _
  $region91: #{transformer_diffusion_head_forward.1} parent=0 // pred_check_branch
    %73 = sbr.rel (0) target = $region93
  $region92: #{transformer_diffusion_head_forward.1} parent=0 // pred_region
    _
  $region93: #{transformer_diffusion_head_forward.1} parent=0 // pred_fallthru
    _
  %v74 = vld [vmem:[%s3] sm:$0xff]
  %v75 = vld [vmem:[%s3 + $0x8] sm:$0xff]
  %v76 = vld [vmem:[%s4] sm:$0xff]
  %v77 = vld [vmem:[%s4 + $0x8] sm:$0xff]
  %v78 = vld [vmem:[%s1] sm:$0x3]
  %v79 = vld [vmem:[%s7] sm:$0xff]
  %v80 = vld [vmem:[%s7 + $0x8] sm:$0xff]
  %vm81 = vcmask 130048
  %v83 = vsel %vm81, %v78, 0
  %85 = vmatpush.msra.mxu0 0.0
  %86 = vmatpush.msra.mxu0 0.0
  %87 = vmatpush.msra.mxu0 0.0
  %88 = vmatpush.msra.mxu0 0.0
  %89 = vmatpush.msra.mxu0 0.0
  %90 = vmatpush.msra.mxu0 0.0
  %91 = vmatpush.msra.mxu0 0.0
  %92 = vmatpush.msra.mxu0 0.0
  %93 = vmatpush.msra.mxu0 0.0
  %94 = vmatpush.msra.mxu0 0.0
  %95 = vmatpush.msra.mxu0 0.0
  %96 = vmatpush.msra.mxu0 0.0
  %97 = vmatpush.msra.mxu0 0.0
  %98 = vmatpush.msra.mxu0 0.0
  %99 = vmatpush.msra.mxu0 %v80
  %100 = vmatpush.msra.mxu0 %v79
  %101 = vmatmul.f32.gmra.mxu0 %v83
  %v102 = vpop.f32.mrf.mxu0
  %v103 = vadd.f32 0.0, %v102
  %104 = vdwg.mxu0
  %v105 = vld [vmem:[%s0] sm:$0xff]
  %v106 = vld [vmem:[%s0 + $0x8] sm:$0xff]
  %v107 = vld [vmem:[%s6] sm:$0xf]
  %vm108 = vcmask 15360
  %v110 = vsel %vm108, %v74, 0
  %v113 = vsel %vm108, %v75, 0
  %vm115 = vcmask 1041408
  %v117 = vsel %vm115, %v103, 0
  %119 = vmatpush.msra.mxu0 0.0
  %120 = vmatpush.msra.mxu0 0.0
  %121 = vmatpush.msra.mxu0 0.0
  %122 = vmatpush.msra.mxu0 0.0
  %123 = vmatpush.msra.mxu0 0.0
  %124 = vmatpush.msra.mxu0 0.0
  %125 = vmatpush.msra.mxu0 0.0
  %126 = vmatpush.msra.mxu0 0.0
  %127 = vmatpush.msra.mxu0 0.0
  %128 = vmatpush.msra.mxu0 0.0
  %129 = vmatpush.msra.mxu0 0.0
  %130 = vmatpush.msra.mxu0 0.0
  %131 = vmatpush.msra.mxu0 0.0
  %132 = vmatpush.msra.mxu0 0.0
  %133 = vmatpush.msra.mxu0 0.0
  %134 = vmatpush.msra.mxu0 %v117
  %135 = vmatmul.f32.gmra.mxu0 %v110
  %v136 = vpop.f32.mrf.mxu0
  %v137 = vadd.f32 0.0, %v136
  %138 = vmatmul.f32.gmra.mxu0 %v113
  %v139 = vpop.f32.mrf.mxu0
  %v140 = vadd.f32 0.0, %v139
  %141 = vdwg.mxu0
  %vm142 = vcmask 31744
  %v144 = vsel %vm142, %v105, 0
  %v147 = vsel %vm142, %v106, 0
  %vm149 = vcmask 1043456
  %v151 = vsel %vm149, %v107, 0
  %153 = vmatpush.msra.mxu0 0.0
  %154 = vmatpush.msra.mxu0 0.0
  %155 = vmatpush.msra.mxu0 0.0
  %156 = vmatpush.msra.mxu0 0.0
  %157 = vmatpush.msra.mxu0 0.0
  %158 = vmatpush.msra.mxu0 0.0
  %159 = vmatpush.msra.mxu0 0.0
  %160 = vmatpush.msra.mxu0 0.0
  %161 = vmatpush.msra.mxu0 0.0
  %162 = vmatpush.msra.mxu0 0.0
  %163 = vmatpush.msra.mxu0 0.0
  %164 = vmatpush.msra.mxu0 0.0
  %165 = vmatpush.msra.mxu0 0.0
  %166 = vmatpush.msra.mxu0 0.0
  %167 = vmatpush.msra.mxu0 0.0
  %168 = vmatpush.msra.mxu0 %v151
  %169 = vmatmul.f32.gmra.mxu0 %v144
  %v170 = vpop.f32.mrf.mxu0
  %v171 = vadd.f32 %v137, %v170
  %172 = vmatmul.f32.gmra.mxu0 %v147
  %v173 = vpop.f32.mrf.mxu0
  %v174 = vadd.f32 %v140, %v173
  %175 = vdwg.mxu0
  %v176 = vld [vmem:[%s5] sm:$0xff]
  %v177 = vld [vmem:[%s5 + $0x8] sm:$0xff]
  %v178 = vadd.f32 %v171, %v176
  %v179 = vadd.f32 %v174, %v177
  %v180 = vld [vmem:[%s2] sm:$0x3]
  %v181 = vld [vmem:[%s8] sm:$0xff]
  %v182 = vld [vmem:[%s8 + $0x8] sm:$0xff]
  %v183 = vld [vmem:[%s8 + $0x10] sm:$0xff]
  %v184 = vld [vmem:[%s9] sm:$0x1]
  %v186 = vperm.slane %v184, 0
  %vm188 = vcmask 195584
  %v190 = vsel %vm188, %v180, 0
  %192 = vmatpush.msra.mxu0 0.0
  %193 = vmatpush.msra.mxu0 0.0
  %194 = vmatpush.msra.mxu0 0.0
  %195 = vmatpush.msra.mxu0 0.0
  %196 = vmatpush.msra.mxu0 0.0
  %197 = vmatpush.msra.mxu0 0.0
  %198 = vmatpush.msra.mxu0 0.0
  %199 = vmatpush.msra.mxu0 0.0
  %200 = vmatpush.msra.mxu0 0.0
  %201 = vmatpush.msra.mxu0 0.0
  %202 = vmatpush.msra.mxu0 0.0
  %203 = vmatpush.msra.mxu0 0.0
  %204 = vmatpush.msra.mxu0 0.0
  %205 = vmatpush.msra.mxu0 %v183
  %206 = vmatpush.msra.mxu0 %v182
  %207 = vmatpush.msra.mxu0 %v181
  %208 = vmatmul.f32.gmra.mxu0 %v190
  %v209 = vpop.f32.mrf.mxu0
  %v210 = vadd.f32 %v186, %v209
  %211 = vdwg.mxu0
  %v212 = vld [vmem:[%s16] sm:$0x1]
  %s213 = scalar_lea.vmem %s16, 1
  %v214 = vld [vmem:[%s213] sm:$0x1]
  %s215 = scalar_lea.vmem %s16, 2
  %v216 = vld [vmem:[%s215] sm:$0x1]
  %s217 = scalar_lea.vmem %s16, 3
  %v218 = vld [vmem:[%s217] sm:$0x1]
  %s219 = scalar_lea.vmem %s16, 4
  %v220 = vld [vmem:[%s219] sm:$0x1]
  %s221 = scalar_lea.vmem %s16, 5
  %v222 = vld [vmem:[%s221] sm:$0x1]
  %s223 = scalar_lea.vmem %s16, 6
  %v224 = vld [vmem:[%s223] sm:$0x1]
  %s225 = scalar_lea.vmem %s16, 7
  %v226 = vld [vmem:[%s225] sm:$0x1]
  %vm227 = vcmask 261120
  %v228 = vsel %vm227, %v178, 0.0
  %229 = vadd.xlane.f32.xlu0 %v228
  %v230 = vpop.xlane.xlu0 %229
  %v231 = vsel %vm227, %v179, 0.0
  %232 = vadd.xlane.f32.xlu0 %v231
  %v233 = vpop.xlane.xlu0 %232
  %v234 = vrcp.pop 32.0
  %v235 = vmul.f32 32.0, %v234
  %v236 = vsub.f32 1.0, %v235
  %v237 = vmul.f32 %v234, %v236
  %v238 = vadd.f32 %v234, %v237
  %vm239 = vweird.f32 %v234
  %v240 = vsel %vm239, %v234, %v238
  %v241 = vmul.f32 %v230, %v240
  %v242 = vmul.f32 %v233, %v240
  %v243 = vsub.f32 %v178, %v241
  %v244 = vsub.f32 %v179, %v242
  %v245 = vmul.f32 %v243, %v243
  %v246 = vmul.f32 %v244, %v244
  %v247 = vsel %vm227, %v245, 0.0
  %248 = vadd.xlane.f32.xlu0 %v247
  %v249 = vpop.xlane.xlu0 %248
  %v250 = vsel %vm227, %v246, 0.0
  %251 = vadd.xlane.f32.xlu0 %v250
  %v252 = vpop.xlane.xlu0 %251
  %v253 = vmul.f32 %v249, %v240
  %v254 = vmul.f32 %v252, %v240
  %v255 = vadd.f32 %v253, 1e-05
  %v256 = vadd.f32 %v254, 1e-05
  %v257 = vrsqrt.pop %v255
  %v258 = vmul.f32 %v257, %v255
  %v259 = vmul.f32 %v258, %v257
  %v260 = vmul.f32 0.5, %v259
  %v261 = vsub.f32 1.5, %v260
  %v262 = vmul.f32 %v257, %v261
  %vm263 = vweird.f32 %v255
  %vm264 = vweird.f32 %v257
  %vm265 = vmor %vm263, %vm264
  %v266 = vsel %vm265, %v257, %v262
  %v267 = vrsqrt.pop %v256
  %v268 = vmul.f32 %v267, %v256
  %v269 = vmul.f32 %v268, %v267
  %v270 = vmul.f32 0.5, %v269
  %v271 = vsub.f32 1.5, %v270
  %v272 = vmul.f32 %v267, %v271
  %vm273 = vweird.f32 %v256
  %vm274 = vweird.f32 %v267
  %vm275 = vmor %vm273, %vm274
  %v276 = vsel %vm275, %v267, %v272
  %v277 = vmul.f32 %v243, %v266
  %v278 = vmul.f32 %v244, %v276
  %v280 = vperm.slane %v212, 0
  %v282 = vmul.f32 %v277, %v280
  %v283 = vmul.f32 %v278, %v280
  %v285 = vperm.slane %v214, 0
  %v287 = vadd.f32 %v282, %v285
  %v288 = vadd.f32 %v283, %v285
  %v289 = vld [vmem:[%s10] sm:$0xff]
  %v290 = vld [vmem:[%s10 + $0x8] sm:$0xff]
  %v291 = vld [vmem:[%s10 + $0x10] sm:$0xff]
  %v292 = vld [vmem:[%s10 + $0x18] sm:$0xff]
  %v293 = vld [vmem:[%s13] sm:$0x1]
  %v295 = vperm.slane %v293, 0
  %v298 = vsel %vm227, %v287, 0
  %v301 = vsel %vm227, %v288, 0
  %303 = vmatpush.msra.mxu0 0.0
  %304 = vmatpush.msra.mxu0 0.0
  %305 = vmatpush.msra.mxu0 0.0
  %306 = vmatpush.msra.mxu0 0.0
  %307 = vmatpush.msra.mxu0 0.0
  %308 = vmatpush.msra.mxu0 0.0
  %309 = vmatpush.msra.mxu0 0.0
  %310 = vmatpush.msra.mxu0 0.0
  %311 = vmatpush.msra.mxu0 0.0
  %312 = vmatpush.msra.mxu0 0.0
  %313 = vmatpush.msra.mxu0 0.0
  %314 = vmatpush.msra.mxu0 0.0
  %315 = vmatpush.msra.mxu0 %v292
  %316 = vmatpush.msra.mxu0 %v291
  %317 = vmatpush.msra.mxu0 %v290
  %318 = vmatpush.msra.mxu0 %v289
  %319 = vmatmul.f32.gmra.mxu0 %v298
  %v320 = vpop.f32.mrf.mxu0
  %v321 = vadd.f32 %v295, %v320
  %322 = vmatmul.f32.gmra.mxu0 %v301
  %v323 = vpop.f32.mrf.mxu0
  %v324 = vadd.f32 %v295, %v323
  %325 = vdwg.mxu0
  %v326 = vld [vmem:[%s11] sm:$0xff]
  %v327 = vld [vmem:[%s11 + $0x8] sm:$0xff]
  %v328 = vld [vmem:[%s11 + $0x10] sm:$0xff]
  %v329 = vld [vmem:[%s11 + $0x18] sm:$0xff]
  %s330 = scalar_lea.vmem %s13, 4
  %v331 = vld [vmem:[%s330] sm:$0x1]
  %v333 = vperm.slane %v331, 0
  %335 = vmatpush.msra.mxu0 0.0
  %336 = vmatpush.msra.mxu0 0.0
  %337 = vmatpush.msra.mxu0 0.0
  %338 = vmatpush.msra.mxu0 0.0
  %339 = vmatpush.msra.mxu0 0.0
  %340 = vmatpush.msra.mxu0 0.0
  %341 = vmatpush.msra.mxu0 0.0
  %342 = vmatpush.msra.mxu0 0.0
  %343 = vmatpush.msra.mxu0 0.0
  %344 = vmatpush.msra.mxu0 0.0
  %345 = vmatpush.msra.mxu0 0.0
  %346 = vmatpush.msra.mxu0 0.0
  %347 = vmatpush.msra.mxu0 %v329
  %348 = vmatpush.msra.mxu0 %v328
  %349 = vmatpush.msra.mxu0 %v327
  %350 = vmatpush.msra.mxu0 %v326
  %351 = vmatmul.f32.gmra.mxu0 %v298
  %v352 = vpop.f32.mrf.mxu0
  %v353 = vadd.f32 %v333, %v352
  %354 = vmatmul.f32.gmra.mxu0 %v301
  %v355 = vpop.f32.mrf.mxu0
  %v356 = vadd.f32 %v333, %v355
  %357 = vdwg.mxu0
  %v358 = vld [vmem:[%s12] sm:$0xff]
  %v359 = vld [vmem:[%s12 + $0x8] sm:$0xff]
  %v360 = vld [vmem:[%s12 + $0x10] sm:$0xff]
  %v361 = vld [vmem:[%s12 + $0x18] sm:$0xff]
  %s362 = scalar_lea.vmem %s13, 8
  %v363 = vld [vmem:[%s362] sm:$0x1]
  %v365 = vperm.slane %v363, 0
  %367 = vmatpush.msra.mxu0 0.0
  %368 = vmatpush.msra.mxu0 0.0
  %369 = vmatpush.msra.mxu0 0.0
  %370 = vmatpush.msra.mxu0 0.0
  %371 = vmatpush.msra.mxu0 0.0
  %372 = vmatpush.msra.mxu0 0.0
  %373 = vmatpush.msra.mxu0 0.0
  %374 = vmatpush.msra.mxu0 0.0
  %375 = vmatpush.msra.mxu0 0.0
  %376 = vmatpush.msra.mxu0 0.0
  %377 = vmatpush.msra.mxu0 0.0
  %378 = vmatpush.msra.mxu0 0.0
  %379 = vmatpush.msra.mxu0 %v361
  %380 = vmatpush.msra.mxu0 %v360
  %381 = vmatpush.msra.mxu0 %v359
  %382 = vmatpush.msra.mxu0 %v358
  %383 = vmatmul.f32.gmra.mxu0 %v298
  %v384 = vpop.f32.mrf.mxu0
  %v385 = vadd.f32 %v365, %v384
  %386 = vmatmul.f32.gmra.mxu0 %v301
  %v387 = vpop.f32.mrf.mxu0
  %v388 = vadd.f32 %v365, %v387
  %389 = vdwg.mxu0
  %vm390 = vcmask 64512
  %v392 = vsel %vm390, %v321, 0
  %v395 = vsel %vm390, %v324, 0
  %v398 = vsel %vm390, %v353, 0
  %v401 = vsel %vm390, %v356, 0
  %403 = vmatpush.xpose.msra.mxu0 0.0
  %404 = vmatpush.xpose.msra.mxu0 0.0
  %405 = vmatpush.xpose.msra.mxu0 0.0
  %406 = vmatpush.xpose.msra.mxu0 0.0
  %407 = vmatpush.xpose.msra.mxu0 0.0
  %408 = vmatpush.xpose.msra.mxu0 0.0
  %409 = vmatpush.xpose.msra.mxu0 0.0
  %410 = vmatpush.xpose.msra.mxu0 0.0
  %411 = vmatpush.xpose.msra.mxu0 0.0
  %412 = vmatpush.xpose.msra.mxu0 0.0
  %413 = vmatpush.xpose.msra.mxu0 0.0
  %414 = vmatpush.xpose.msra.mxu0 0.0
  %415 = vmatpush.xpose.msra.mxu0 0.0
  %416 = vmatpush.xpose.msra.mxu0 0.0
  %417 = vmatpush.xpose.msra.mxu0 %v401
  %418 = vmatpush.xpose.msra.mxu0 %v398
  %419 = vmatmul.f32.gmra.mxu0 %v392
  %v420 = vpop.f32.mrf.mxu0
  %v421 = vadd.f32 0.0, %v420
  %422 = vmatmul.f32.gmra.mxu0 %v395
  %v423 = vpop.f32.mrf.mxu0
  %v424 = vadd.f32 0.0, %v423
  %425 = vdwg.mxu0
  %v426 = vmul.f32 %v421, 0.35355338
  %v427 = vmul.f32 %v424, 0.35355338
  %v428 = vadd.f32 %v426, %v76
  %v429 = vadd.f32 %v427, %v77
  %v430 = vsel %vm81, %v428, -inf
  %431 = vmax.xlane.f32.xlu0 %v430
  %v432 = vpop.xlane.xlu0 %431
  %v433 = vsel %vm81, %v429, -inf
  %434 = vmax.xlane.f32.xlu0 %v433
  %v435 = vpop.xlane.xlu0 %434
  %v436 = vsub.f32 %v428, %v432
  %v437 = vsub.f32 %v429, %v435
  %v438 = vmul.f32 %v436, 1.442695
  %v439 = vpow.pop %v438
  %v440 = vmul.f32 %v437, 1.442695
  %v441 = vpow.pop %v440
  %v442 = vsel %vm81, %v439, 0.0
  %443 = vadd.xlane.f32.xlu0 %v442
  %v444 = vpop.xlane.xlu0 %443
  %v445 = vsel %vm81, %v441, 0.0
  %446 = vadd.xlane.f32.xlu0 %v445
  %v447 = vpop.xlane.xlu0 %446
  %v448 = vrcp.pop %v444
  %v449 = vmul.f32 %v444, %v448
  %v450 = vsub.f32 1.0, %v449
  %v451 = vmul.f32 %v448, %v450
  %v452 = vadd.f32 %v448, %v451
  %vm453 = vweird.f32 %v444
  %vm454 = vweird.f32 %v448
  %vm455 = vmor %vm453, %vm454
  %v456 = vsel %vm455, %v448, %v452
  %v457 = vand.u32 2147483647, %v444
  %vm458 = vcmp.eq.f32.partialorder %v457, 8.507059e+37
  %v459 = vand.u32 %v444, 2147483648
  %v460 = vor.u32 1.1754944e-38, %v459
  %v461 = vsel %vm458, %v460, %v456
  %v462 = vmul.f32 %v439, %v461
  %v463 = vrcp.pop %v447
  %v464 = vmul.f32 %v447, %v463
  %v465 = vsub.f32 1.0, %v464
  %v466 = vmul.f32 %v463, %v465
  %v467 = vadd.f32 %v463, %v466
  %vm468 = vweird.f32 %v447
  %vm469 = vweird.f32 %v463
  %vm470 = vmor %vm468, %vm469
  %v471 = vsel %vm470, %v463, %v467
  %v472 = vand.u32 2147483647, %v447
  %vm473 = vcmp.eq.f32.partialorder %v472, 8.507059e+37
  %v474 = vand.u32 %v447, 2147483648
  %v475 = vor.u32 1.1754944e-38, %v474
  %v476 = vsel %vm473, %v475, %v471
  %v477 = vmul.f32 %v441, %v476
  %v479 = vsel %vm81, %v462, 0
  %v482 = vsel %vm81, %v477, 0
  %484 = vmatpush.msra.mxu0 0.0
  %485 = vmatpush.msra.mxu0 0.0
  %486 = vmatpush.msra.mxu0 0.0
  %487 = vmatpush.msra.mxu0 0.0
  %488 = vmatpush.msra.mxu0 0.0
  %489 = vmatpush.msra.mxu0 0.0
  %490 = vmatpush.msra.mxu0 0.0
  %491 = vmatpush.msra.mxu0 0.0
  %492 = vmatpush.msra.mxu0 0.0
  %493 = vmatpush.msra.mxu0 0.0
  %494 = vmatpush.msra.mxu0 0.0
  %495 = vmatpush.msra.mxu0 0.0
  %496 = vmatpush.msra.mxu0 0.0
  %497 = vmatpush.msra.mxu0 0.0
  %498 = vmatpush.msra.mxu0 %v388
  %499 = vmatpush.msra.mxu0 %v385
  %500 = vmatmul.f32.gmra.mxu0 %v479
  %v501 = vpop.f32.mrf.mxu0
  %v502 = vadd.f32 0.0, %v501
  %503 = vmatmul.f32.gmra.mxu0 %v482
  %v504 = vpop.f32.mrf.mxu0
  %v505 = vadd.f32 0.0, %v504
  %506 = vdwg.mxu0
  %v507 = vld [vmem:[%s14] sm:$0xff]
  %s508 = scalar_lea.vmem %s10, 32
  %v509 = vld [vmem:[%s508] sm:$0xff]
  %v510 = vld [vmem:[%s508 + $0x8] sm:$0xff]
  %v511 = vld [vmem:[%s508 + $0x10] sm:$0xff]
  %v512 = vld [vmem:[%s508 + $0x18] sm:$0xff]
  %s513 = scalar_lea.vmem %s13, 1
  %v514 = vld [vmem:[%s513] sm:$0x1]
  %v516 = vperm.slane %v514, 0
  %518 = vmatpush.msra.mxu0 0.0
  %519 = vmatpush.msra.mxu0 0.0
  %520 = vmatpush.msra.mxu0 0.0
  %521 = vmatpush.msra.mxu0 0.0
  %522 = vmatpush.msra.mxu0 0.0
  %523 = vmatpush.msra.mxu0 0.0
  %524 = vmatpush.msra.mxu0 0.0
  %525 = vmatpush.msra.mxu0 0.0
  %526 = vmatpush.msra.mxu0 0.0
  %527 = vmatpush.msra.mxu0 0.0
  %528 = vmatpush.msra.mxu0 0.0
  %529 = vmatpush.msra.mxu0 0.0
  %530 = vmatpush.msra.mxu0 %v512
  %531 = vmatpush.msra.mxu0 %v511
  %532 = vmatpush.msra.mxu0 %v510
  %533 = vmatpush.msra.mxu0 %v509
  %534 = vmatmul.f32.gmra.mxu0 %v298
  %v535 = vpop.f32.mrf.mxu0
  %v536 = vadd.f32 %v516, %v535
  %537 = vmatmul.f32.gmra.mxu0 %v301
  %v538 = vpop.f32.mrf.mxu0
  %v539 = vadd.f32 %v516, %v538
  %540 = vdwg.mxu0
  %s541 = scalar_lea.vmem %s11, 32
  %v542 = vld [vmem:[%s541] sm:$0xff]
  %v543 = vld [vmem:[%s541 + $0x8] sm:$0xff]
  %v544 = vld [vmem:[%s541 + $0x10] sm:$0xff]
  %v545 = vld [vmem:[%s541 + $0x18] sm:$0xff]
  %s546 = scalar_lea.vmem %s13, 5
  %v547 = vld [vmem:[%s546] sm:$0x1]
  %v549 = vperm.slane %v547, 0
  %551 = vmatpush.msra.mxu0 0.0
  %552 = vmatpush.msra.mxu0 0.0
  %553 = vmatpush.msra.mxu0 0.0
  %554 = vmatpush.msra.mxu0 0.0
  %555 = vmatpush.msra.mxu0 0.0
  %556 = vmatpush.msra.mxu0 0.0
  %557 = vmatpush.msra.mxu0 0.0
  %558 = vmatpush.msra.mxu0 0.0
  %559 = vmatpush.msra.mxu0 0.0
  %560 = vmatpush.msra.mxu0 0.0
  %561 = vmatpush.msra.mxu0 0.0
  %562 = vmatpush.msra.mxu0 0.0
  %563 = vmatpush.msra.mxu0 %v545
  %564 = vmatpush.msra.mxu0 %v544
  %565 = vmatpush.msra.mxu0 %v543
  %566 = vmatpush.msra.mxu0 %v542
  %567 = vmatmul.f32.gmra.mxu0 %v298
  %v568 = vpop.f32.mrf.mxu0
  %v569 = vadd.f32 %v549, %v568
  %570 = vmatmul.f32.gmra.mxu0 %v301
  %v571 = vpop.f32.mrf.mxu0
  %v572 = vadd.f32 %v549, %v571
  %573 = vdwg.mxu0
  %s574 = scalar_lea.vmem %s12, 32
  %v575 = vld [vmem:[%s574] sm:$0xff]
  %v576 = vld [vmem:[%s574 + $0x8] sm:$0xff]
  %v577 = vld [vmem:[%s574 + $0x10] sm:$0xff]
  %v578 = vld [vmem:[%s574 + $0x18] sm:$0xff]
  %s579 = scalar_lea.vmem %s13, 9
  %v580 = vld [vmem:[%s579] sm:$0x1]
  %v582 = vperm.slane %v580, 0
  %584 = vmatpush.msra.mxu0 0.0
  %585 = vmatpush.msra.mxu0 0.0
  %586 = vmatpush.msra.mxu0 0.0
  %587 = vmatpush.msra.mxu0 0.0
  %588 = vmatpush.msra.mxu0 0.0
  %589 = vmatpush.msra.mxu0 0.0
  %590 = vmatpush.msra.mxu0 0.0
  %591 = vmatpush.msra.mxu0 0.0
  %592 = vmatpush.msra.mxu0 0.0
  %593 = vmatpush.msra.mxu0 0.0
  %594 = vmatpush.msra.mxu0 0.0
  %595 = vmatpush.msra.mxu0 0.0
  %596 = vmatpush.msra.mxu0 %v578
  %597 = vmatpush.msra.mxu0 %v577
  %598 = vmatpush.msra.mxu0 %v576
  %599 = vmatpush.msra.mxu0 %v575
  %600 = vmatmul.f32.gmra.mxu0 %v298
  %v601 = vpop.f32.mrf.mxu0
  %v602 = vadd.f32 %v582, %v601
  %603 = vmatmul.f32.gmra.mxu0 %v301
  %v604 = vpop.f32.mrf.mxu0
  %v605 = vadd.f32 %v582, %v604
  %606 = vdwg.mxu0
  %v608 = vsel %vm390, %v536, 0
  %v611 = vsel %vm390, %v539, 0
  %v614 = vsel %vm390, %v569, 0
  %v617 = vsel %vm390, %v572, 0
  %619 = vmatpush.xpose.msra.mxu0 0.0
  %620 = vmatpush.xpose.msra.mxu0 0.0
  %621 = vmatpush.xpose.msra.mxu0 0.0
  %622 = vmatpush.xpose.msra.mxu0 0.0
  %623 = vmatpush.xpose.msra.mxu0 0.0
  %624 = vmatpush.xpose.msra.mxu0 0.0
  %625 = vmatpush.xpose.msra.mxu0 0.0
  %626 = vmatpush.xpose.msra.mxu0 0.0
  %627 = vmatpush.xpose.msra.mxu0 0.0
  %628 = vmatpush.xpose.msra.mxu0 0.0
  %629 = vmatpush.xpose.msra.mxu0 0.0
  %630 = vmatpush.xpose.msra.mxu0 0.0
  %631 = vmatpush.xpose.msra.mxu0 0.0
  %632 = vmatpush.xpose.msra.mxu0 0.0
  %633 = vmatpush.xpose.msra.mxu0 %v617
  %634 = vmatpush.xpose.msra.mxu0 %v614
  %635 = vmatmul.f32.gmra.mxu0 %v608
  %v636 = vpop.f32.mrf.mxu0
  %v637 = vadd.f32 0.0, %v636
  %638 = vmatmul.f32.gmra.mxu0 %v611
  %v639 = vpop.f32.mrf.mxu0
  %v640 = vadd.f32 0.0, %v639
  %641 = vdwg.mxu0
  %v642 = vmul.f32 %v637, 0.35355338
  %v643 = vmul.f32 %v640, 0.35355338
  %v644 = vadd.f32 %v642, %v76
  %v645 = vadd.f32 %v643, %v77
  %v646 = vsel %vm81, %v644, -inf
  %647 = vmax.xlane.f32.xlu0 %v646
  %v648 = vpop.xlane.xlu0 %647
  %v649 = vsel %vm81, %v645, -inf
  %650 = vmax.xlane.f32.xlu0 %v649
  %v651 = vpop.xlane.xlu0 %650
  %v652 = vsub.f32 %v644, %v648
  %v653 = vsub.f32 %v645, %v651
  %v654 = vmul.f32 %v652, 1.442695
  %v655 = vpow.pop %v654
  %v656 = vmul.f32 %v653, 1.442695
  %v657 = vpow.pop %v656
  %v658 = vsel %vm81, %v655, 0.0
  %659 = vadd.xlane.f32.xlu0 %v658
  %v660 = vpop.xlane.xlu0 %659
  %v661 = vsel %vm81, %v657, 0.0
  %662 = vadd.xlane.f32.xlu0 %v661
  %v663 = vpop.xlane.xlu0 %662
  %v664 = vrcp.pop %v660
  %v665 = vmul.f32 %v660, %v664
  %v666 = vsub.f32 1.0, %v665
  %v667 = vmul.f32 %v664, %v666
  %v668 = vadd.f32 %v664, %v667
  %vm669 = vweird.f32 %v660
  %vm670 = vweird.f32 %v664
  %vm671 = vmor %vm669, %vm670
  %v672 = vsel %vm671, %v664, %v668
  %v673 = vand.u32 2147483647, %v660
  %vm674 = vcmp.eq.f32.partialorder %v673, 8.507059e+37
  %v675 = vand.u32 %v660, 2147483648
  %v676 = vor.u32 1.1754944e-38, %v675
  %v677 = vsel %vm674, %v676, %v672
  %v678 = vmul.f32 %v655, %v677
  %v679 = vrcp.pop %v663
  %v680 = vmul.f32 %v663, %v679
  %v681 = vsub.f32 1.0, %v680
  %v682 = vmul.f32 %v679, %v681
  %v683 = vadd.f32 %v679, %v682
  %vm684 = vweird.f32 %v663
  %vm685 = vweird.f32 %v679
  %vm686 = vmor %vm684, %vm685
  %v687 = vsel %vm686, %v679, %v683
  %v688 = vand.u32 2147483647, %v663
  %vm689 = vcmp.eq.f32.partialorder %v688, 8.507059e+37
  %v690 = vand.u32 %v663, 2147483648
  %v691 = vor.u32 1.1754944e-38, %v690
  %v692 = vsel %vm689, %v691, %v687
  %v693 = vmul.f32 %v657, %v692
  %v695 = vsel %vm81, %v678, 0
  %v698 = vsel %vm81, %v693, 0
  %700 = vmatpush.msra.mxu0 0.0
  %701 = vmatpush.msra.mxu0 0.0
  %702 = vmatpush.msra.mxu0 0.0
  %703 = vmatpush.msra.mxu0 0.0
  %704 = vmatpush.msra.mxu0 0.0
  %705 = vmatpush.msra.mxu0 0.0
  %706 = vmatpush.msra.mxu0 0.0
  %707 = vmatpush.msra.mxu0 0.0
  %708 = vmatpush.msra.mxu0 0.0
  %709 = vmatpush.msra.mxu0 0.0
  %710 = vmatpush.msra.mxu0 0.0
  %711 = vmatpush.msra.mxu0 0.0
  %712 = vmatpush.msra.mxu0 0.0
  %713 = vmatpush.msra.mxu0 0.0
  %714 = vmatpush.msra.mxu0 %v605
  %715 = vmatpush.msra.mxu0 %v602
  %716 = vmatmul.f32.gmra.mxu0 %v695
  %v717 = vpop.f32.mrf.mxu0
  %v718 = vadd.f32 0.0, %v717
  %719 = vmatmul.f32.gmra.mxu0 %v698
  %v720 = vpop.f32.mrf.mxu0
  %v721 = vadd.f32 0.0, %v720
  %722 = vdwg.mxu0
  %s723 = scalar_lea.vmem %s14, 8
  %v724 = vld [vmem:[%s723] sm:$0xff]
  %v726 = vsel %vm390, %v718, 0
  %v729 = vsel %vm390, %v721, 0
  %731 = vmatpush.msra.mxu0 0.0
  %732 = vmatpush.msra.mxu0 0.0
  %733 = vmatpush.msra.mxu0 0.0
  %734 = vmatpush.msra.mxu0 0.0
  %735 = vmatpush.msra.mxu0 0.0
  %736 = vmatpush.msra.mxu0 0.0
  %737 = vmatpush.msra.mxu0 0.0
  %738 = vmatpush.msra.mxu0 0.0
  %739 = vmatpush.msra.mxu0 0.0
  %740 = vmatpush.msra.mxu0 0.0
  %741 = vmatpush.msra.mxu0 0.0
  %742 = vmatpush.msra.mxu0 0.0
  %743 = vmatpush.msra.mxu0 0.0
  %744 = vmatpush.msra.mxu0 0.0
  %745 = vmatpush.msra.mxu0 0.0
  %746 = vmatpush.msra.mxu0 %v724
  %747 = vmatmul.f32.gmra.mxu0 %v726
  %v748 = vpop.f32.mrf.mxu0
  %v749 = vadd.f32 0.0, %v748
  %750 = vmatmul.f32.gmra.mxu0 %v729
  %v751 = vpop.f32.mrf.mxu0
  %v752 = vadd.f32 0.0, %v751
  %753 = vdwg.mxu0
  %v755 = vsel %vm390, %v502, 0
  %v758 = vsel %vm390, %v505, 0
  %760 = vmatpush.msra.mxu0 0.0
  %761 = vmatpush.msra.mxu0 0.0
  %762 = vmatpush.msra.mxu0 0.0
  %763 = vmatpush.msra.mxu0 0.0
  %764 = vmatpush.msra.mxu0 0.0
  %765 = vmatpush.msra.mxu0 0.0
  %766 = vmatpush.msra.mxu0 0.0
  %767 = vmatpush.msra.mxu0 0.0
  %768 = vmatpush.msra.mxu0 0.0
  %769 = vmatpush.msra.mxu0 0.0
  %770 = vmatpush.msra.mxu0 0.0
  %771 = vmatpush.msra.mxu0 0.0
  %772 = vmatpush.msra.mxu0 0.0
  %773 = vmatpush.msra.mxu0 0.0
  %774 = vmatpush.msra.mxu0 0.0
  %775 = vmatpush.msra.mxu0 %v507
  %776 = vmatmul.f32.gmra.mxu0 %v755
  %v777 = vpop.f32.mrf.mxu0
  %v778 = vadd.f32 %v749, %v777
  %779 = vmatmul.f32.gmra.mxu0 %v758
  %v780 = vpop.f32.mrf.mxu0
  %v781 = vadd.f32 %v752, %v780
  %782 = vdwg.mxu0
  %s783 = scalar_lea.vmem %s10, 64
  %v784 = vld [vmem:[%s783] sm:$0xff]
  %v785 = vld [vmem:[%s783 + $0x8] sm:$0xff]
  %v786 = vld [vmem:[%s783 + $0x10] sm:$0xff]
  %v787 = vld [vmem:[%s783 + $0x18] sm:$0xff]
  %s788 = scalar_lea.vmem %s13, 2
  %v789 = vld [vmem:[%s788] sm:$0x1]
  %v791 = vperm.slane %v789, 0
  %793 = vmatpush.msra.mxu0 0.0
  %794 = vmatpush.msra.mxu0 0.0
  %795 = vmatpush.msra.mxu0 0.0
  %796 = vmatpush.msra.mxu0 0.0
  %797 = vmatpush.msra.mxu0 0.0
  %798 = vmatpush.msra.mxu0 0.0
  %799 = vmatpush.msra.mxu0 0.0
  %800 = vmatpush.msra.mxu0 0.0
  %801 = vmatpush.msra.mxu0 0.0
  %802 = vmatpush.msra.mxu0 0.0
  %803 = vmatpush.msra.mxu0 0.0
  %804 = vmatpush.msra.mxu0 0.0
  %805 = vmatpush.msra.mxu0 %v787
  %806 = vmatpush.msra.mxu0 %v786
  %807 = vmatpush.msra.mxu0 %v785
  %808 = vmatpush.msra.mxu0 %v784
  %809 = vmatmul.f32.gmra.mxu0 %v298
  %v810 = vpop.f32.mrf.mxu0
  %v811 = vadd.f32 %v791, %v810
  %812 = vmatmul.f32.gmra.mxu0 %v301
  %v813 = vpop.f32.mrf.mxu0
  %v814 = vadd.f32 %v791, %v813
  %815 = vdwg.mxu0
  %s816 = scalar_lea.vmem %s11, 64
  %v817 = vld [vmem:[%s816] sm:$0xff]
  %v818 = vld [vmem:[%s816 + $0x8] sm:$0xff]
  %v819 = vld [vmem:[%s816 + $0x10] sm:$0xff]
  %v820 = vld [vmem:[%s816 + $0x18] sm:$0xff]
  %s821 = scalar_lea.vmem %s13, 6
  %v822 = vld [vmem:[%s821] sm:$0x1]
  %v824 = vperm.slane %v822, 0
  %826 = vmatpush.msra.mxu0 0.0
  %827 = vmatpush.msra.mxu0 0.0
  %828 = vmatpush.msra.mxu0 0.0
  %829 = vmatpush.msra.mxu0 0.0
  %830 = vmatpush.msra.mxu0 0.0
  %831 = vmatpush.msra.mxu0 0.0
  %832 = vmatpush.msra.mxu0 0.0
  %833 = vmatpush.msra.mxu0 0.0
  %834 = vmatpush.msra.mxu0 0.0
  %835 = vmatpush.msra.mxu0 0.0
  %836 = vmatpush.msra.mxu0 0.0
  %837 = vmatpush.msra.mxu0 0.0
  %838 = vmatpush.msra.mxu0 %v820
  %839 = vmatpush.msra.mxu0 %v819
  %840 = vmatpush.msra.mxu0 %v818
  %841 = vmatpush.msra.mxu0 %v817
  %842 = vmatmul.f32.gmra.mxu0 %v298
  %v843 = vpop.f32.mrf.mxu0
  %v844 = vadd.f32 %v824, %v843
  %845 = vmatmul.f32.gmra.mxu0 %v301
  %v846 = vpop.f32.mrf.mxu0
  %v847 = vadd.f32 %v824, %v846
  %848 = vdwg.mxu0
  %s849 = scalar_lea.vmem %s12, 64
  %v850 = vld [vmem:[%s849] sm:$0xff]
  %v851 = vld [vmem:[%s849 + $0x8] sm:$0xff]
  %v852 = vld [vmem:[%s849 + $0x10] sm:$0xff]
  %v853 = vld [vmem:[%s849 + $0x18] sm:$0xff]
  %s854 = scalar_lea.vmem %s13, 10
  %v855 = vld [vmem:[%s854] sm:$0x1]
  %v857 = vperm.slane %v855, 0
  %859 = vmatpush.msra.mxu0 0.0
  %860 = vmatpush.msra.mxu0 0.0
  %861 = vmatpush.msra.mxu0 0.0
  %862 = vmatpush.msra.mxu0 0.0
  %863 = vmatpush.msra.mxu0 0.0
  %864 = vmatpush.msra.mxu0 0.0
  %865 = vmatpush.msra.mxu0 0.0
  %866 = vmatpush.msra.mxu0 0.0
  %867 = vmatpush.msra.mxu0 0.0
  %868 = vmatpush.msra.mxu0 0.0
  %869 = vmatpush.msra.mxu0 0.0
  %870 = vmatpush.msra.mxu0 0.0
  %871 = vmatpush.msra.mxu0 %v853
  %872 = vmatpush.msra.mxu0 %v852
  %873 = vmatpush.msra.mxu0 %v851
  %874 = vmatpush.msra.mxu0 %v850
  %875 = vmatmul.f32.gmra.mxu0 %v298
  %v876 = vpop.f32.mrf.mxu0
  %v877 = vadd.f32 %v857, %v876
  %878 = vmatmul.f32.gmra.mxu0 %v301
  %v879 = vpop.f32.mrf.mxu0
  %v880 = vadd.f32 %v857, %v879
  %881 = vdwg.mxu0
  %v883 = vsel %vm390, %v811, 0
  %v886 = vsel %vm390, %v814, 0
  %v889 = vsel %vm390, %v844, 0
  %v892 = vsel %vm390, %v847, 0
  %894 = vmatpush.xpose.msra.mxu0 0.0
  %895 = vmatpush.xpose.msra.mxu0 0.0
  %896 = vmatpush.xpose.msra.mxu0 0.0
  %897 = vmatpush.xpose.msra.mxu0 0.0
  %898 = vmatpush.xpose.msra.mxu0 0.0
  %899 = vmatpush.xpose.msra.mxu0 0.0
  %900 = vmatpush.xpose.msra.mxu0 0.0
  %901 = vmatpush.xpose.msra.mxu0 0.0
  %902 = vmatpush.xpose.msra.mxu0 0.0
  %903 = vmatpush.xpose.msra.mxu0 0.0
  %904 = vmatpush.xpose.msra.mxu0 0.0
  %905 = vmatpush.xpose.msra.mxu0 0.0
  %906 = vmatpush.xpose.msra.mxu0 0.0
  %907 = vmatpush.xpose.msra.mxu0 0.0
  %908 = vmatpush.xpose.msra.mxu0 %v892
  %909 = vmatpush.xpose.msra.mxu0 %v889
  %910 = vmatmul.f32.gmra.mxu0 %v883
  %v911 = vpop.f32.mrf.mxu0
  %v912 = vadd.f32 0.0, %v911
  %913 = vmatmul.f32.gmra.mxu0 %v886
  %v914 = vpop.f32.mrf.mxu0
  %v915 = vadd.f32 0.0, %v914
  %916 = vdwg.mxu0
  %v917 = vmul.f32 %v912, 0.35355338
  %v918 = vmul.f32 %v915, 0.35355338
  %v919 = vadd.f32 %v917, %v76
  %v920 = vadd.f32 %v918, %v77
  %v921 = vsel %vm81, %v919, -inf
  %922 = vmax.xlane.f32.xlu0 %v921
  %v923 = vpop.xlane.xlu0 %922
  %v924 = vsel %vm81, %v920, -inf
  %925 = vmax.xlane.f32.xlu0 %v924
  %v926 = vpop.xlane.xlu0 %925
  %v927 = vsub.f32 %v919, %v923
  %v928 = vsub.f32 %v920, %v926
  %v929 = vmul.f32 %v927, 1.442695
  %v930 = vpow.pop %v929
  %v931 = vmul.f32 %v928, 1.442695
  %v932 = vpow.pop %v931
  %v933 = vsel %vm81, %v930, 0.0
  %934 = vadd.xlane.f32.xlu0 %v933
  %v935 = vpop.xlane.xlu0 %934
  %v936 = vsel %vm81, %v932, 0.0
  %937 = vadd.xlane.f32.xlu0 %v936
  %v938 = vpop.xlane.xlu0 %937
  %v939 = vrcp.pop %v935
  %v940 = vmul.f32 %v935, %v939
  %v941 = vsub.f32 1.0, %v940
  %v942 = vmul.f32 %v939, %v941
  %v943 = vadd.f32 %v939, %v942
  %vm944 = vweird.f32 %v935
  %vm945 = vweird.f32 %v939
  %vm946 = vmor %vm944, %vm945
  %v947 = vsel %vm946, %v939, %v943
  %v948 = vand.u32 2147483647, %v935
  %vm949 = vcmp.eq.f32.partialorder %v948, 8.507059e+37
  %v950 = vand.u32 %v935, 2147483648
  %v951 = vor.u32 1.1754944e-38, %v950
  %v952 = vsel %vm949, %v951, %v947
  %v953 = vmul.f32 %v930, %v952
  %v954 = vrcp.pop %v938
  %v955 = vmul.f32 %v938, %v954
  %v956 = vsub.f32 1.0, %v955
  %v957 = vmul.f32 %v954, %v956
  %v958 = vadd.f32 %v954, %v957
  %vm959 = vweird.f32 %v938
  %vm960 = vweird.f32 %v954
  %vm961 = vmor %vm959, %vm960
  %v962 = vsel %vm961, %v954, %v958
  %v963 = vand.u32 2147483647, %v938
  %vm964 = vcmp.eq.f32.partialorder %v963, 8.507059e+37
  %v965 = vand.u32 %v938, 2147483648
  %v966 = vor.u32 1.1754944e-38, %v965
  %v967 = vsel %vm964, %v966, %v962
  %v968 = vmul.f32 %v932, %v967
  %v970 = vsel %vm81, %v953, 0
  %v973 = vsel %vm81, %v968, 0
  %975 = vmatpush.msra.mxu0 0.0
  %976 = vmatpush.msra.mxu0 0.0
  %977 = vmatpush.msra.mxu0 0.0
  %978 = vmatpush.msra.mxu0 0.0
  %979 = vmatpush.msra.mxu0 0.0
  %980 = vmatpush.msra.mxu0 0.0
  %981 = vmatpush.msra.mxu0 0.0
  %982 = vmatpush.msra.mxu0 0.0
  %983 = vmatpush.msra.mxu0 0.0
  %984 = vmatpush.msra.mxu0 0.0
  %985 = vmatpush.msra.mxu0 0.0
  %986 = vmatpush.msra.mxu0 0.0
  %987 = vmatpush.msra.mxu0 0.0
  %988 = vmatpush.msra.mxu0 0.0
  %989 = vmatpush.msra.mxu0 %v880
  %990 = vmatpush.msra.mxu0 %v877
  %991 = vmatmul.f32.gmra.mxu0 %v970
  %v992 = vpop.f32.mrf.mxu0
  %v993 = vadd.f32 0.0, %v992
  %994 = vmatmul.f32.gmra.mxu0 %v973
  %v995 = vpop.f32.mrf.mxu0
  %v996 = vadd.f32 0.0, %v995
  %997 = vdwg.mxu0
  %s998 = scalar_lea.vmem %s14, 16
  %v999 = vld [vmem:[%s998] sm:$0xff]
  %v1001 = vsel %vm390, %v993, 0
  %v1004 = vsel %vm390, %v996, 0
  %1006 = vmatpush.msra.mxu0 0.0
  %1007 = vmatpush.msra.mxu0 0.0
  %1008 = vmatpush.msra.mxu0 0.0
  %1009 = vmatpush.msra.mxu0 0.0
  %1010 = vmatpush.msra.mxu0 0.0
  %1011 = vmatpush.msra.mxu0 0.0
  %1012 = vmatpush.msra.mxu0 0.0
  %1013 = vmatpush.msra.mxu0 0.0
  %1014 = vmatpush.msra.mxu0 0.0
  %1015 = vmatpush.msra.mxu0 0.0
  %1016 = vmatpush.msra.mxu0 0.0
  %1017 = vmatpush.msra.mxu0 0.0
  %1018 = vmatpush.msra.mxu0 0.0
  %1019 = vmatpush.msra.mxu0 0.0
  %1020 = vmatpush.msra.mxu0 0.0
  %1021 = vmatpush.msra.mxu0 %v999
  %1022 = vmatmul.f32.gmra.mxu0 %v1001
  %v1023 = vpop.f32.mrf.mxu0
  %v1024 = vadd.f32 0.0, %v1023
  %1025 = vmatmul.f32.gmra.mxu0 %v1004
  %v1026 = vpop.f32.mrf.mxu0
  %v1027 = vadd.f32 0.0, %v1026
  %1028 = vdwg.mxu0
  %v1029 = vadd.f32 %v778, %v1024
  %v1030 = vadd.f32 %v781, %v1027
  %s1031 = scalar_lea.vmem %s10, 96
  %v1032 = vld [vmem:[%s1031] sm:$0xff]
  %v1033 = vld [vmem:[%s1031 + $0x8] sm:$0xff]
  %v1034 = vld [vmem:[%s1031 + $0x10] sm:$0xff]
  %v1035 = vld [vmem:[%s1031 + $0x18] sm:$0xff]
  %s1036 = scalar_lea.vmem %s13, 3
  %v1037 = vld [vmem:[%s1036] sm:$0x1]
  %v1039 = vperm.slane %v1037, 0
  %1041 = vmatpush.msra.mxu0 0.0
  %1042 = vmatpush.msra.mxu0 0.0
  %1043 = vmatpush.msra.mxu0 0.0
  %1044 = vmatpush.msra.mxu0 0.0
  %1045 = vmatpush.msra.mxu0 0.0
  %1046 = vmatpush.msra.mxu0 0.0
  %1047 = vmatpush.msra.mxu0 0.0
  %1048 = vmatpush.msra.mxu0 0.0
  %1049 = vmatpush.msra.mxu0 0.0
  %1050 = vmatpush.msra.mxu0 0.0
  %1051 = vmatpush.msra.mxu0 0.0
  %1052 = vmatpush.msra.mxu0 0.0
  %1053 = vmatpush.msra.mxu0 %v1035
  %1054 = vmatpush.msra.mxu0 %v1034
  %1055 = vmatpush.msra.mxu0 %v1033
  %1056 = vmatpush.msra.mxu0 %v1032
  %1057 = vmatmul.f32.gmra.mxu0 %v298
  %v1058 = vpop.f32.mrf.mxu0
  %v1059 = vadd.f32 %v1039, %v1058
  %1060 = vmatmul.f32.gmra.mxu0 %v301
  %v1061 = vpop.f32.mrf.mxu0
  %v1062 = vadd.f32 %v1039, %v1061
  %1063 = vdwg.mxu0
  %s1064 = scalar_lea.vmem %s11, 96
  %v1065 = vld [vmem:[%s1064] sm:$0xff]
  %v1066 = vld [vmem:[%s1064 + $0x8] sm:$0xff]
  %v1067 = vld [vmem:[%s1064 + $0x10] sm:$0xff]
  %v1068 = vld [vmem:[%s1064 + $0x18] sm:$0xff]
  %s1069 = scalar_lea.vmem %s13, 7
  %v1070 = vld [vmem:[%s1069] sm:$0x1]
  %v1072 = vperm.slane %v1070, 0
  %1074 = vmatpush.msra.mxu0 0.0
  %1075 = vmatpush.msra.mxu0 0.0
  %1076 = vmatpush.msra.mxu0 0.0
  %1077 = vmatpush.msra.mxu0 0.0
  %1078 = vmatpush.msra.mxu0 0.0
  %1079 = vmatpush.msra.mxu0 0.0
  %1080 = vmatpush.msra.mxu0 0.0
  %1081 = vmatpush.msra.mxu0 0.0
  %1082 = vmatpush.msra.mxu0 0.0
  %1083 = vmatpush.msra.mxu0 0.0
  %1084 = vmatpush.msra.mxu0 0.0
  %1085 = vmatpush.msra.mxu0 0.0
  %1086 = vmatpush.msra.mxu0 %v1068
  %1087 = vmatpush.msra.mxu0 %v1067
  %1088 = vmatpush.msra.mxu0 %v1066
  %1089 = vmatpush.msra.mxu0 %v1065
  %1090 = vmatmul.f32.gmra.mxu0 %v298
  %v1091 = vpop.f32.mrf.mxu0
  %v1092 = vadd.f32 %v1072, %v1091
  %1093 = vmatmul.f32.gmra.mxu0 %v301
  %v1094 = vpop.f32.mrf.mxu0
  %v1095 = vadd.f32 %v1072, %v1094
  %1096 = vdwg.mxu0
  %s1097 = scalar_lea.vmem %s12, 96
  %v1098 = vld [vmem:[%s1097] sm:$0xff]
  %v1099 = vld [vmem:[%s1097 + $0x8] sm:$0xff]
  %v1100 = vld [vmem:[%s1097 + $0x10] sm:$0xff]
  %v1101 = vld [vmem:[%s1097 + $0x18] sm:$0xff]
  %s1102 = scalar_lea.vmem %s13, 11
  %v1103 = vld [vmem:[%s1102] sm:$0x1]
  %v1105 = vperm.slane %v1103, 0
  %1107 = vmatpush.msra.mxu0 0.0
  %1108 = vmatpush.msra.mxu0 0.0
  %1109 = vmatpush.msra.mxu0 0.0
  %1110 = vmatpush.msra.mxu0 0.0
  %1111 = vmatpush.msra.mxu0 0.0
  %1112 = vmatpush.msra.mxu0 0.0
  %1113 = vmatpush.msra.mxu0 0.0
  %1114 = vmatpush.msra.mxu0 0.0
  %1115 = vmatpush.msra.mxu0 0.0
  %1116 = vmatpush.msra.mxu0 0.0
  %1117 = vmatpush.msra.mxu0 0.0
  %1118 = vmatpush.msra.mxu0 0.0
  %1119 = vmatpush.msra.mxu0 %v1101
  %1120 = vmatpush.msra.mxu0 %v1100
  %1121 = vmatpush.msra.mxu0 %v1099
  %1122 = vmatpush.msra.mxu0 %v1098
  %1123 = vmatmul.f32.gmra.mxu0 %v298
  %v1124 = vpop.f32.mrf.mxu0
  %v1125 = vadd.f32 %v1105, %v1124
  %1126 = vmatmul.f32.gmra.mxu0 %v301
  %v1127 = vpop.f32.mrf.mxu0
  %v1128 = vadd.f32 %v1105, %v1127
  %1129 = vdwg.mxu0
  %v1131 = vsel %vm390, %v1059, 0
  %v1134 = vsel %vm390, %v1062, 0
  %v1137 = vsel %vm390, %v1092, 0
  %v1140 = vsel %vm390, %v1095, 0
  %1142 = vmatpush.xpose.msra.mxu0 0.0
  %1143 = vmatpush.xpose.msra.mxu0 0.0
  %1144 = vmatpush.xpose.msra.mxu0 0.0
  %1145 = vmatpush.xpose.msra.mxu0 0.0
  %1146 = vmatpush.xpose.msra.mxu0 0.0
  %1147 = vmatpush.xpose.msra.mxu0 0.0
  %1148 = vmatpush.xpose.msra.mxu0 0.0
  %1149 = vmatpush.xpose.msra.mxu0 0.0
  %1150 = vmatpush.xpose.msra.mxu0 0.0
  %1151 = vmatpush.xpose.msra.mxu0 0.0
  %1152 = vmatpush.xpose.msra.mxu0 0.0
  %1153 = vmatpush.xpose.msra.mxu0 0.0
  %1154 = vmatpush.xpose.msra.mxu0 0.0
  %1155 = vmatpush.xpose.msra.mxu0 0.0
  %1156 = vmatpush.xpose.msra.mxu0 %v1140
  %1157 = vmatpush.xpose.msra.mxu0 %v1137
  %1158 = vmatmul.f32.gmra.mxu0 %v1131
  %v1159 = vpop.f32.mrf.mxu0
  %v1160 = vadd.f32 0.0, %v1159
  %1161 = vmatmul.f32.gmra.mxu0 %v1134
  %v1162 = vpop.f32.mrf.mxu0
  %v1163 = vadd.f32 0.0, %v1162
  %1164 = vdwg.mxu0
  %v1165 = vmul.f32 %v1160, 0.35355338
  %v1166 = vmul.f32 %v1163, 0.35355338
  %v1167 = vadd.f32 %v1165, %v76
  %v1168 = vadd.f32 %v1166, %v77
  %v1169 = vsel %vm81, %v1167, -inf
  %1170 = vmax.xlane.f32.xlu0 %v1169
  %v1171 = vpop.xlane.xlu0 %1170
  %v1172 = vsel %vm81, %v1168, -inf
  %1173 = vmax.xlane.f32.xlu0 %v1172
  %v1174 = vpop.xlane.xlu0 %1173
  %v1175 = vsub.f32 %v1167, %v1171
  %v1176 = vsub.f32 %v1168, %v1174
  %v1177 = vmul.f32 %v1175, 1.442695
  %v1178 = vpow.pop %v1177
  %v1179 = vmul.f32 %v1176, 1.442695
  %v1180 = vpow.pop %v1179
  %v1181 = vsel %vm81, %v1178, 0.0
  %1182 = vadd.xlane.f32.xlu0 %v1181
  %v1183 = vpop.xlane.xlu0 %1182
  %v1184 = vsel %vm81, %v1180, 0.0
  %1185 = vadd.xlane.f32.xlu0 %v1184
  %v1186 = vpop.xlane.xlu0 %1185
  %v1187 = vrcp.pop %v1183
  %v1188 = vmul.f32 %v1183, %v1187
  %v1189 = vsub.f32 1.0, %v1188
  %v1190 = vmul.f32 %v1187, %v1189
  %v1191 = vadd.f32 %v1187, %v1190
  %vm1192 = vweird.f32 %v1183
  %vm1193 = vweird.f32 %v1187
  %vm1194 = vmor %vm1192, %vm1193
  %v1195 = vsel %vm1194, %v1187, %v1191
  %v1196 = vand.u32 2147483647, %v1183
  %vm1197 = vcmp.eq.f32.partialorder %v1196, 8.507059e+37
  %v1198 = vand.u32 %v1183, 2147483648
  %v1199 = vor.u32 1.1754944e-38, %v1198
  %v1200 = vsel %vm1197, %v1199, %v1195
  %v1201 = vmul.f32 %v1178, %v1200
  %v1202 = vrcp.pop %v1186
  %v1203 = vmul.f32 %v1186, %v1202
  %v1204 = vsub.f32 1.0, %v1203
  %v1205 = vmul.f32 %v1202, %v1204
  %v1206 = vadd.f32 %v1202, %v1205
  %vm1207 = vweird.f32 %v1186
  %vm1208 = vweird.f32 %v1202
  %vm1209 = vmor %vm1207, %vm1208
  %v1210 = vsel %vm1209, %v1202, %v1206
  %v1211 = vand.u32 2147483647, %v1186
  %vm1212 = vcmp.eq.f32.partialorder %v1211, 8.507059e+37
  %v1213 = vand.u32 %v1186, 2147483648
  %v1214 = vor.u32 1.1754944e-38, %v1213
  %v1215 = vsel %vm1212, %v1214, %v1210
  %v1216 = vmul.f32 %v1180, %v1215
  %v1218 = vsel %vm81, %v1201, 0
  %v1221 = vsel %vm81, %v1216, 0
  %1223 = vmatpush.msra.mxu0 0.0
  %1224 = vmatpush.msra.mxu0 0.0
  %1225 = vmatpush.msra.mxu0 0.0
  %1226 = vmatpush.msra.mxu0 0.0
  %1227 = vmatpush.msra.mxu0 0.0
  %1228 = vmatpush.msra.mxu0 0.0
  %1229 = vmatpush.msra.mxu0 0.0
  %1230 = vmatpush.msra.mxu0 0.0
  %1231 = vmatpush.msra.mxu0 0.0
  %1232 = vmatpush.msra.mxu0 0.0
  %1233 = vmatpush.msra.mxu0 0.0
  %1234 = vmatpush.msra.mxu0 0.0
  %1235 = vmatpush.msra.mxu0 0.0
  %1236 = vmatpush.msra.mxu0 0.0
  %1237 = vmatpush.msra.mxu0 %v1128
  %1238 = vmatpush.msra.mxu0 %v1125
  %1239 = vmatmul.f32.gmra.mxu0 %v1218
  %v1240 = vpop.f32.mrf.mxu0
  %v1241 = vadd.f32 0.0, %v1240
  %1242 = vmatmul.f32.gmra.mxu0 %v1221
  %v1243 = vpop.f32.mrf.mxu0
  %v1244 = vadd.f32 0.0, %v1243
  %1245 = vdwg.mxu0
  %s1246 = scalar_lea.vmem %s14, 24
  %v1247 = vld [vmem:[%s1246] sm:$0xff]
  %v1249 = vsel %vm390, %v1241, 0
  %v1252 = vsel %vm390, %v1244, 0
  %1254 = vmatpush.msra.mxu0 0.0
  %1255 = vmatpush.msra.mxu0 0.0
  %1256 = vmatpush.msra.mxu0 0.0
  %1257 = vmatpush.msra.mxu0 0.0
  %1258 = vmatpush.msra.mxu0 0.0
  %1259 = vmatpush.msra.mxu0 0.0
  %1260 = vmatpush.msra.mxu0 0.0
  %1261 = vmatpush.msra.mxu0 0.0
  %1262 = vmatpush.msra.mxu0 0.0
  %1263 = vmatpush.msra.mxu0 0.0
  %1264 = vmatpush.msra.mxu0 0.0
  %1265 = vmatpush.msra.mxu0 0.0
  %1266 = vmatpush.msra.mxu0 0.0
  %1267 = vmatpush.msra.mxu0 0.0
  %1268 = vmatpush.msra.mxu0 0.0
  %1269 = vmatpush.msra.mxu0 %v1247
  %1270 = vmatmul.f32.gmra.mxu0 %v1249
  %v1271 = vpop.f32.mrf.mxu0
  %v1272 = vadd.f32 0.0, %v1271
  %1273 = vmatmul.f32.gmra.mxu0 %v1252
  %v1274 = vpop.f32.mrf.mxu0
  %v1275 = vadd.f32 0.0, %v1274
  %1276 = vdwg.mxu0
  %v1277 = vadd.f32 %v1029, %v1272
  %v1278 = vadd.f32 %v1030, %v1275
  %v1279 = vadd.f32 %v178, %v1277
  %v1280 = vadd.f32 %v179, %v1278
  %v1282 = vperm.slane %v216, 0
  %v1284 = vadd.f32 %v1279, %v1282
  %v1285 = vadd.f32 %v1280, %v1282
  %v1286 = vld [vmem:[%s15] sm:$0xff]
  %v1287 = vld [vmem:[%s15 + $0x8] sm:$0xff]
  %v1288 = vld [vmem:[%s15 + $0x10] sm:$0xff]
  %v1289 = vld [vmem:[%s15 + $0x18] sm:$0xff]
  %v1291 = vperm.slane %v218, 0
  %v1294 = vsel %vm227, %v210, 0
  %1296 = vmatpush.msra.mxu0 0.0
  %1297 = vmatpush.msra.mxu0 0.0
  %1298 = vmatpush.msra.mxu0 0.0
  %1299 = vmatpush.msra.mxu0 0.0
  %1300 = vmatpush.msra.mxu0 0.0
  %1301 = vmatpush.msra.mxu0 0.0
  %1302 = vmatpush.msra.mxu0 0.0
  %1303 = vmatpush.msra.mxu0 0.0
  %1304 = vmatpush.msra.mxu0 0.0
  %1305 = vmatpush.msra.mxu0 0.0
  %1306 = vmatpush.msra.mxu0 0.0
  %1307 = vmatpush.msra.mxu0 0.0
  %1308 = vmatpush.msra.mxu0 %v1289
  %1309 = vmatpush.msra.mxu0 %v1288
  %1310 = vmatpush.msra.mxu0 %v1287
  %1311 = vmatpush.msra.mxu0 %v1286
  %1312 = vmatmul.f32.gmra.mxu0 %v1294
  %v1313 = vpop.f32.mrf.mxu0
  %v1314 = vadd.f32 %v1291, %v1313
  %1315 = vdwg.mxu0
  %s1316 = scalar_lea.vmem %s15, 32
  %v1317 = vld [vmem:[%s1316] sm:$0xff]
  %v1318 = vld [vmem:[%s1316 + $0x8] sm:$0xff]
  %v1319 = vld [vmem:[%s1316 + $0x10] sm:$0xff]
  %v1320 = vld [vmem:[%s1316 + $0x18] sm:$0xff]
  %v1322 = vperm.slane %v220, 0
  %v1325 = vsel %vm227, %v1314, 0
  %1327 = vmatpush.msra.mxu0 0.0
  %1328 = vmatpush.msra.mxu0 0.0
  %1329 = vmatpush.msra.mxu0 0.0
  %1330 = vmatpush.msra.mxu0 0.0
  %1331 = vmatpush.msra.mxu0 0.0
  %1332 = vmatpush.msra.mxu0 0.0
  %1333 = vmatpush.msra.mxu0 0.0
  %1334 = vmatpush.msra.mxu0 0.0
  %1335 = vmatpush.msra.mxu0 0.0
  %1336 = vmatpush.msra.mxu0 0.0
  %1337 = vmatpush.msra.mxu0 0.0
  %1338 = vmatpush.msra.mxu0 0.0
  %1339 = vmatpush.msra.mxu0 %v1320
  %1340 = vmatpush.msra.mxu0 %v1319
  %1341 = vmatpush.msra.mxu0 %v1318
  %1342 = vmatpush.msra.mxu0 %v1317
  %1343 = vmatmul.f32.gmra.mxu0 %v1325
  %v1344 = vpop.f32.mrf.mxu0
  %v1345 = vadd.f32 %v1322, %v1344
  %1346 = vdwg.mxu0
  %v1348 = vsel %vm115, %v1345, 0
  %1350 = vmatpush.msra.mxu0 0.0
  %1351 = vmatpush.msra.mxu0 0.0
  %1352 = vmatpush.msra.mxu0 0.0
  %1353 = vmatpush.msra.mxu0 0.0
  %1354 = vmatpush.msra.mxu0 0.0
  %1355 = vmatpush.msra.mxu0 0.0
  %1356 = vmatpush.msra.mxu0 0.0
  %1357 = vmatpush.msra.mxu0 0.0
  %1358 = vmatpush.msra.mxu0 0.0
  %1359 = vmatpush.msra.mxu0 0.0
  %1360 = vmatpush.msra.mxu0 0.0
  %1361 = vmatpush.msra.mxu0 0.0
  %1362 = vmatpush.msra.mxu0 0.0
  %1363 = vmatpush.msra.mxu0 0.0
  %1364 = vmatpush.msra.mxu0 0.0
  %1365 = vmatpush.msra.mxu0 %v1348
  %1366 = vmatmul.f32.gmra.mxu0 %v110
  %v1367 = vpop.f32.mrf.mxu0
  %v1368 = vadd.f32 0.0, %v1367
  %1369 = vmatmul.f32.gmra.mxu0 %v113
  %v1370 = vpop.f32.mrf.mxu0
  %v1371 = vadd.f32 0.0, %v1370
  %1372 = vdwg.mxu0
  %v1373 = vadd.f32 %v1284, %v1368
  %v1374 = vadd.f32 %v1285, %v1371
  %v1375 = vsel %vm227, %v1373, 0.0
  %1376 = vadd.xlane.f32.xlu0 %v1375
  %v1377 = vpop.xlane.xlu0 %1376
  %v1378 = vsel %vm227, %v1374, 0.0
  %1379 = vadd.xlane.f32.xlu0 %v1378
  %v1380 = vpop.xlane.xlu0 %1379
  %v1381 = vmul.f32 %v1377, %v240
  %v1382 = vmul.f32 %v1380, %v240
  %v1383 = vsub.f32 %v1373, %v1381
  %v1384 = vsub.f32 %v1374, %v1382
  %v1385 = vmul.f32 %v1383, %v1383
  %v1386 = vmul.f32 %v1384, %v1384
  %v1387 = vsel %vm227, %v1385, 0.0
  %1388 = vadd.xlane.f32.xlu0 %v1387
  %v1389 = vpop.xlane.xlu0 %1388
  %v1390 = vsel %vm227, %v1386, 0.0
  %1391 = vadd.xlane.f32.xlu0 %v1390
  %v1392 = vpop.xlane.xlu0 %1391
  %v1393 = vmul.f32 %v1389, %v240
  %v1394 = vmul.f32 %v1392, %v240
  %v1395 = vadd.f32 %v1393, 1e-05
  %v1396 = vadd.f32 %v1394, 1e-05
  %v1397 = vrsqrt.pop %v1395
  %v1398 = vmul.f32 %v1397, %v1395
  %v1399 = vmul.f32 %v1398, %v1397
  %v1400 = vmul.f32 0.5, %v1399
  %v1401 = vsub.f32 1.5, %v1400
  %v1402 = vmul.f32 %v1397, %v1401
  %vm1403 = vweird.f32 %v1395
  %vm1404 = vweird.f32 %v1397
  %vm1405 = vmor %vm1403, %vm1404
  %v1406 = vsel %vm1405, %v1397, %v1402
  %v1407 = vrsqrt.pop %v1396
  %v1408 = vmul.f32 %v1407, %v1396
  %v1409 = vmul.f32 %v1408, %v1407
  %v1410 = vmul.f32 0.5, %v1409
  %v1411 = vsub.f32 1.5, %v1410
  %v1412 = vmul.f32 %v1407, %v1411
  %vm1413 = vweird.f32 %v1396
  %vm1414 = vweird.f32 %v1407
  %vm1415 = vmor %vm1413, %vm1414
  %v1416 = vsel %vm1415, %v1407, %v1412
  %v1417 = vmul.f32 %v1383, %v1406
  %v1418 = vmul.f32 %v1384, %v1416
  %v1420 = vperm.slane %v222, 0
  %v1422 = vmul.f32 %v1417, %v1420
  %v1423 = vmul.f32 %v1418, %v1420
  %v1425 = vperm.slane %v224, 0
  %v1427 = vadd.f32 %v1422, %v1425
  %v1428 = vadd.f32 %v1423, %v1425
  %v1429 = vld [vmem:[%s17] sm:$0xff]
  %v1430 = vld [vmem:[%s17 + $0x8] sm:$0xff]
  %v1431 = vld [vmem:[%s17 + $0x10] sm:$0xff]
  %v1432 = vld [vmem:[%s17 + $0x18] sm:$0xff]
  %v1433 = vld [vmem:[%s18] sm:$0x1]
  %v1435 = vperm.slane %v1433, 0
  %v1438 = vsel %vm227, %v1427, 0
  %v1441 = vsel %vm227, %v1428, 0
  %1443 = vmatpush.msra.mxu0 0.0
  %1444 = vmatpush.msra.mxu0 0.0
  %1445 = vmatpush.msra.mxu0 0.0
  %1446 = vmatpush.msra.mxu0 0.0
  %1447 = vmatpush.msra.mxu0 0.0
  %1448 = vmatpush.msra.mxu0 0.0
  %1449 = vmatpush.msra.mxu0 0.0
  %1450 = vmatpush.msra.mxu0 0.0
  %1451 = vmatpush.msra.mxu0 0.0
  %1452 = vmatpush.msra.mxu0 0.0
  %1453 = vmatpush.msra.mxu0 0.0
  %1454 = vmatpush.msra.mxu0 0.0
  %1455 = vmatpush.msra.mxu0 %v1432
  %1456 = vmatpush.msra.mxu0 %v1431
  %1457 = vmatpush.msra.mxu0 %v1430
  %1458 = vmatpush.msra.mxu0 %v1429
  %1459 = vmatmul.f32.gmra.mxu0 %v1438
  %v1460 = vpop.f32.mrf.mxu0
  %v1461 = vadd.f32 %v1435, %v1460
  %1462 = vmatmul.f32.gmra.mxu0 %v1441
  %v1463 = vpop.f32.mrf.mxu0
  %v1464 = vadd.f32 %v1435, %v1463
  %1465 = vdwg.mxu0
  %v1466 = vsub.f32 0.0, %v1461
  %v1467 = vsub.f32 0.0, %v1464
  %v1468 = vmul.f32 %v1466, 1.442695
  %v1469 = vpow.pop %v1468
  %v1470 = vmul.f32 %v1467, 1.442695
  %v1471 = vpow.pop %v1470
  %v1472 = vadd.f32 %v1469, 1.0
  %v1473 = vadd.f32 %v1471, 1.0
  %v1474 = vrcp.pop %v1472
  %v1475 = vrcp.pop %v1473
  %v1476 = vmul.f32 %v1461, %v1474
  %v1477 = vmul.f32 %v1464, %v1475
  %v1478 = vld [vmem:[%s19] sm:$0xff]
  %v1479 = vld [vmem:[%s19 + $0x8] sm:$0xff]
  %v1480 = vld [vmem:[%s19 + $0x10] sm:$0xff]
  %v1481 = vld [vmem:[%s19 + $0x18] sm:$0xff]
  %v1482 = vld [vmem:[%s19 + $0x20] sm:$0xff]
  %v1483 = vld [vmem:[%s19 + $0x28] sm:$0xff]
  %v1484 = vld [vmem:[%s19 + $0x30] sm:$0xff]
  %v1485 = vld [vmem:[%s19 + $0x38] sm:$0xff]
  %vm1486 = vcmask 523264
  %v1488 = vsel %vm1486, %v1476, 0
  %v1491 = vsel %vm1486, %v1477, 0
  %1493 = vmatpush.msra.mxu0 0.0
  %1494 = vmatpush.msra.mxu0 0.0
  %1495 = vmatpush.msra.mxu0 0.0
  %1496 = vmatpush.msra.mxu0 0.0
  %1497 = vmatpush.msra.mxu0 0.0
  %1498 = vmatpush.msra.mxu0 0.0
  %1499 = vmatpush.msra.mxu0 0.0
  %1500 = vmatpush.msra.mxu0 0.0
  %1501 = vmatpush.msra.mxu0 %v1485
  %1502 = vmatpush.msra.mxu0 %v1484
  %1503 = vmatpush.msra.mxu0 %v1483
  %1504 = vmatpush.msra.mxu0 %v1482
  %1505 = vmatpush.msra.mxu0 %v1481
  %1506 = vmatpush.msra.mxu0 %v1480
  %1507 = vmatpush.msra.mxu0 %v1479
  %1508 = vmatpush.msra.mxu0 %v1478
  %1509 = vmatmul.f32.gmra.mxu0 %v1488
  %v1510 = vpop.f32.mrf.mxu0
  %v1511 = vadd.f32 0.0, %v1510
  %1512 = vmatmul.f32.gmra.mxu0 %v1491
  %v1513 = vpop.f32.mrf.mxu0
  %v1514 = vadd.f32 0.0, %v1513
  %1515 = vdwg.mxu0
  %v1516 = vadd.f32 %v1373, %v1511
  %v1517 = vadd.f32 %v1374, %v1514
  %v1519 = vperm.slane %v226, 0
  %v1521 = vadd.f32 %v1516, %v1519
  %v1522 = vadd.f32 %v1517, %v1519
  %s1523 = scalar_lea.vmem %s16, 8
  %v1524 = vld [vmem:[%s1523] sm:$0x1]
  %s1525 = scalar_lea.vmem %s16, 9
  %v1526 = vld [vmem:[%s1525] sm:$0x1]
  %s1527 = scalar_lea.vmem %s16, 10
  %v1528 = vld [vmem:[%s1527] sm:$0x1]
  %s1529 = scalar_lea.vmem %s16, 11
  %v1530 = vld [vmem:[%s1529] sm:$0x1]
  %s1531 = scalar_lea.vmem %s16, 12
  %v1532 = vld [vmem:[%s1531] sm:$0x1]
  %s1533 = scalar_lea.vmem %s16, 13
  %v1534 = vld [vmem:[%s1533] sm:$0x1]
  %s1535 = scalar_lea.vmem %s16, 14
  %v1536 = vld [vmem:[%s1535] sm:$0x1]
  %s1537 = scalar_lea.vmem %s16, 15
  %v1538 = vld [vmem:[%s1537] sm:$0x1]
  %v1539 = vsel %vm227, %v1521, 0.0
  %1540 = vadd.xlane.f32.xlu0 %v1539
  %v1541 = vpop.xlane.xlu0 %1540
  %v1542 = vsel %vm227, %v1522, 0.0
  %1543 = vadd.xlane.f32.xlu0 %v1542
  %v1544 = vpop.xlane.xlu0 %1543
  %v1545 = vmul.f32 %v1541, %v240
  %v1546 = vmul.f32 %v1544, %v240
  %v1547 = vsub.f32 %v1521, %v1545
  %v1548 = vsub.f32 %v1522, %v1546
  %v1549 = vmul.f32 %v1547, %v1547
  %v1550 = vmul.f32 %v1548, %v1548
  %v1551 = vsel %vm227, %v1549, 0.0
  %1552 = vadd.xlane.f32.xlu0 %v1551
  %v1553 = vpop.xlane.xlu0 %1552
  %v1554 = vsel %vm227, %v1550, 0.0
  %1555 = vadd.xlane.f32.xlu0 %v1554
  %v1556 = vpop.xlane.xlu0 %1555
  %v1557 = vmul.f32 %v1553, %v240
  %v1558 = vmul.f32 %v1556, %v240
  %v1559 = vadd.f32 %v1557, 1e-05
  %v1560 = vadd.f32 %v1558, 1e-05
  %v1561 = vrsqrt.pop %v1559
  %v1562 = vmul.f32 %v1561, %v1559
  %v1563 = vmul.f32 %v1562, %v1561
  %v1564 = vmul.f32 0.5, %v1563
  %v1565 = vsub.f32 1.5, %v1564
  %v1566 = vmul.f32 %v1561, %v1565
  %vm1567 = vweird.f32 %v1559
  %vm1568 = vweird.f32 %v1561
  %vm1569 = vmor %vm1567, %vm1568
  %v1570 = vsel %vm1569, %v1561, %v1566
  %v1571 = vrsqrt.pop %v1560
  %v1572 = vmul.f32 %v1571, %v1560
  %v1573 = vmul.f32 %v1572, %v1571
  %v1574 = vmul.f32 0.5, %v1573
  %v1575 = vsub.f32 1.5, %v1574
  %v1576 = vmul.f32 %v1571, %v1575
  %vm1577 = vweird.f32 %v1560
  %vm1578 = vweird.f32 %v1571
  %vm1579 = vmor %vm1577, %vm1578
  %v1580 = vsel %vm1579, %v1571, %v1576
  %v1581 = vmul.f32 %v1547, %v1570
  %v1582 = vmul.f32 %v1548, %v1580
  %v1584 = vperm.slane %v1524, 0
  %v1586 = vmul.f32 %v1581, %v1584
  %v1587 = vmul.f32 %v1582, %v1584
  %v1589 = vperm.slane %v1526, 0
  %v1591 = vadd.f32 %v1586, %v1589
  %v1592 = vadd.f32 %v1587, %v1589
  %s1593 = scalar_lea.vmem %s10, 128
  %v1594 = vld [vmem:[%s1593] sm:$0xff]
  %v1595 = vld [vmem:[%s1593 + $0x8] sm:$0xff]
  %v1596 = vld [vmem:[%s1593 + $0x10] sm:$0xff]
  %v1597 = vld [vmem:[%s1593 + $0x18] sm:$0xff]
  %s1598 = scalar_lea.vmem %s13, 12
  %v1599 = vld [vmem:[%s1598] sm:$0x1]
  %v1601 = vperm.slane %v1599, 0
  %v1604 = vsel %vm227, %v1591, 0
  %v1607 = vsel %vm227, %v1592, 0
  %1609 = vmatpush.msra.mxu0 0.0
  %1610 = vmatpush.msra.mxu0 0.0
  %1611 = vmatpush.msra.mxu0 0.0
  %1612 = vmatpush.msra.mxu0 0.0
  %1613 = vmatpush.msra.mxu0 0.0
  %1614 = vmatpush.msra.mxu0 0.0
  %1615 = vmatpush.msra.mxu0 0.0
  %1616 = vmatpush.msra.mxu0 0.0
  %1617 = vmatpush.msra.mxu0 0.0
  %1618 = vmatpush.msra.mxu0 0.0
  %1619 = vmatpush.msra.mxu0 0.0
  %1620 = vmatpush.msra.mxu0 0.0
  %1621 = vmatpush.msra.mxu0 %v1597
  %1622 = vmatpush.msra.mxu0 %v1596
  %1623 = vmatpush.msra.mxu0 %v1595
  %1624 = vmatpush.msra.mxu0 %v1594
  %1625 = vmatmul.f32.gmra.mxu0 %v1604
  %v1626 = vpop.f32.mrf.mxu0
  %v1627 = vadd.f32 %v1601, %v1626
  %1628 = vmatmul.f32.gmra.mxu0 %v1607
  %v1629 = vpop.f32.mrf.mxu0
  %v1630 = vadd.f32 %v1601, %v1629
  %1631 = vdwg.mxu0
  %s1632 = scalar_lea.vmem %s11, 128
  %v1633 = vld [vmem:[%s1632] sm:$0xff]
  %v1634 = vld [vmem:[%s1632 + $0x8] sm:$0xff]
  %v1635 = vld [vmem:[%s1632 + $0x10] sm:$0xff]
  %v1636 = vld [vmem:[%s1632 + $0x18] sm:$0xff]
  %s1637 = scalar_lea.vmem %s13, 16
  %v1638 = vld [vmem:[%s1637] sm:$0x1]
  %v1640 = vperm.slane %v1638, 0
  %1642 = vmatpush.msra.mxu0 0.0
  %1643 = vmatpush.msra.mxu0 0.0
  %1644 = vmatpush.msra.mxu0 0.0
  %1645 = vmatpush.msra.mxu0 0.0
  %1646 = vmatpush.msra.mxu0 0.0
  %1647 = vmatpush.msra.mxu0 0.0
  %1648 = vmatpush.msra.mxu0 0.0
  %1649 = vmatpush.msra.mxu0 0.0
  %1650 = vmatpush.msra.mxu0 0.0
  %1651 = vmatpush.msra.mxu0 0.0
  %1652 = vmatpush.msra.mxu0 0.0
  %1653 = vmatpush.msra.mxu0 0.0
  %1654 = vmatpush.msra.mxu0 %v1636
  %1655 = vmatpush.msra.mxu0 %v1635
  %1656 = vmatpush.msra.mxu0 %v1634
  %1657 = vmatpush.msra.mxu0 %v1633
  %1658 = vmatmul.f32.gmra.mxu0 %v1604
  %v1659 = vpop.f32.mrf.mxu0
  %v1660 = vadd.f32 %v1640, %v1659
  %1661 = vmatmul.f32.gmra.mxu0 %v1607
  %v1662 = vpop.f32.mrf.mxu0
  %v1663 = vadd.f32 %v1640, %v1662
  %1664 = vdwg.mxu0
  %s1665 = scalar_lea.vmem %s12, 128
  %v1666 = vld [vmem:[%s1665] sm:$0xff]
  %v1667 = vld [vmem:[%s1665 + $0x8] sm:$0xff]
  %v1668 = vld [vmem:[%s1665 + $0x10] sm:$0xff]
  %v1669 = vld [vmem:[%s1665 + $0x18] sm:$0xff]
  %s1670 = scalar_lea.vmem %s13, 20
  %v1671 = vld [vmem:[%s1670] sm:$0x1]
  %v1673 = vperm.slane %v1671, 0
  %1675 = vmatpush.msra.mxu0 0.0
  %1676 = vmatpush.msra.mxu0 0.0
  %1677 = vmatpush.msra.mxu0 0.0
  %1678 = vmatpush.msra.mxu0 0.0
  %1679 = vmatpush.msra.mxu0 0.0
  %1680 = vmatpush.msra.mxu0 0.0
  %1681 = vmatpush.msra.mxu0 0.0
  %1682 = vmatpush.msra.mxu0 0.0
  %1683 = vmatpush.msra.mxu0 0.0
  %1684 = vmatpush.msra.mxu0 0.0
  %1685 = vmatpush.msra.mxu0 0.0
  %1686 = vmatpush.msra.mxu0 0.0
  %1687 = vmatpush.msra.mxu0 %v1669
  %1688 = vmatpush.msra.mxu0 %v1668
  %1689 = vmatpush.msra.mxu0 %v1667
  %1690 = vmatpush.msra.mxu0 %v1666
  %1691 = vmatmul.f32.gmra.mxu0 %v1604
  %v1692 = vpop.f32.mrf.mxu0
  %v1693 = vadd.f32 %v1673, %v1692
  %1694 = vmatmul.f32.gmra.mxu0 %v1607
  %v1695 = vpop.f32.mrf.mxu0
  %v1696 = vadd.f32 %v1673, %v1695
  %1697 = vdwg.mxu0
  %v1699 = vsel %vm390, %v1627, 0
  %v1702 = vsel %vm390, %v1630, 0
  %v1705 = vsel %vm390, %v1660, 0
  %v1708 = vsel %vm390, %v1663, 0
  %1710 = vmatpush.xpose.msra.mxu0 0.0
  %1711 = vmatpush.xpose.msra.mxu0 0.0
  %1712 = vmatpush.xpose.msra.mxu0 0.0
  %1713 = vmatpush.xpose.msra.mxu0 0.0
  %1714 = vmatpush.xpose.msra.mxu0 0.0
  %1715 = vmatpush.xpose.msra.mxu0 0.0
  %1716 = vmatpush.xpose.msra.mxu0 0.0
  %1717 = vmatpush.xpose.msra.mxu0 0.0
  %1718 = vmatpush.xpose.msra.mxu0 0.0
  %1719 = vmatpush.xpose.msra.mxu0 0.0
  %1720 = vmatpush.xpose.msra.mxu0 0.0
  %1721 = vmatpush.xpose.msra.mxu0 0.0
  %1722 = vmatpush.xpose.msra.mxu0 0.0
  %1723 = vmatpush.xpose.msra.mxu0 0.0
  %1724 = vmatpush.xpose.msra.mxu0 %v1708
  %1725 = vmatpush.xpose.msra.mxu0 %v1705
  %1726 = vmatmul.f32.gmra.mxu0 %v1699
  %v1727 = vpop.f32.mrf.mxu0
  %v1728 = vadd.f32 0.0, %v1727
  %1729 = vmatmul.f32.gmra.mxu0 %v1702
  %v1730 = vpop.f32.mrf.mxu0
  %v1731 = vadd.f32 0.0, %v1730
  %1732 = vdwg.mxu0
  %v1733 = vmul.f32 %v1728, 0.35355338
  %v1734 = vmul.f32 %v1731, 0.35355338
  %v1735 = vadd.f32 %v1733, %v76
  %v1736 = vadd.f32 %v1734, %v77
  %v1737 = vsel %vm81, %v1735, -inf
  %1738 = vmax.xlane.f32.xlu0 %v1737
  %v1739 = vpop.xlane.xlu0 %1738
  %v1740 = vsel %vm81, %v1736, -inf
  %1741 = vmax.xlane.f32.xlu0 %v1740
  %v1742 = vpop.xlane.xlu0 %1741
  %v1743 = vsub.f32 %v1735, %v1739
  %v1744 = vsub.f32 %v1736, %v1742
  %v1745 = vmul.f32 %v1743, 1.442695
  %v1746 = vpow.pop %v1745
  %v1747 = vmul.f32 %v1744, 1.442695
  %v1748 = vpow.pop %v1747
  %v1749 = vsel %vm81, %v1746, 0.0
  %1750 = vadd.xlane.f32.xlu0 %v1749
  %v1751 = vpop.xlane.xlu0 %1750
  %v1752 = vsel %vm81, %v1748, 0.0
  %1753 = vadd.xlane.f32.xlu0 %v1752
  %v1754 = vpop.xlane.xlu0 %1753
  %v1755 = vrcp.pop %v1751
  %v1756 = vmul.f32 %v1751, %v1755
  %v1757 = vsub.f32 1.0, %v1756
  %v1758 = vmul.f32 %v1755, %v1757
  %v1759 = vadd.f32 %v1755, %v1758
  %vm1760 = vweird.f32 %v1751
  %vm1761 = vweird.f32 %v1755
  %vm1762 = vmor %vm1760, %vm1761
  %v1763 = vsel %vm1762, %v1755, %v1759
  %v1764 = vand.u32 2147483647, %v1751
  %vm1765 = vcmp.eq.f32.partialorder %v1764, 8.507059e+37
  %v1766 = vand.u32 %v1751, 2147483648
  %v1767 = vor.u32 1.1754944e-38, %v1766
  %v1768 = vsel %vm1765, %v1767, %v1763
  %v1769 = vmul.f32 %v1746, %v1768
  %v1770 = vrcp.pop %v1754
  %v1771 = vmul.f32 %v1754, %v1770
  %v1772 = vsub.f32 1.0, %v1771
  %v1773 = vmul.f32 %v1770, %v1772
  %v1774 = vadd.f32 %v1770, %v1773
  %vm1775 = vweird.f32 %v1754
  %vm1776 = vweird.f32 %v1770
  %vm1777 = vmor %vm1775, %vm1776
  %v1778 = vsel %vm1777, %v1770, %v1774
  %v1779 = vand.u32 2147483647, %v1754
  %vm1780 = vcmp.eq.f32.partialorder %v1779, 8.507059e+37
  %v1781 = vand.u32 %v1754, 2147483648
  %v1782 = vor.u32 1.1754944e-38, %v1781
  %v1783 = vsel %vm1780, %v1782, %v1778
  %v1784 = vmul.f32 %v1748, %v1783
  %v1786 = vsel %vm81, %v1769, 0
  %v1789 = vsel %vm81, %v1784, 0
  %1791 = vmatpush.msra.mxu0 0.0
  %1792 = vmatpush.msra.mxu0 0.0
  %1793 = vmatpush.msra.mxu0 0.0
  %1794 = vmatpush.msra.mxu0 0.0
  %1795 = vmatpush.msra.mxu0 0.0
  %1796 = vmatpush.msra.mxu0 0.0
  %1797 = vmatpush.msra.mxu0 0.0
  %1798 = vmatpush.msra.mxu0 0.0
  %1799 = vmatpush.msra.mxu0 0.0
  %1800 = vmatpush.msra.mxu0 0.0
  %1801 = vmatpush.msra.mxu0 0.0
  %1802 = vmatpush.msra.mxu0 0.0
  %1803 = vmatpush.msra.mxu0 0.0
  %1804 = vmatpush.msra.mxu0 0.0
  %1805 = vmatpush.msra.mxu0 %v1696
  %1806 = vmatpush.msra.mxu0 %v1693
  %1807 = vmatmul.f32.gmra.mxu0 %v1786
  %v1808 = vpop.f32.mrf.mxu0
  %v1809 = vadd.f32 0.0, %v1808
  %1810 = vmatmul.f32.gmra.mxu0 %v1789
  %v1811 = vpop.f32.mrf.mxu0
  %v1812 = vadd.f32 0.0, %v1811
  %1813 = vdwg.mxu0
  %s1814 = scalar_lea.vmem %s14, 32
  %v1815 = vld [vmem:[%s1814] sm:$0xff]
  %s1816 = scalar_lea.vmem %s10, 160
  %v1817 = vld [vmem:[%s1816] sm:$0xff]
  %v1818 = vld [vmem:[%s1816 + $0x8] sm:$0xff]
  %v1819 = vld [vmem:[%s1816 + $0x10] sm:$0xff]
  %v1820 = vld [vmem:[%s1816 + $0x18] sm:$0xff]
  %s1821 = scalar_lea.vmem %s13, 13
  %v1822 = vld [vmem:[%s1821] sm:$0x1]
  %v1824 = vperm.slane %v1822, 0
  %1826 = vmatpush.msra.mxu0 0.0
  %1827 = vmatpush.msra.mxu0 0.0
  %1828 = vmatpush.msra.mxu0 0.0
  %1829 = vmatpush.msra.mxu0 0.0
  %1830 = vmatpush.msra.mxu0 0.0
  %1831 = vmatpush.msra.mxu0 0.0
  %1832 = vmatpush.msra.mxu0 0.0
  %1833 = vmatpush.msra.mxu0 0.0
  %1834 = vmatpush.msra.mxu0 0.0
  %1835 = vmatpush.msra.mxu0 0.0
  %1836 = vmatpush.msra.mxu0 0.0
  %1837 = vmatpush.msra.mxu0 0.0
  %1838 = vmatpush.msra.mxu0 %v1820
  %1839 = vmatpush.msra.mxu0 %v1819
  %1840 = vmatpush.msra.mxu0 %v1818
  %1841 = vmatpush.msra.mxu0 %v1817
  %1842 = vmatmul.f32.gmra.mxu0 %v1604
  %v1843 = vpop.f32.mrf.mxu0
  %v1844 = vadd.f32 %v1824, %v1843
  %1845 = vmatmul.f32.gmra.mxu0 %v1607
  %v1846 = vpop.f32.mrf.mxu0
  %v1847 = vadd.f32 %v1824, %v1846
  %1848 = vdwg.mxu0
  %s1849 = scalar_lea.vmem %s11, 160
  %v1850 = vld [vmem:[%s1849] sm:$0xff]
  %v1851 = vld [vmem:[%s1849 + $0x8] sm:$0xff]
  %v1852 = vld [vmem:[%s1849 + $0x10] sm:$0xff]
  %v1853 = vld [vmem:[%s1849 + $0x18] sm:$0xff]
  %s1854 = scalar_lea.vmem %s13, 17
  %v1855 = vld [vmem:[%s1854] sm:$0x1]
  %v1857 = vperm.slane %v1855, 0
  %1859 = vmatpush.msra.mxu0 0.0
  %1860 = vmatpush.msra.mxu0 0.0
  %1861 = vmatpush.msra.mxu0 0.0
  %1862 = vmatpush.msra.mxu0 0.0
  %1863 = vmatpush.msra.mxu0 0.0
  %1864 = vmatpush.msra.mxu0 0.0
  %1865 = vmatpush.msra.mxu0 0.0
  %1866 = vmatpush.msra.mxu0 0.0
  %1867 = vmatpush.msra.mxu0 0.0
  %1868 = vmatpush.msra.mxu0 0.0
  %1869 = vmatpush.msra.mxu0 0.0
  %1870 = vmatpush.msra.mxu0 0.0
  %1871 = vmatpush.msra.mxu0 %v1853
  %1872 = vmatpush.msra.mxu0 %v1852
  %1873 = vmatpush.msra.mxu0 %v1851
  %1874 = vmatpush.msra.mxu0 %v1850
  %1875 = vmatmul.f32.gmra.mxu0 %v1604
  %v1876 = vpop.f32.mrf.mxu0
  %v1877 = vadd.f32 %v1857, %v1876
  %1878 = vmatmul.f32.gmra.mxu0 %v1607
  %v1879 = vpop.f32.mrf.mxu0
  %v1880 = vadd.f32 %v1857, %v1879
  %1881 = vdwg.mxu0
  %s1882 = scalar_lea.vmem %s12, 160
  %v1883 = vld [vmem:[%s1882] sm:$0xff]
  %v1884 = vld [vmem:[%s1882 + $0x8] sm:$0xff]
  %v1885 = vld [vmem:[%s1882 + $0x10] sm:$0xff]
  %v1886 = vld [vmem:[%s1882 + $0x18] sm:$0xff]
  %s1887 = scalar_lea.vmem %s13, 21
  %v1888 = vld [vmem:[%s1887] sm:$0x1]
  %v1890 = vperm.slane %v1888, 0
  %1892 = vmatpush.msra.mxu0 0.0
  %1893 = vmatpush.msra.mxu0 0.0
  %1894 = vmatpush.msra.mxu0 0.0
  %1895 = vmatpush.msra.mxu0 0.0
  %1896 = vmatpush.msra.mxu0 0.0
  %1897 = vmatpush.msra.mxu0 0.0
  %1898 = vmatpush.msra.mxu0 0.0
  %1899 = vmatpush.msra.mxu0 0.0
  %1900 = vmatpush.msra.mxu0 0.0
  %1901 = vmatpush.msra.mxu0 0.0
  %1902 = vmatpush.msra.mxu0 0.0
  %1903 = vmatpush.msra.mxu0 0.0
  %1904 = vmatpush.msra.mxu0 %v1886
  %1905 = vmatpush.msra.mxu0 %v1885
  %1906 = vmatpush.msra.mxu0 %v1884
  %1907 = vmatpush.msra.mxu0 %v1883
  %1908 = vmatmul.f32.gmra.mxu0 %v1604
  %v1909 = vpop.f32.mrf.mxu0
  %v1910 = vadd.f32 %v1890, %v1909
  %1911 = vmatmul.f32.gmra.mxu0 %v1607
  %v1912 = vpop.f32.mrf.mxu0
  %v1913 = vadd.f32 %v1890, %v1912
  %1914 = vdwg.mxu0
  %v1916 = vsel %vm390, %v1844, 0
  %v1919 = vsel %vm390, %v1847, 0
  %v1922 = vsel %vm390, %v1877, 0
  %v1925 = vsel %vm390, %v1880, 0
  %1927 = vmatpush.xpose.msra.mxu0 0.0
  %1928 = vmatpush.xpose.msra.mxu0 0.0
  %1929 = vmatpush.xpose.msra.mxu0 0.0
  %1930 = vmatpush.xpose.msra.mxu0 0.0
  %1931 = vmatpush.xpose.msra.mxu0 0.0
  %1932 = vmatpush.xpose.msra.mxu0 0.0
  %1933 = vmatpush.xpose.msra.mxu0 0.0
  %1934 = vmatpush.xpose.msra.mxu0 0.0
  %1935 = vmatpush.xpose.msra.mxu0 0.0
  %1936 = vmatpush.xpose.msra.mxu0 0.0
  %1937 = vmatpush.xpose.msra.mxu0 0.0
  %1938 = vmatpush.xpose.msra.mxu0 0.0
  %1939 = vmatpush.xpose.msra.mxu0 0.0
  %1940 = vmatpush.xpose.msra.mxu0 0.0
  %1941 = vmatpush.xpose.msra.mxu0 %v1925
  %1942 = vmatpush.xpose.msra.mxu0 %v1922
  %1943 = vmatmul.f32.gmra.mxu0 %v1916
  %v1944 = vpop.f32.mrf.mxu0
  %v1945 = vadd.f32 0.0, %v1944
  %1946 = vmatmul.f32.gmra.mxu0 %v1919
  %v1947 = vpop.f32.mrf.mxu0
  %v1948 = vadd.f32 0.0, %v1947
  %1949 = vdwg.mxu0
  %v1950 = vmul.f32 %v1945, 0.35355338
  %v1951 = vmul.f32 %v1948, 0.35355338
  %v1952 = vadd.f32 %v1950, %v76
  %v1953 = vadd.f32 %v1951, %v77
  %v1954 = vsel %vm81, %v1952, -inf
  %1955 = vmax.xlane.f32.xlu0 %v1954
  %v1956 = vpop.xlane.xlu0 %1955
  %v1957 = vsel %vm81, %v1953, -inf
  %1958 = vmax.xlane.f32.xlu0 %v1957
  %v1959 = vpop.xlane.xlu0 %1958
  %v1960 = vsub.f32 %v1952, %v1956
  %v1961 = vsub.f32 %v1953, %v1959
  %v1962 = vmul.f32 %v1960, 1.442695
  %v1963 = vpow.pop %v1962
  %v1964 = vmul.f32 %v1961, 1.442695
  %v1965 = vpow.pop %v1964
  %v1966 = vsel %vm81, %v1963, 0.0
  %1967 = vadd.xlane.f32.xlu0 %v1966
  %v1968 = vpop.xlane.xlu0 %1967
  %v1969 = vsel %vm81, %v1965, 0.0
  %1970 = vadd.xlane.f32.xlu0 %v1969
  %v1971 = vpop.xlane.xlu0 %1970
  %v1972 = vrcp.pop %v1968
  %v1973 = vmul.f32 %v1968, %v1972
  %v1974 = vsub.f32 1.0, %v1973
  %v1975 = vmul.f32 %v1972, %v1974
  %v1976 = vadd.f32 %v1972, %v1975
  %vm1977 = vweird.f32 %v1968
  %vm1978 = vweird.f32 %v1972
  %vm1979 = vmor %vm1977, %vm1978
  %v1980 = vsel %vm1979, %v1972, %v1976
  %v1981 = vand.u32 2147483647, %v1968
  %vm1982 = vcmp.eq.f32.partialorder %v1981, 8.507059e+37
  %v1983 = vand.u32 %v1968, 2147483648
  %v1984 = vor.u32 1.1754944e-38, %v1983
  %v1985 = vsel %vm1982, %v1984, %v1980
  %v1986 = vmul.f32 %v1963, %v1985
  %v1987 = vrcp.pop %v1971
  %v1988 = vmul.f32 %v1971, %v1987
  %v1989 = vsub.f32 1.0, %v1988
  %v1990 = vmul.f32 %v1987, %v1989
  %v1991 = vadd.f32 %v1987, %v1990
  %vm1992 = vweird.f32 %v1971
  %vm1993 = vweird.f32 %v1987
  %vm1994 = vmor %vm1992, %vm1993
  %v1995 = vsel %vm1994, %v1987, %v1991
  %v1996 = vand.u32 2147483647, %v1971
  %vm1997 = vcmp.eq.f32.partialorder %v1996, 8.507059e+37
  %v1998 = vand.u32 %v1971, 2147483648
  %v1999 = vor.u32 1.1754944e-38, %v1998
  %v2000 = vsel %vm1997, %v1999, %v1995
  %v2001 = vmul.f32 %v1965, %v2000
  %v2003 = vsel %vm81, %v1986, 0
  %v2006 = vsel %vm81, %v2001, 0
  %2008 = vmatpush.msra.mxu0 0.0
  %2009 = vmatpush.msra.mxu0 0.0
  %2010 = vmatpush.msra.mxu0 0.0
  %2011 = vmatpush.msra.mxu0 0.0
  %2012 = vmatpush.msra.mxu0 0.0
  %2013 = vmatpush.msra.mxu0 0.0
  %2014 = vmatpush.msra.mxu0 0.0
  %2015 = vmatpush.msra.mxu0 0.0
  %2016 = vmatpush.msra.mxu0 0.0
  %2017 = vmatpush.msra.mxu0 0.0
  %2018 = vmatpush.msra.mxu0 0.0
  %2019 = vmatpush.msra.mxu0 0.0
  %2020 = vmatpush.msra.mxu0 0.0
  %2021 = vmatpush.msra.mxu0 0.0
  %2022 = vmatpush.msra.mxu0 %v1913
  %2023 = vmatpush.msra.mxu0 %v1910
  %2024 = vmatmul.f32.gmra.mxu0 %v2003
  %v2025 = vpop.f32.mrf.mxu0
  %v2026 = vadd.f32 0.0, %v2025
  %2027 = vmatmul.f32.gmra.mxu0 %v2006
  %v2028 = vpop.f32.mrf.mxu0
  %v2029 = vadd.f32 0.0, %v2028
  %2030 = vdwg.mxu0
  %s2031 = scalar_lea.vmem %s14, 40
  %v2032 = vld [vmem:[%s2031] sm:$0xff]
  %v2034 = vsel %vm390, %v2026, 0
  %v2037 = vsel %vm390, %v2029, 0
  %2039 = vmatpush.msra.mxu0 0.0
  %2040 = vmatpush.msra.mxu0 0.0
  %2041 = vmatpush.msra.mxu0 0.0
  %2042 = vmatpush.msra.mxu0 0.0
  %2043 = vmatpush.msra.mxu0 0.0
  %2044 = vmatpush.msra.mxu0 0.0
  %2045 = vmatpush.msra.mxu0 0.0
  %2046 = vmatpush.msra.mxu0 0.0
  %2047 = vmatpush.msra.mxu0 0.0
  %2048 = vmatpush.msra.mxu0 0.0
  %2049 = vmatpush.msra.mxu0 0.0
  %2050 = vmatpush.msra.mxu0 0.0
  %2051 = vmatpush.msra.mxu0 0.0
  %2052 = vmatpush.msra.mxu0 0.0
  %2053 = vmatpush.msra.mxu0 0.0
  %2054 = vmatpush.msra.mxu0 %v2032
  %2055 = vmatmul.f32.gmra.mxu0 %v2034
  %v2056 = vpop.f32.mrf.mxu0
  %v2057 = vadd.f32 0.0, %v2056
  %2058 = vmatmul.f32.gmra.mxu0 %v2037
  %v2059 = vpop.f32.mrf.mxu0
  %v2060 = vadd.f32 0.0, %v2059
  %2061 = vdwg.mxu0
  %v2063 = vsel %vm390, %v1809, 0
  %v2066 = vsel %vm390, %v1812, 0
  %2068 = vmatpush.msra.mxu0 0.0
  %2069 = vmatpush.msra.mxu0 0.0
  %2070 = vmatpush.msra.mxu0 0.0
  %2071 = vmatpush.msra.mxu0 0.0
  %2072 = vmatpush.msra.mxu0 0.0
  %2073 = vmatpush.msra.mxu0 0.0
  %2074 = vmatpush.msra.mxu0 0.0
  %2075 = vmatpush.msra.mxu0 0.0
  %2076 = vmatpush.msra.mxu0 0.0
  %2077 = vmatpush.msra.mxu0 0.0
  %2078 = vmatpush.msra.mxu0 0.0
  %2079 = vmatpush.msra.mxu0 0.0
  %2080 = vmatpush.msra.mxu0 0.0
  %2081 = vmatpush.msra.mxu0 0.0
  %2082 = vmatpush.msra.mxu0 0.0
  %2083 = vmatpush.msra.mxu0 %v1815
  %2084 = vmatmul.f32.gmra.mxu0 %v2063
  %v2085 = vpop.f32.mrf.mxu0
  %v2086 = vadd.f32 %v2057, %v2085
  %2087 = vmatmul.f32.gmra.mxu0 %v2066
  %v2088 = vpop.f32.mrf.mxu0
  %v2089 = vadd.f32 %v2060, %v2088
  %2090 = vdwg.mxu0
  %s2091 = scalar_lea.vmem %s10, 192
  %v2092 = vld [vmem:[%s2091] sm:$0xff]
  %v2093 = vld [vmem:[%s2091 + $0x8] sm:$0xff]
  %v2094 = vld [vmem:[%s2091 + $0x10] sm:$0xff]
  %v2095 = vld [vmem:[%s2091 + $0x18] sm:$0xff]
  %s2096 = scalar_lea.vmem %s13, 14
  %v2097 = vld [vmem:[%s2096] sm:$0x1]
  %v2099 = vperm.slane %v2097, 0
  %2101 = vmatpush.msra.mxu0 0.0
  %2102 = vmatpush.msra.mxu0 0.0
  %2103 = vmatpush.msra.mxu0 0.0
  %2104 = vmatpush.msra.mxu0 0.0
  %2105 = vmatpush.msra.mxu0 0.0
  %2106 = vmatpush.msra.mxu0 0.0
  %2107 = vmatpush.msra.mxu0 0.0
  %2108 = vmatpush.msra.mxu0 0.0
  %2109 = vmatpush.msra.mxu0 0.0
  %2110 = vmatpush.msra.mxu0 0.0
  %2111 = vmatpush.msra.mxu0 0.0
  %2112 = vmatpush.msra.mxu0 0.0
  %2113 = vmatpush.msra.mxu0 %v2095
  %2114 = vmatpush.msra.mxu0 %v2094
  %2115 = vmatpush.msra.mxu0 %v2093
  %2116 = vmatpush.msra.mxu0 %v2092
  %2117 = vmatmul.f32.gmra.mxu0 %v1604
  %v2118 = vpop.f32.mrf.mxu0
  %v2119 = vadd.f32 %v2099, %v2118
  %2120 = vmatmul.f32.gmra.mxu0 %v1607
  %v2121 = vpop.f32.mrf.mxu0
  %v2122 = vadd.f32 %v2099, %v2121
  %2123 = vdwg.mxu0
  %s2124 = scalar_lea.vmem %s11, 192
  %v2125 = vld [vmem:[%s2124] sm:$0xff]
  %v2126 = vld [vmem:[%s2124 + $0x8] sm:$0xff]
  %v2127 = vld [vmem:[%s2124 + $0x10] sm:$0xff]
  %v2128 = vld [vmem:[%s2124 + $0x18] sm:$0xff]
  %s2129 = scalar_lea.vmem %s13, 18
  %v2130 = vld [vmem:[%s2129] sm:$0x1]
  %v2132 = vperm.slane %v2130, 0
  %2134 = vmatpush.msra.mxu0 0.0
  %2135 = vmatpush.msra.mxu0 0.0
  %2136 = vmatpush.msra.mxu0 0.0
  %2137 = vmatpush.msra.mxu0 0.0
  %2138 = vmatpush.msra.mxu0 0.0
  %2139 = vmatpush.msra.mxu0 0.0
  %2140 = vmatpush.msra.mxu0 0.0
  %2141 = vmatpush.msra.mxu0 0.0
  %2142 = vmatpush.msra.mxu0 0.0
  %2143 = vmatpush.msra.mxu0 0.0
  %2144 = vmatpush.msra.mxu0 0.0
  %2145 = vmatpush.msra.mxu0 0.0
  %2146 = vmatpush.msra.mxu0 %v2128
  %2147 = vmatpush.msra.mxu0 %v2127
  %2148 = vmatpush.msra.mxu0 %v2126
  %2149 = vmatpush.msra.mxu0 %v2125
  %2150 = vmatmul.f32.gmra.mxu0 %v1604
  %v2151 = vpop.f32.mrf.mxu0
  %v2152 = vadd.f32 %v2132, %v2151
  %2153 = vmatmul.f32.gmra.mxu0 %v1607
  %v2154 = vpop.f32.mrf.mxu0
  %v2155 = vadd.f32 %v2132, %v2154
  %2156 = vdwg.mxu0
  %s2157 = scalar_lea.vmem %s12, 192
  %v2158 = vld [vmem:[%s2157] sm:$0xff]
  %v2159 = vld [vmem:[%s2157 + $0x8] sm:$0xff]
  %v2160 = vld [vmem:[%s2157 + $0x10] sm:$0xff]
  %v2161 = vld [vmem:[%s2157 + $0x18] sm:$0xff]
  %s2162 = scalar_lea.vmem %s13, 22
  %v2163 = vld [vmem:[%s2162] sm:$0x1]
  %v2165 = vperm.slane %v2163, 0
  %2167 = vmatpush.msra.mxu0 0.0
  %2168 = vmatpush.msra.mxu0 0.0
  %2169 = vmatpush.msra.mxu0 0.0
  %2170 = vmatpush.msra.mxu0 0.0
  %2171 = vmatpush.msra.mxu0 0.0
  %2172 = vmatpush.msra.mxu0 0.0
  %2173 = vmatpush.msra.mxu0 0.0
  %2174 = vmatpush.msra.mxu0 0.0
  %2175 = vmatpush.msra.mxu0 0.0
  %2176 = vmatpush.msra.mxu0 0.0
  %2177 = vmatpush.msra.mxu0 0.0
  %2178 = vmatpush.msra.mxu0 0.0
  %2179 = vmatpush.msra.mxu0 %v2161
  %2180 = vmatpush.msra.mxu0 %v2160
  %2181 = vmatpush.msra.mxu0 %v2159
  %2182 = vmatpush.msra.mxu0 %v2158
  %2183 = vmatmul.f32.gmra.mxu0 %v1604
  %v2184 = vpop.f32.mrf.mxu0
  %v2185 = vadd.f32 %v2165, %v2184
  %2186 = vmatmul.f32.gmra.mxu0 %v1607
  %v2187 = vpop.f32.mrf.mxu0
  %v2188 = vadd.f32 %v2165, %v2187
  %2189 = vdwg.mxu0
  %v2191 = vsel %vm390, %v2119, 0
  %v2194 = vsel %vm390, %v2122, 0
  %v2197 = vsel %vm390, %v2152, 0
  %v2200 = vsel %vm390, %v2155, 0
  %2202 = vmatpush.xpose.msra.mxu0 0.0
  %2203 = vmatpush.xpose.msra.mxu0 0.0
  %2204 = vmatpush.xpose.msra.mxu0 0.0
  %2205 = vmatpush.xpose.msra.mxu0 0.0
  %2206 = vmatpush.xpose.msra.mxu0 0.0
  %2207 = vmatpush.xpose.msra.mxu0 0.0
  %2208 = vmatpush.xpose.msra.mxu0 0.0
  %2209 = vmatpush.xpose.msra.mxu0 0.0
  %2210 = vmatpush.xpose.msra.mxu0 0.0
  %2211 = vmatpush.xpose.msra.mxu0 0.0
  %2212 = vmatpush.xpose.msra.mxu0 0.0
  %2213 = vmatpush.xpose.msra.mxu0 0.0
  %2214 = vmatpush.xpose.msra.mxu0 0.0
  %2215 = vmatpush.xpose.msra.mxu0 0.0
  %2216 = vmatpush.xpose.msra.mxu0 %v2200
  %2217 = vmatpush.xpose.msra.mxu0 %v2197
  %2218 = vmatmul.f32.gmra.mxu0 %v2191
  %v2219 = vpop.f32.mrf.mxu0
  %v2220 = vadd.f32 0.0, %v2219
  %2221 = vmatmul.f32.gmra.mxu0 %v2194
  %v2222 = vpop.f32.mrf.mxu0
  %v2223 = vadd.f32 0.0, %v2222
  %2224 = vdwg.mxu0
  %v2225 = vmul.f32 %v2220, 0.35355338
  %v2226 = vmul.f32 %v2223, 0.35355338
  %v2227 = vadd.f32 %v2225, %v76
  %v2228 = vadd.f32 %v2226, %v77
  %v2229 = vsel %vm81, %v2227, -inf
  %2230 = vmax.xlane.f32.xlu0 %v2229
  %v2231 = vpop.xlane.xlu0 %2230
  %v2232 = vsel %vm81, %v2228, -inf
  %2233 = vmax.xlane.f32.xlu0 %v2232
  %v2234 = vpop.xlane.xlu0 %2233
  %v2235 = vsub.f32 %v2227, %v2231
  %v2236 = vsub.f32 %v2228, %v2234
  %v2237 = vmul.f32 %v2235, 1.442695
  %v2238 = vpow.pop %v2237
  %v2239 = vmul.f32 %v2236, 1.442695
  %v2240 = vpow.pop %v2239
  %v2241 = vsel %vm81, %v2238, 0.0
  %2242 = vadd.xlane.f32.xlu0 %v2241
  %v2243 = vpop.xlane.xlu0 %2242
  %v2244 = vsel %vm81, %v2240, 0.0
  %2245 = vadd.xlane.f32.xlu0 %v2244
  %v2246 = vpop.xlane.xlu0 %2245
  %v2247 = vrcp.pop %v2243
  %v2248 = vmul.f32 %v2243, %v2247
  %v2249 = vsub.f32 1.0, %v2248
  %v2250 = vmul.f32 %v2247, %v2249
  %v2251 = vadd.f32 %v2247, %v2250
  %vm2252 = vweird.f32 %v2243
  %vm2253 = vweird.f32 %v2247
  %vm2254 = vmor %vm2252, %vm2253
  %v2255 = vsel %vm2254, %v2247, %v2251
  %v2256 = vand.u32 2147483647, %v2243
  %vm2257 = vcmp.eq.f32.partialorder %v2256, 8.507059e+37
  %v2258 = vand.u32 %v2243, 2147483648
  %v2259 = vor.u32 1.1754944e-38, %v2258
  %v2260 = vsel %vm2257, %v2259, %v2255
  %v2261 = vmul.f32 %v2238, %v2260
  %v2262 = vrcp.pop %v2246
  %v2263 = vmul.f32 %v2246, %v2262
  %v2264 = vsub.f32 1.0, %v2263
  %v2265 = vmul.f32 %v2262, %v2264
  %v2266 = vadd.f32 %v2262, %v2265
  %vm2267 = vweird.f32 %v2246
  %vm2268 = vweird.f32 %v2262
  %vm2269 = vmor %vm2267, %vm2268
  %v2270 = vsel %vm2269, %v2262, %v2266
  %v2271 = vand.u32 2147483647, %v2246
  %vm2272 = vcmp.eq.f32.partialorder %v2271, 8.507059e+37
  %v2273 = vand.u32 %v2246, 2147483648
  %v2274 = vor.u32 1.1754944e-38, %v2273
  %v2275 = vsel %vm2272, %v2274, %v2270
  %v2276 = vmul.f32 %v2240, %v2275
  %v2278 = vsel %vm81, %v2261, 0
  %v2281 = vsel %vm81, %v2276, 0
  %2283 = vmatpush.msra.mxu0 0.0
  %2284 = vmatpush.msra.mxu0 0.0
  %2285 = vmatpush.msra.mxu0 0.0
  %2286 = vmatpush.msra.mxu0 0.0
  %2287 = vmatpush.msra.mxu0 0.0
  %2288 = vmatpush.msra.mxu0 0.0
  %2289 = vmatpush.msra.mxu0 0.0
  %2290 = vmatpush.msra.mxu0 0.0
  %2291 = vmatpush.msra.mxu0 0.0
  %2292 = vmatpush.msra.mxu0 0.0
  %2293 = vmatpush.msra.mxu0 0.0
  %2294 = vmatpush.msra.mxu0 0.0
  %2295 = vmatpush.msra.mxu0 0.0
  %2296 = vmatpush.msra.mxu0 0.0
  %2297 = vmatpush.msra.mxu0 %v2188
  %2298 = vmatpush.msra.mxu0 %v2185
  %2299 = vmatmul.f32.gmra.mxu0 %v2278
  %v2300 = vpop.f32.mrf.mxu0
  %v2301 = vadd.f32 0.0, %v2300
  %2302 = vmatmul.f32.gmra.mxu0 %v2281
  %v2303 = vpop.f32.mrf.mxu0
  %v2304 = vadd.f32 0.0, %v2303
  %2305 = vdwg.mxu0
  %s2306 = scalar_lea.vmem %s14, 48
  %v2307 = vld [vmem:[%s2306] sm:$0xff]
  %v2309 = vsel %vm390, %v2301, 0
  %v2312 = vsel %vm390, %v2304, 0
  %2314 = vmatpush.msra.mxu0 0.0
  %2315 = vmatpush.msra.mxu0 0.0
  %2316 = vmatpush.msra.mxu0 0.0
  %2317 = vmatpush.msra.mxu0 0.0
  %2318 = vmatpush.msra.mxu0 0.0
  %2319 = vmatpush.msra.mxu0 0.0
  %2320 = vmatpush.msra.mxu0 0.0
  %2321 = vmatpush.msra.mxu0 0.0
  %2322 = vmatpush.msra.mxu0 0.0
  %2323 = vmatpush.msra.mxu0 0.0
  %2324 = vmatpush.msra.mxu0 0.0
  %2325 = vmatpush.msra.mxu0 0.0
  %2326 = vmatpush.msra.mxu0 0.0
  %2327 = vmatpush.msra.mxu0 0.0
  %2328 = vmatpush.msra.mxu0 0.0
  %2329 = vmatpush.msra.mxu0 %v2307
  %2330 = vmatmul.f32.gmra.mxu0 %v2309
  %v2331 = vpop.f32.mrf.mxu0
  %v2332 = vadd.f32 0.0, %v2331
  %2333 = vmatmul.f32.gmra.mxu0 %v2312
  %v2334 = vpop.f32.mrf.mxu0
  %v2335 = vadd.f32 0.0, %v2334
  %2336 = vdwg.mxu0
  %v2337 = vadd.f32 %v2086, %v2332
  %v2338 = vadd.f32 %v2089, %v2335
  %s2339 = scalar_lea.vmem %s10, 224
  %v2340 = vld [vmem:[%s2339] sm:$0xff]
  %v2341 = vld [vmem:[%s2339 + $0x8] sm:$0xff]
  %v2342 = vld [vmem:[%s2339 + $0x10] sm:$0xff]
  %v2343 = vld [vmem:[%s2339 + $0x18] sm:$0xff]
  %s2344 = scalar_lea.vmem %s13, 15
  %v2345 = vld [vmem:[%s2344] sm:$0x1]
  %v2347 = vperm.slane %v2345, 0
  %2349 = vmatpush.msra.mxu0 0.0
  %2350 = vmatpush.msra.mxu0 0.0
  %2351 = vmatpush.msra.mxu0 0.0
  %2352 = vmatpush.msra.mxu0 0.0
  %2353 = vmatpush.msra.mxu0 0.0
  %2354 = vmatpush.msra.mxu0 0.0
  %2355 = vmatpush.msra.mxu0 0.0
  %2356 = vmatpush.msra.mxu0 0.0
  %2357 = vmatpush.msra.mxu0 0.0
  %2358 = vmatpush.msra.mxu0 0.0
  %2359 = vmatpush.msra.mxu0 0.0
  %2360 = vmatpush.msra.mxu0 0.0
  %2361 = vmatpush.msra.mxu0 %v2343
  %2362 = vmatpush.msra.mxu0 %v2342
  %2363 = vmatpush.msra.mxu0 %v2341
  %2364 = vmatpush.msra.mxu0 %v2340
  %2365 = vmatmul.f32.gmra.mxu0 %v1604
  %v2366 = vpop.f32.mrf.mxu0
  %v2367 = vadd.f32 %v2347, %v2366
  %2368 = vmatmul.f32.gmra.mxu0 %v1607
  %v2369 = vpop.f32.mrf.mxu0
  %v2370 = vadd.f32 %v2347, %v2369
  %2371 = vdwg.mxu0
  %s2372 = scalar_lea.vmem %s11, 224
  %v2373 = vld [vmem:[%s2372] sm:$0xff]
  %v2374 = vld [vmem:[%s2372 + $0x8] sm:$0xff]
  %v2375 = vld [vmem:[%s2372 + $0x10] sm:$0xff]
  %v2376 = vld [vmem:[%s2372 + $0x18] sm:$0xff]
  %s2377 = scalar_lea.vmem %s13, 19
  %v2378 = vld [vmem:[%s2377] sm:$0x1]
  %v2380 = vperm.slane %v2378, 0
  %2382 = vmatpush.msra.mxu0 0.0
  %2383 = vmatpush.msra.mxu0 0.0
  %2384 = vmatpush.msra.mxu0 0.0
  %2385 = vmatpush.msra.mxu0 0.0
  %2386 = vmatpush.msra.mxu0 0.0
  %2387 = vmatpush.msra.mxu0 0.0
  %2388 = vmatpush.msra.mxu0 0.0
  %2389 = vmatpush.msra.mxu0 0.0
  %2390 = vmatpush.msra.mxu0 0.0
  %2391 = vmatpush.msra.mxu0 0.0
  %2392 = vmatpush.msra.mxu0 0.0
  %2393 = vmatpush.msra.mxu0 0.0
  %2394 = vmatpush.msra.mxu0 %v2376
  %2395 = vmatpush.msra.mxu0 %v2375
  %2396 = vmatpush.msra.mxu0 %v2374
  %2397 = vmatpush.msra.mxu0 %v2373
  %2398 = vmatmul.f32.gmra.mxu0 %v1604
  %v2399 = vpop.f32.mrf.mxu0
  %v2400 = vadd.f32 %v2380, %v2399
  %2401 = vmatmul.f32.gmra.mxu0 %v1607
  %v2402 = vpop.f32.mrf.mxu0
  %v2403 = vadd.f32 %v2380, %v2402
  %2404 = vdwg.mxu0
  %s2405 = scalar_lea.vmem %s12, 224
  %v2406 = vld [vmem:[%s2405] sm:$0xff]
  %v2407 = vld [vmem:[%s2405 + $0x8] sm:$0xff]
  %v2408 = vld [vmem:[%s2405 + $0x10] sm:$0xff]
  %v2409 = vld [vmem:[%s2405 + $0x18] sm:$0xff]
  %s2410 = scalar_lea.vmem %s13, 23
  %v2411 = vld [vmem:[%s2410] sm:$0x1]
  %v2413 = vperm.slane %v2411, 0
  %2415 = vmatpush.msra.mxu0 0.0
  %2416 = vmatpush.msra.mxu0 0.0
  %2417 = vmatpush.msra.mxu0 0.0
  %2418 = vmatpush.msra.mxu0 0.0
  %2419 = vmatpush.msra.mxu0 0.0
  %2420 = vmatpush.msra.mxu0 0.0
  %2421 = vmatpush.msra.mxu0 0.0
  %2422 = vmatpush.msra.mxu0 0.0
  %2423 = vmatpush.msra.mxu0 0.0
  %2424 = vmatpush.msra.mxu0 0.0
  %2425 = vmatpush.msra.mxu0 0.0
  %2426 = vmatpush.msra.mxu0 0.0
  %2427 = vmatpush.msra.mxu0 %v2409
  %2428 = vmatpush.msra.mxu0 %v2408
  %2429 = vmatpush.msra.mxu0 %v2407
  %2430 = vmatpush.msra.mxu0 %v2406
  %2431 = vmatmul.f32.gmra.mxu0 %v1604
  %v2432 = vpop.f32.mrf.mxu0
  %v2433 = vadd.f32 %v2413, %v2432
  %2434 = vmatmul.f32.gmra.mxu0 %v1607
  %v2435 = vpop.f32.mrf.mxu0
  %v2436 = vadd.f32 %v2413, %v2435
  %2437 = vdwg.mxu0
  %v2439 = vsel %vm390, %v2367, 0
  %v2442 = vsel %vm390, %v2370, 0
  %v2445 = vsel %vm390, %v2400, 0
  %v2448 = vsel %vm390, %v2403, 0
  %2450 = vmatpush.xpose.msra.mxu0 0.0
  %2451 = vmatpush.xpose.msra.mxu0 0.0
  %2452 = vmatpush.xpose.msra.mxu0 0.0
  %2453 = vmatpush.xpose.msra.mxu0 0.0
  %2454 = vmatpush.xpose.msra.mxu0 0.0
  %2455 = vmatpush.xpose.msra.mxu0 0.0
  %2456 = vmatpush.xpose.msra.mxu0 0.0
  %2457 = vmatpush.xpose.msra.mxu0 0.0
  %2458 = vmatpush.xpose.msra.mxu0 0.0
  %2459 = vmatpush.xpose.msra.mxu0 0.0
  %2460 = vmatpush.xpose.msra.mxu0 0.0
  %2461 = vmatpush.xpose.msra.mxu0 0.0
  %2462 = vmatpush.xpose.msra.mxu0 0.0
  %2463 = vmatpush.xpose.msra.mxu0 0.0
  %2464 = vmatpush.xpose.msra.mxu0 %v2448
  %2465 = vmatpush.xpose.msra.mxu0 %v2445
  %2466 = vmatmul.f32.gmra.mxu0 %v2439
  %v2467 = vpop.f32.mrf.mxu0
  %v2468 = vadd.f32 0.0, %v2467
  %2469 = vmatmul.f32.gmra.mxu0 %v2442
  %v2470 = vpop.f32.mrf.mxu0
  %v2471 = vadd.f32 0.0, %v2470
  %2472 = vdwg.mxu0
  %v2473 = vmul.f32 %v2468, 0.35355338
  %v2474 = vmul.f32 %v2471, 0.35355338
  %v2475 = vadd.f32 %v2473, %v76
  %v2476 = vadd.f32 %v2474, %v77
  %v2477 = vsel %vm81, %v2475, -inf
  %2478 = vmax.xlane.f32.xlu0 %v2477
  %v2479 = vpop.xlane.xlu0 %2478
  %v2480 = vsel %vm81, %v2476, -inf
  %2481 = vmax.xlane.f32.xlu0 %v2480
  %v2482 = vpop.xlane.xlu0 %2481
  %v2483 = vsub.f32 %v2475, %v2479
  %v2484 = vsub.f32 %v2476, %v2482
  %v2485 = vmul.f32 %v2483, 1.442695
  %v2486 = vpow.pop %v2485
  %v2487 = vmul.f32 %v2484, 1.442695
  %v2488 = vpow.pop %v2487
  %v2489 = vsel %vm81, %v2486, 0.0
  %2490 = vadd.xlane.f32.xlu0 %v2489
  %v2491 = vpop.xlane.xlu0 %2490
  %v2492 = vsel %vm81, %v2488, 0.0
  %2493 = vadd.xlane.f32.xlu0 %v2492
  %v2494 = vpop.xlane.xlu0 %2493
  %v2495 = vrcp.pop %v2491
  %v2496 = vmul.f32 %v2491, %v2495
  %v2497 = vsub.f32 1.0, %v2496
  %v2498 = vmul.f32 %v2495, %v2497
  %v2499 = vadd.f32 %v2495, %v2498
  %vm2500 = vweird.f32 %v2491
  %vm2501 = vweird.f32 %v2495
  %vm2502 = vmor %vm2500, %vm2501
  %v2503 = vsel %vm2502, %v2495, %v2499
  %v2504 = vand.u32 2147483647, %v2491
  %vm2505 = vcmp.eq.f32.partialorder %v2504, 8.507059e+37
  %v2506 = vand.u32 %v2491, 2147483648
  %v2507 = vor.u32 1.1754944e-38, %v2506
  %v2508 = vsel %vm2505, %v2507, %v2503
  %v2509 = vmul.f32 %v2486, %v2508
  %v2510 = vrcp.pop %v2494
  %v2511 = vmul.f32 %v2494, %v2510
  %v2512 = vsub.f32 1.0, %v2511
  %v2513 = vmul.f32 %v2510, %v2512
  %v2514 = vadd.f32 %v2510, %v2513
  %vm2515 = vweird.f32 %v2494
  %vm2516 = vweird.f32 %v2510
  %vm2517 = vmor %vm2515, %vm2516
  %v2518 = vsel %vm2517, %v2510, %v2514
  %v2519 = vand.u32 2147483647, %v2494
  %vm2520 = vcmp.eq.f32.partialorder %v2519, 8.507059e+37
  %v2521 = vand.u32 %v2494, 2147483648
  %v2522 = vor.u32 1.1754944e-38, %v2521
  %v2523 = vsel %vm2520, %v2522, %v2518
  %v2524 = vmul.f32 %v2488, %v2523
  %v2526 = vsel %vm81, %v2509, 0
  %v2529 = vsel %vm81, %v2524, 0
  %2531 = vmatpush.msra.mxu0 0.0
  %2532 = vmatpush.msra.mxu0 0.0
  %2533 = vmatpush.msra.mxu0 0.0
  %2534 = vmatpush.msra.mxu0 0.0
  %2535 = vmatpush.msra.mxu0 0.0
  %2536 = vmatpush.msra.mxu0 0.0
  %2537 = vmatpush.msra.mxu0 0.0
  %2538 = vmatpush.msra.mxu0 0.0
  %2539 = vmatpush.msra.mxu0 0.0
  %2540 = vmatpush.msra.mxu0 0.0
  %2541 = vmatpush.msra.mxu0 0.0
  %2542 = vmatpush.msra.mxu0 0.0
  %2543 = vmatpush.msra.mxu0 0.0
  %2544 = vmatpush.msra.mxu0 0.0
  %2545 = vmatpush.msra.mxu0 %v2436
  %2546 = vmatpush.msra.mxu0 %v2433
  %2547 = vmatmul.f32.gmra.mxu0 %v2526
  %v2548 = vpop.f32.mrf.mxu0
  %v2549 = vadd.f32 0.0, %v2548
  %2550 = vmatmul.f32.gmra.mxu0 %v2529
  %v2551 = vpop.f32.mrf.mxu0
  %v2552 = vadd.f32 0.0, %v2551
  %2553 = vdwg.mxu0
  %s2554 = scalar_lea.vmem %s14, 56
  %v2555 = vld [vmem:[%s2554] sm:$0xff]
  %v2557 = vsel %vm390, %v2549, 0
  %v2560 = vsel %vm390, %v2552, 0
  %2562 = vmatpush.msra.mxu0 0.0
  %2563 = vmatpush.msra.mxu0 0.0
  %2564 = vmatpush.msra.mxu0 0.0
  %2565 = vmatpush.msra.mxu0 0.0
  %2566 = vmatpush.msra.mxu0 0.0
  %2567 = vmatpush.msra.mxu0 0.0
  %2568 = vmatpush.msra.mxu0 0.0
  %2569 = vmatpush.msra.mxu0 0.0
  %2570 = vmatpush.msra.mxu0 0.0
  %2571 = vmatpush.msra.mxu0 0.0
  %2572 = vmatpush.msra.mxu0 0.0
  %2573 = vmatpush.msra.mxu0 0.0
  %2574 = vmatpush.msra.mxu0 0.0
  %2575 = vmatpush.msra.mxu0 0.0
  %2576 = vmatpush.msra.mxu0 0.0
  %2577 = vmatpush.msra.mxu0 %v2555
  %2578 = vmatmul.f32.gmra.mxu0 %v2557
  %v2579 = vpop.f32.mrf.mxu0
  %v2580 = vadd.f32 0.0, %v2579
  %2581 = vmatmul.f32.gmra.mxu0 %v2560
  %v2582 = vpop.f32.mrf.mxu0
  %v2583 = vadd.f32 0.0, %v2582
  %2584 = vdwg.mxu0
  %v2585 = vadd.f32 %v2337, %v2580
  %v2586 = vadd.f32 %v2338, %v2583
  %v2587 = vadd.f32 %v1521, %v2585
  %v2588 = vadd.f32 %v1522, %v2586
  %v2590 = vperm.slane %v1528, 0
  %v2592 = vadd.f32 %v2587, %v2590
  %v2593 = vadd.f32 %v2588, %v2590
  %s2594 = scalar_lea.vmem %s15, 64
  %v2595 = vld [vmem:[%s2594] sm:$0xff]
  %v2596 = vld [vmem:[%s2594 + $0x8] sm:$0xff]
  %v2597 = vld [vmem:[%s2594 + $0x10] sm:$0xff]
  %v2598 = vld [vmem:[%s2594 + $0x18] sm:$0xff]
  %v2600 = vperm.slane %v1530, 0
  %2602 = vmatpush.msra.mxu0 0.0
  %2603 = vmatpush.msra.mxu0 0.0
  %2604 = vmatpush.msra.mxu0 0.0
  %2605 = vmatpush.msra.mxu0 0.0
  %2606 = vmatpush.msra.mxu0 0.0
  %2607 = vmatpush.msra.mxu0 0.0
  %2608 = vmatpush.msra.mxu0 0.0
  %2609 = vmatpush.msra.mxu0 0.0
  %2610 = vmatpush.msra.mxu0 0.0
  %2611 = vmatpush.msra.mxu0 0.0
  %2612 = vmatpush.msra.mxu0 0.0
  %2613 = vmatpush.msra.mxu0 0.0
  %2614 = vmatpush.msra.mxu0 %v2598
  %2615 = vmatpush.msra.mxu0 %v2597
  %2616 = vmatpush.msra.mxu0 %v2596
  %2617 = vmatpush.msra.mxu0 %v2595
  %2618 = vmatmul.f32.gmra.mxu0 %v1294
  %v2619 = vpop.f32.mrf.mxu0
  %v2620 = vadd.f32 %v2600, %v2619
  %2621 = vdwg.mxu0
  %s2622 = scalar_lea.vmem %s15, 96
  %v2623 = vld [vmem:[%s2622] sm:$0xff]
  %v2624 = vld [vmem:[%s2622 + $0x8] sm:$0xff]
  %v2625 = vld [vmem:[%s2622 + $0x10] sm:$0xff]
  %v2626 = vld [vmem:[%s2622 + $0x18] sm:$0xff]
  %v2628 = vperm.slane %v1532, 0
  %v2631 = vsel %vm227, %v2620, 0
  %2633 = vmatpush.msra.mxu0 0.0
  %2634 = vmatpush.msra.mxu0 0.0
  %2635 = vmatpush.msra.mxu0 0.0
  %2636 = vmatpush.msra.mxu0 0.0
  %2637 = vmatpush.msra.mxu0 0.0
  %2638 = vmatpush.msra.mxu0 0.0
  %2639 = vmatpush.msra.mxu0 0.0
  %2640 = vmatpush.msra.mxu0 0.0
  %2641 = vmatpush.msra.mxu0 0.0
  %2642 = vmatpush.msra.mxu0 0.0
  %2643 = vmatpush.msra.mxu0 0.0
  %2644 = vmatpush.msra.mxu0 0.0
  %2645 = vmatpush.msra.mxu0 %v2626
  %2646 = vmatpush.msra.mxu0 %v2625
  %2647 = vmatpush.msra.mxu0 %v2624
  %2648 = vmatpush.msra.mxu0 %v2623
  %2649 = vmatmul.f32.gmra.mxu0 %v2631
  %v2650 = vpop.f32.mrf.mxu0
  %v2651 = vadd.f32 %v2628, %v2650
  %2652 = vdwg.mxu0
  %v2654 = vsel %vm115, %v2651, 0
  %2656 = vmatpush.msra.mxu0 0.0
  %2657 = vmatpush.msra.mxu0 0.0
  %2658 = vmatpush.msra.mxu0 0.0
  %2659 = vmatpush.msra.mxu0 0.0
  %2660 = vmatpush.msra.mxu0 0.0
  %2661 = vmatpush.msra.mxu0 0.0
  %2662 = vmatpush.msra.mxu0 0.0
  %2663 = vmatpush.msra.mxu0 0.0
  %2664 = vmatpush.msra.mxu0 0.0
  %2665 = vmatpush.msra.mxu0 0.0
  %2666 = vmatpush.msra.mxu0 0.0
  %2667 = vmatpush.msra.mxu0 0.0
  %2668 = vmatpush.msra.mxu0 0.0
  %2669 = vmatpush.msra.mxu0 0.0
  %2670 = vmatpush.msra.mxu0 0.0
  %2671 = vmatpush.msra.mxu0 %v2654
  %2672 = vmatmul.f32.gmra.mxu0 %v110
  %v2673 = vpop.f32.mrf.mxu0
  %v2674 = vadd.f32 0.0, %v2673
  %2675 = vmatmul.f32.gmra.mxu0 %v113
  %v2676 = vpop.f32.mrf.mxu0
  %v2677 = vadd.f32 0.0, %v2676
  %2678 = vdwg.mxu0
  %v2679 = vadd.f32 %v2592, %v2674
  %v2680 = vadd.f32 %v2593, %v2677
  %v2681 = vsel %vm227, %v2679, 0.0
  %2682 = vadd.xlane.f32.xlu0 %v2681
  %v2683 = vpop.xlane.xlu0 %2682
  %v2684 = vsel %vm227, %v2680, 0.0
  %2685 = vadd.xlane.f32.xlu0 %v2684
  %v2686 = vpop.xlane.xlu0 %2685
  %v2687 = vmul.f32 %v2683, %v240
  %v2688 = vmul.f32 %v2686, %v240
  %v2689 = vsub.f32 %v2679, %v2687
  %v2690 = vsub.f32 %v2680, %v2688
  %v2691 = vmul.f32 %v2689, %v2689
  %v2692 = vmul.f32 %v2690, %v2690
  %v2693 = vsel %vm227, %v2691, 0.0
  %2694 = vadd.xlane.f32.xlu0 %v2693
  %v2695 = vpop.xlane.xlu0 %2694
  %v2696 = vsel %vm227, %v2692, 0.0
  %2697 = vadd.xlane.f32.xlu0 %v2696
  %v2698 = vpop.xlane.xlu0 %2697
  %v2699 = vmul.f32 %v2695, %v240
  %v2700 = vmul.f32 %v2698, %v240
  %v2701 = vadd.f32 %v2699, 1e-05
  %v2702 = vadd.f32 %v2700, 1e-05
  %v2703 = vrsqrt.pop %v2701
  %v2704 = vmul.f32 %v2703, %v2701
  %v2705 = vmul.f32 %v2704, %v2703
  %v2706 = vmul.f32 0.5, %v2705
  %v2707 = vsub.f32 1.5, %v2706
  %v2708 = vmul.f32 %v2703, %v2707
  %vm2709 = vweird.f32 %v2701
  %vm2710 = vweird.f32 %v2703
  %vm2711 = vmor %vm2709, %vm2710
  %v2712 = vsel %vm2711, %v2703, %v2708
  %v2713 = vrsqrt.pop %v2702
  %v2714 = vmul.f32 %v2713, %v2702
  %v2715 = vmul.f32 %v2714, %v2713
  %v2716 = vmul.f32 0.5, %v2715
  %v2717 = vsub.f32 1.5, %v2716
  %v2718 = vmul.f32 %v2713, %v2717
  %vm2719 = vweird.f32 %v2702
  %vm2720 = vweird.f32 %v2713
  %vm2721 = vmor %vm2719, %vm2720
  %v2722 = vsel %vm2721, %v2713, %v2718
  %v2723 = vmul.f32 %v2689, %v2712
  %v2724 = vmul.f32 %v2690, %v2722
  %v2726 = vperm.slane %v1534, 0
  %v2728 = vmul.f32 %v2723, %v2726
  %v2729 = vmul.f32 %v2724, %v2726
  %v2731 = vperm.slane %v1536, 0
  %v2733 = vadd.f32 %v2728, %v2731
  %v2734 = vadd.f32 %v2729, %v2731
  %s2735 = scalar_lea.vmem %s17, 32
  %v2736 = vld [vmem:[%s2735] sm:$0xff]
  %v2737 = vld [vmem:[%s2735 + $0x8] sm:$0xff]
  %v2738 = vld [vmem:[%s2735 + $0x10] sm:$0xff]
  %v2739 = vld [vmem:[%s2735 + $0x18] sm:$0xff]
  %s2740 = scalar_lea.vmem %s18, 1
  %v2741 = vld [vmem:[%s2740] sm:$0x1]
  %v2743 = vperm.slane %v2741, 0
  %v2746 = vsel %vm227, %v2733, 0
  %v2749 = vsel %vm227, %v2734, 0
  %2751 = vmatpush.msra.mxu0 0.0
  %2752 = vmatpush.msra.mxu0 0.0
  %2753 = vmatpush.msra.mxu0 0.0
  %2754 = vmatpush.msra.mxu0 0.0
  %2755 = vmatpush.msra.mxu0 0.0
  %2756 = vmatpush.msra.mxu0 0.0
  %2757 = vmatpush.msra.mxu0 0.0
  %2758 = vmatpush.msra.mxu0 0.0
  %2759 = vmatpush.msra.mxu0 0.0
  %2760 = vmatpush.msra.mxu0 0.0
  %2761 = vmatpush.msra.mxu0 0.0
  %2762 = vmatpush.msra.mxu0 0.0
  %2763 = vmatpush.msra.mxu0 %v2739
  %2764 = vmatpush.msra.mxu0 %v2738
  %2765 = vmatpush.msra.mxu0 %v2737
  %2766 = vmatpush.msra.mxu0 %v2736
  %2767 = vmatmul.f32.gmra.mxu0 %v2746
  %v2768 = vpop.f32.mrf.mxu0
  %v2769 = vadd.f32 %v2743, %v2768
  %2770 = vmatmul.f32.gmra.mxu0 %v2749
  %v2771 = vpop.f32.mrf.mxu0
  %v2772 = vadd.f32 %v2743, %v2771
  %2773 = vdwg.mxu0
  %v2774 = vsub.f32 0.0, %v2769
  %v2775 = vsub.f32 0.0, %v2772
  %v2776 = vmul.f32 %v2774, 1.442695
  %v2777 = vpow.pop %v2776
  %v2778 = vmul.f32 %v2775, 1.442695
  %v2779 = vpow.pop %v2778
  %v2780 = vadd.f32 %v2777, 1.0
  %v2781 = vadd.f32 %v2779, 1.0
  %v2782 = vrcp.pop %v2780
  %v2783 = vrcp.pop %v2781
  %v2784 = vmul.f32 %v2769, %v2782
  %v2785 = vmul.f32 %v2772, %v2783
  %s2786 = scalar_lea.vmem %s19, 64
  %v2787 = vld [vmem:[%s2786] sm:$0xff]
  %v2788 = vld [vmem:[%s2786 + $0x8] sm:$0xff]
  %v2789 = vld [vmem:[%s2786 + $0x10] sm:$0xff]
  %v2790 = vld [vmem:[%s2786 + $0x18] sm:$0xff]
  %v2791 = vld [vmem:[%s2786 + $0x20] sm:$0xff]
  %v2792 = vld [vmem:[%s2786 + $0x28] sm:$0xff]
  %v2793 = vld [vmem:[%s2786 + $0x30] sm:$0xff]
  %v2794 = vld [vmem:[%s2786 + $0x38] sm:$0xff]
  %v2796 = vsel %vm1486, %v2784, 0
  %v2799 = vsel %vm1486, %v2785, 0
  %2801 = vmatpush.msra.mxu0 0.0
  %2802 = vmatpush.msra.mxu0 0.0
  %2803 = vmatpush.msra.mxu0 0.0
  %2804 = vmatpush.msra.mxu0 0.0
  %2805 = vmatpush.msra.mxu0 0.0
  %2806 = vmatpush.msra.mxu0 0.0
  %2807 = vmatpush.msra.mxu0 0.0
  %2808 = vmatpush.msra.mxu0 0.0
  %2809 = vmatpush.msra.mxu0 %v2794
  %2810 = vmatpush.msra.mxu0 %v2793
  %2811 = vmatpush.msra.mxu0 %v2792
  %2812 = vmatpush.msra.mxu0 %v2791
  %2813 = vmatpush.msra.mxu0 %v2790
  %2814 = vmatpush.msra.mxu0 %v2789
  %2815 = vmatpush.msra.mxu0 %v2788
  %2816 = vmatpush.msra.mxu0 %v2787
  %2817 = vmatmul.f32.gmra.mxu0 %v2796
  %v2818 = vpop.f32.mrf.mxu0
  %v2819 = vadd.f32 0.0, %v2818
  %2820 = vmatmul.f32.gmra.mxu0 %v2799
  %v2821 = vpop.f32.mrf.mxu0
  %v2822 = vadd.f32 0.0, %v2821
  %2823 = vdwg.mxu0
  %v2824 = vadd.f32 %v2679, %v2819
  %v2825 = vadd.f32 %v2680, %v2822
  %v2827 = vperm.slane %v1538, 0
  %v2829 = vadd.f32 %v2824, %v2827
  %v2830 = vadd.f32 %v2825, %v2827
  %v2831 = vld [vmem:[%s20] sm:$0x1]
  %s2832 = scalar_lea.vmem %s20, 1
  %v2833 = vld [vmem:[%s2832] sm:$0x1]
  %v2834 = vsel %vm227, %v2829, 0.0
  %2835 = vadd.xlane.f32.xlu0 %v2834
  %v2836 = vpop.xlane.xlu0 %2835
  %v2837 = vsel %vm227, %v2830, 0.0
  %2838 = vadd.xlane.f32.xlu0 %v2837
  %v2839 = vpop.xlane.xlu0 %2838
  %v2840 = vmul.f32 %v2836, %v240
  %v2841 = vmul.f32 %v2839, %v240
  %v2842 = vsub.f32 %v2829, %v2840
  %v2843 = vsub.f32 %v2830, %v2841
  %v2844 = vmul.f32 %v2842, %v2842
  %v2845 = vmul.f32 %v2843, %v2843
  %v2846 = vsel %vm227, %v2844, 0.0
  %2847 = vadd.xlane.f32.xlu0 %v2846
  %v2848 = vpop.xlane.xlu0 %2847
  %v2849 = vsel %vm227, %v2845, 0.0
  %2850 = vadd.xlane.f32.xlu0 %v2849
  %v2851 = vpop.xlane.xlu0 %2850
  %v2852 = vmul.f32 %v2848, %v240
  %v2853 = vmul.f32 %v2851, %v240
  %v2854 = vadd.f32 %v2852, 1e-05
  %v2855 = vadd.f32 %v2853, 1e-05
  %v2856 = vrsqrt.pop %v2854
  %v2857 = vmul.f32 %v2856, %v2854
  %v2858 = vmul.f32 %v2857, %v2856
  %v2859 = vmul.f32 0.5, %v2858
  %v2860 = vsub.f32 1.5, %v2859
  %v2861 = vmul.f32 %v2856, %v2860
  %vm2862 = vweird.f32 %v2854
  %vm2863 = vweird.f32 %v2856
  %vm2864 = vmor %vm2862, %vm2863
  %v2865 = vsel %vm2864, %v2856, %v2861
  %v2866 = vrsqrt.pop %v2855
  %v2867 = vmul.f32 %v2866, %v2855
  %v2868 = vmul.f32 %v2867, %v2866
  %v2869 = vmul.f32 0.5, %v2868
  %v2870 = vsub.f32 1.5, %v2869
  %v2871 = vmul.f32 %v2866, %v2870
  %vm2872 = vweird.f32 %v2855
  %vm2873 = vweird.f32 %v2866
  %vm2874 = vmor %vm2872, %vm2873
  %v2875 = vsel %vm2874, %v2866, %v2871
  %v2876 = vmul.f32 %v2842, %v2865
  %v2877 = vmul.f32 %v2843, %v2875
  %v2879 = vperm.slane %v2831, 0
  %v2881 = vmul.f32 %v2876, %v2879
  %v2882 = vmul.f32 %v2877, %v2879
  %v2884 = vperm.slane %v2833, 0
  %v2886 = vadd.f32 %v2881, %v2884
  %v2887 = vadd.f32 %v2882, %v2884
  %v2888 = vld [vmem:[%s21] sm:$0xff]
  %v2889 = vld [vmem:[%s21 + $0x8] sm:$0xff]
  %v2890 = vld [vmem:[%s21 + $0x10] sm:$0xff]
  %v2891 = vld [vmem:[%s21 + $0x18] sm:$0xff]
  %v2892 = vld [vmem:[%s22] sm:$0x1]
  %v2894 = vperm.slane %v2892, 0
  %v2897 = vsel %vm227, %v2886, 0
  %v2900 = vsel %vm227, %v2887, 0
  %2902 = vmatpush.msra.mxu0 0.0
  %2903 = vmatpush.msra.mxu0 0.0
  %2904 = vmatpush.msra.mxu0 0.0
  %2905 = vmatpush.msra.mxu0 0.0
  %2906 = vmatpush.msra.mxu0 0.0
  %2907 = vmatpush.msra.mxu0 0.0
  %2908 = vmatpush.msra.mxu0 0.0
  %2909 = vmatpush.msra.mxu0 0.0
  %2910 = vmatpush.msra.mxu0 0.0
  %2911 = vmatpush.msra.mxu0 0.0
  %2912 = vmatpush.msra.mxu0 0.0
  %2913 = vmatpush.msra.mxu0 0.0
  %2914 = vmatpush.msra.mxu0 %v2891
  %2915 = vmatpush.msra.mxu0 %v2890
  %2916 = vmatpush.msra.mxu0 %v2889
  %2917 = vmatpush.msra.mxu0 %v2888
  %2918 = vmatmul.f32.gmra.mxu0 %v2897
  %v2919 = vpop.f32.mrf.mxu0
  %v2920 = vadd.f32 %v2894, %v2919
  %2921 = vmatmul.f32.gmra.mxu0 %v2900
  %v2922 = vpop.f32.mrf.mxu0
  %v2923 = vadd.f32 %v2894, %v2922
  %2924 = vdwg.mxu0
  %2925 = vst.msk [vmem:[%s23] sm:$0xff] %vm142, %v2920
  %2926 = vst.msk [vmem:[%s23 + $0x8] sm:$0xff] %vm142, %v2923
  // Predicated region
  $region94: #{transformer_diffusion_head_forward.1} parent=0 // pred_check
    _
  $region95: #{transformer_diffusion_head_forward.1} parent=0 // pred_check_branch
    %2928 = sbr.rel (0) target = $region97
  $region96: #{transformer_diffusion_head_forward.1} parent=0 // pred_region
    _
  $region97: #{transformer_diffusion_head_forward.1} parent=0 // pred_fallthru
    _
  // Predicated region
  $region98: #{transformer_diffusion_head_forward.1} parent=0 // pred_check
    _
  $region99: #{transformer_diffusion_head_forward.1} parent=0 // pred_check_branch
    %2930 = sbr.rel (0) target = $region101
  $region100: #{transformer_diffusion_head_forward.1} parent=0 // pred_region
    _
  $region101: #{transformer_diffusion_head_forward.1} parent=0 // pred_fallthru
    _

</llo_original>
